<compile_context>
chip_gen: v6e
topology: v6e:2x2x1
jax: 0.10.0
libtpu: 0.0.40
codegen_flags: <defaults>
</compile_context>

<pallas_src>
import functools

import jax
import jax.numpy as jnp
from jax import lax
from jax.experimental import pallas as pl
from jax.experimental.pallas import tpu as pltpu


def _round_up(x, m):
    return ((x + m - 1) // m) * m


def _double_conv_kernel(p_ref, w1_ref, b1_ref, w2_ref, b2_ref, o_ref,
                        hpad_ref, *, H, W, CmidP, CoutP, Cout_r8, dot_dtype):
    """Fused (conv3x3 + BN + ReLU) x 2 for one image.

    p_ref:    (1, H*W, K1P)        pre-built layer-1 im2col patches
    w1_ref:   (K1P, CmidP)         layer-1 weights, BN1 scale folded in
    b1_ref:   (1, CmidP)           layer-1 folded BN shift (f32)
    w2_ref:   (9, CmidP, CoutP)    layer-2 per-tap weights, BN2 scale folded in
    b2_ref:   (1, CoutP)           layer-2 folded BN shift (f32)
    o_ref:    (1, Cout_r8, H*W)    NCHW-ordered, lane-dense output (f32)
    hpad_ref: (H+2, W+2, CmidP)    VMEM scratch: zero-halo intermediate (f32)
    """
    HW = H * W

    # ---- layer 1: single im2col matmul + shift + ReLU (f32 accumulate) ----
    h = jnp.dot(p_ref[0], w1_ref[...], preferred_element_type=jnp.float32)
    h = jnp.maximum(h + b1_ref[...], 0.0)                     # (HW, CmidP)
    # Padded mid channels: zero weights + zero shift -> relu(0) = 0.

    # ---- stage h in the VMEM halo buffer (no HBM round-trip) ----
    # Zero only the 1-px border; the interior is fully overwritten below.
    zrow = jnp.zeros((1, W + 2, CmidP), jnp.float32)
    hpad_ref[0:1, :, :] = zrow
    hpad_ref[H + 1:H + 2, :, :] = zrow
    zcol = jnp.zeros((H + 2, 1, CmidP), jnp.float32)
    hpad_ref[:, 0:1, :] = zcol
    hpad_ref[:, W + 1:W + 2, :] = zcol
    hpad_ref[1:H + 1, 1:W + 1, :] = h.reshape(H, W, CmidP)

    # ---- layer 2: 9 shifted accumulating matmuls (no im2col buffer) ----
    acc = jnp.zeros((HW, CoutP), jnp.float32)
    for k in range(9):
        dy, dx = divmod(k, 3)
        hk = hpad_ref[dy:dy + H, dx:dx + W, :].reshape(HW, CmidP)
        acc = acc + jnp.dot(hk.astype(dot_dtype), w2_ref[k],
                            preferred_element_type=jnp.float32)
    y = jnp.maximum(acc + b2_ref[...], 0.0)                    # (HW, CoutP)

    # ---- NCHW epilogue: XLU transpose, store only the real channels ----
    yt = y.T                                                   # (CoutP, HW)
    o_ref[...] = yt[:Cout_r8, :].reshape(1, Cout_r8, HW)


def _fold_bn(gamma, beta, running_mean, running_var, eps=1e-5):
    scale = gamma / jnp.sqrt(running_var + eps)
    shift = beta - running_mean * scale
    return scale, shift


def double_conv(x_nchw, params, *, compute_dtype=jnp.float32):
    """Forward pass matching DoubleConv (eval-mode BN). Input/output NCHW."""
    N, Cin, H, W = x_nchw.shape
    w1 = params["w1"]                      # (3, 3, Cin,  Cmid)  HWIO
    w2 = params["w2"]                      # (3, 3, Cmid, Cout)  HWIO
    Cmid = w1.shape[-1]
    Cout = w2.shape[-1]
    HW = H * W
    CmidP = _round_up(Cmid, 128)           # lane-dense intermediate / K of conv2
    CoutP = _round_up(Cout, 128)           # lane-dense matmul output axis
    Cout_r8 = _round_up(Cout, 8)           # sublane-aligned channels stored
    K1 = 9 * Cin
    K1P = _round_up(K1, 16)                # small K pad (robust for f32 & bf16)

    # Fold eval-mode BatchNorm into the conv weights (scale) + a shift.
    s1, b1 = _fold_bn(params["bn1"]["gamma"], params["bn1"]["beta"],
                      params["bn1"]["mean"], params["bn1"]["var"])
    s2, b2 = _fold_bn(params["bn2"]["gamma"], params["bn2"]["beta"],
                      params["bn2"]["mean"], params["bn2"]["var"])

    # ---- Layer-1 im2col patches built in the wrapper (plain XLA) ----
    # NCHW -> NHWC, spatial SAME padding (done once for the fused pair).
    x = jnp.transpose(x_nchw, (0, 2, 3, 1)).astype(jnp.float32)
    x_pad = jnp.pad(x, ((0, 0), (1, 1), (1, 1), (0, 0)))
    taps = [x_pad[:, dy:dy + H, dx:dx + W, :]
            for dy in range(3) for dx in range(3)]
    patches = jnp.concatenate(taps, axis=-1).reshape(N, HW, K1)   # (k, cin)-minor
    patches = jnp.pad(patches, ((0, 0), (0, 0), (0, K1P - K1)))
    patches = patches.astype(compute_dtype)

    # Layer-1 weights: (9*Cin, Cmid) * scale, padded; (k, cin) row order matches.
    w1m = w1.reshape(K1, Cmid) * s1[None, :]
    w1m = jnp.pad(w1m, ((0, K1P - K1), (0, CmidP - Cmid))).astype(compute_dtype)
    b1p = jnp.pad(b1, (0, CmidP - Cmid)).reshape(1, CmidP).astype(jnp.float32)

    # Layer-2 per-tap weights: (9, CmidP, CoutP), BN2 scale folded, zero-padded.
    w2m = w2 * s2                                       # broadcast over Cout
    w2m = jnp.pad(w2m, ((0, 0), (0, 0), (0, CmidP - Cmid), (0, CoutP - Cout)))
    w2m = w2m.reshape(9, CmidP, CoutP).astype(compute_dtype)
    b2p = jnp.pad(b2, (0, CoutP - Cout)).reshape(1, CoutP).astype(jnp.float32)

    kernel = functools.partial(_double_conv_kernel, H=H, W=W, CmidP=CmidP,
                               CoutP=CoutP, Cout_r8=Cout_r8,
                               dot_dtype=compute_dtype)

    # True (un-padded) work for the scheduler hint.
    flops = 2 * N * HW * (9 * Cin) * Cmid + 2 * N * HW * (9 * Cmid) * Cout
    itemsize = jnp.dtype(compute_dtype).itemsize
    bytes_accessed = (itemsize * (patches.size + w1m.size + w2m.size)
                      + 4 * (b1p.size + b2p.size + N * Cout_r8 * HW))
    cost = pl.CostEstimate(flops=int(flops), transcendentals=0,
                           bytes_accessed=int(bytes_accessed))

    out = pl.pallas_call(
        kernel,
        out_shape=jax.ShapeDtypeStruct((N, Cout_r8, HW), jnp.float32),
        grid=(N,),
        in_specs=[
            pl.BlockSpec((1, HW, K1P), lambda n: (n, 0, 0)),       # patches
            pl.BlockSpec((K1P, CmidP), lambda n: (0, 0)),          # w1
            pl.BlockSpec((1, CmidP), lambda n: (0, 0)),            # b1
            pl.BlockSpec((9, CmidP, CoutP), lambda n: (0, 0, 0)),  # w2
            pl.BlockSpec((1, CoutP), lambda n: (0, 0)),            # b2
        ],
        out_specs=pl.BlockSpec((1, Cout_r8, HW), lambda n: (n, 0, 0)),
        scratch_shapes=[
            pltpu.VMEM((H + 2, W + 2, CmidP), jnp.float32),        # halo'd h
        ],
        compiler_params=pltpu.CompilerParams(
            dimension_semantics=("parallel",),
            vmem_limit_bytes=32 * 1024 * 1024),
        cost_estimate=cost,
    )(patches, w1m, b1p, w2m, b2p)

    # Output is already NCHW-ordered and lane-dense; just drop padded channels.
    y = out.reshape(N, Cout_r8, H, W)
    return y[:, :Cout]


def make_double_conv_params(key, in_channels, out_channels, mid_channels=None):
    if not mid_channels:
        mid_channels = out_channels
    k1, k2, k3, k4, k5, k6, k7, k8 = jax.random.split(key, 8)
    # Conv weights in PyTorch layout (Cout, Cin, 3, 3) -> HWIO (3, 3, Cin, Cout).
    w1_oihw = jax.random.normal(k1, (mid_channels, in_channels, 3, 3),
                                jnp.float32) * 0.1
    w2_oihw = jax.random.normal(k2, (out_channels, mid_channels, 3, 3),
                                jnp.float32) * 0.1
    w1 = jnp.transpose(w1_oihw, (2, 3, 1, 0))
    w2 = jnp.transpose(w2_oihw, (2, 3, 1, 0))
    bn1 = dict(
        gamma=1.0 + 0.1 * jax.random.normal(k3, (mid_channels,), jnp.float32),
        beta=0.1 * jax.random.normal(k4, (mid_channels,), jnp.float32),
        mean=0.05 * jax.random.normal(k5, (mid_channels,), jnp.float32),
        var=jnp.abs(1.0 + 0.1 * jax.random.normal(k6, (mid_channels,),
                                                  jnp.float32)),
    )
    bn2 = dict(
        gamma=1.0 + 0.1 * jax.random.normal(k7, (out_channels,), jnp.float32),
        beta=0.1 * jax.random.normal(k8, (out_channels,), jnp.float32),
        mean=jnp.zeros((out_channels,), jnp.float32),
        var=jnp.ones((out_channels,), jnp.float32),
    )
    return dict(w1=w1, bn1=bn1, w2=w2, bn2=bn2)


def _reference(x_nchw, params):
    """Pure-JAX reference (lax.conv) for the correctness check."""
    x = jnp.transpose(x_nchw, (0, 2, 3, 1)).astype(jnp.float32)
    dn = ("NHWC", "HWIO", "NHWC")

    def block(x, w, bn):
        y = lax.conv_general_dilated(x, w, (1, 1), "SAME",
                                     dimension_numbers=dn)
        s, b = _fold_bn(bn["gamma"], bn["beta"], bn["mean"], bn["var"])
        return jnp.maximum(y * s + b, 0.0)

    y = block(block(x, params["w1"], params["bn1"]), params["w2"],
              params["bn2"])
    return jnp.transpose(y, (0, 3, 1, 2))


if __name__ == "__main__":
    key = jax.random.PRNGKey(0)
    k_x, k_p = jax.random.split(key)

    N, Cin, H, W = 2, 4, 16, 16
    Cout = 8
    x = jax.random.normal(k_x, (N, Cin, H, W), jnp.float32)        # NCHW input
    params = make_double_conv_params(k_p, Cin, Cout)

    ref = jax.block_until_ready(_reference(x, params))

    # f32 MXU operands: tight correctness check.
    out_f32 = jax.block_until_ready(
        double_conv(x, params, compute_dtype=jnp.float32))
    assert out_f32.shape == (N, Cout, H, W)
    assert jnp.allclose(out_f32, ref, atol=1e-4, rtol=1e-4)

    # bf16 MXU operands (recommended on v6e/v7x), f32 accumulate: looser check.
    out_bf16 = jax.block_until_ready(
        double_conv(x, params, compute_dtype=jnp.bfloat16))
    assert out_bf16.shape == (N, Cout, H, W)
    assert jnp.allclose(out_bf16, ref, atol=1e-1, rtol=1e-1)

    print("KERNEL_OK")
</pallas_src>

<mosaic_0001>
module attributes {stable_mosaic.version = 11 : i64} {
  func.func @_double_conv_kernel(%arg0: i32, %arg1: memref<1x256x48xf32, #tpu.memory_space<vmem>>, %arg2: memref<48x128xf32, #tpu.memory_space<vmem>>, %arg3: memref<1x128xf32, #tpu.memory_space<vmem>>, %arg4: memref<9x128x128xf32, #tpu.memory_space<vmem>>, %arg5: memref<1x128xf32, #tpu.memory_space<vmem>>, %arg6: memref<1x8x256xf32, #tpu.memory_space<vmem>>, %arg7: memref<18x18x128xf32, #tpu.memory_space<vmem>>) attributes {dimension_semantics = [#tpu.dimension_semantics<parallel>], iteration_bounds = array<i64: 2>, scalar_prefetch = 0 : i64, scratch_operands = 1 : i64, tpu.core_type = #tpu.core_type<tc>, window_params = [{transform_indices = @transform_0, window_bounds = array<i64: 1, 256, 48>}, {pipeline_mode = #tpu.pipeline_mode<synchronous>, transform_indices = @transform_1, window_bounds = array<i64: 48, 128>}, {pipeline_mode = #tpu.pipeline_mode<synchronous>, transform_indices = @transform_2, window_bounds = array<i64: 1, 128>}, {pipeline_mode = #tpu.pipeline_mode<synchronous>, transform_indices = @transform_3, window_bounds = array<i64: 9, 128, 128>}, {pipeline_mode = #tpu.pipeline_mode<synchronous>, transform_indices = @transform_4, window_bounds = array<i64: 1, 128>}, {transform_indices = @transform_5, window_bounds = array<i64: 1, 8, 256>}]} {
    %c0 = arith.constant 0 : index
    %c0_0 = arith.constant 0 : index
    %c0_1 = arith.constant 0 : index
    %0 = vector.load %arg1[%c0, %c0_0, %c0_1] : memref<1x256x48xf32, #tpu.memory_space<vmem>>, vector<1x256x48xf32>
    %1 = vector.shape_cast %0 : vector<1x256x48xf32> to vector<256x48xf32>
    %c0_2 = arith.constant 0 : index
    %c0_3 = arith.constant 0 : index
    %2 = vector.load %arg2[%c0_2, %c0_3] : memref<48x128xf32, #tpu.memory_space<vmem>>, vector<48x128xf32>
    %cst = arith.constant dense<0.000000e+00> : vector<256x128xf32>
    %3 = tpu.matmul %1, %2, %cst {dimension_numbers = #tpu.dot_dimension_numbers<[1], [0], [0], [1], [0, 0, 1, 1], [], []>} : vector<256x48xf32>, vector<48x128xf32>, vector<256x128xf32> -> vector<256x128xf32>
    %c0_4 = arith.constant 0 : index
    %c0_5 = arith.constant 0 : index
    %4 = vector.load %arg3[%c0_4, %c0_5] : memref<1x128xf32, #tpu.memory_space<vmem>>, vector<1x128xf32>
    %5 = vector.broadcast %4 : vector<1x128xf32> to vector<256x128xf32>
    %6 = arith.addf %3, %5 : vector<256x128xf32>
    %cst_6 = arith.constant 0.000000e+00 : f32
    %7 = vector.broadcast %cst_6 : f32 to vector<256x128xf32>
    %8 = arith.maximumf %6, %7 : vector<256x128xf32>
    %cst_7 = arith.constant 0.000000e+00 : f32
    %9 = vector.broadcast %cst_7 : f32 to vector<1x18x128xf32>
    %c0_8 = arith.constant 0 : index
    %c0_9 = arith.constant 0 : index
    %c0_10 = arith.constant 0 : index
    %10 = vector.load %arg7[%c0_8, %c0_9, %c0_10] : memref<18x18x128xf32, #tpu.memory_space<vmem>>, vector<1x18x128xf32>
    tpu.vector_store %arg7[%c0_8, %c0_9, %c0_10], %9 {strides = array<i32>} : memref<18x18x128xf32, #tpu.memory_space<vmem>>, vector<1x18x128xf32>,
    %c17 = arith.constant 17 : index
    %c0_11 = arith.constant 0 : index
    %c0_12 = arith.constant 0 : index
    %11 = vector.load %arg7[%c17, %c0_11, %c0_12] : memref<18x18x128xf32, #tpu.memory_space<vmem>>, vector<1x18x128xf32>
    tpu.vector_store %arg7[%c17, %c0_11, %c0_12], %9 {strides = array<i32>} : memref<18x18x128xf32, #tpu.memory_space<vmem>>, vector<1x18x128xf32>,
    %cst_13 = arith.constant 0.000000e+00 : f32
    %12 = vector.broadcast %cst_13 : f32 to vector<18x1x128xf32>
    %c0_14 = arith.constant 0 : index
    %c0_15 = arith.constant 0 : index
    %c0_16 = arith.constant 0 : index
    %13 = vector.load %arg7[%c0_14, %c0_15, %c0_16] : memref<18x18x128xf32, #tpu.memory_space<vmem>>, vector<18x1x128xf32>
    tpu.vector_store %arg7[%c0_14, %c0_15, %c0_16], %12 {strides = array<i32>} : memref<18x18x128xf32, #tpu.memory_space<vmem>>, vector<18x1x128xf32>,
    %c0_17 = arith.constant 0 : index
    %c17_18 = arith.constant 17 : index
    %c0_19 = arith.constant 0 : index
    %14 = vector.load %arg7[%c0_17, %c17_18, %c0_19] : memref<18x18x128xf32, #tpu.memory_space<vmem>>, vector<18x1x128xf32>
    tpu.vector_store %arg7[%c0_17, %c17_18, %c0_19], %12 {strides = array<i32>} : memref<18x18x128xf32, #tpu.memory_space<vmem>>, vector<18x1x128xf32>,
    %15 = vector.shape_cast %8 : vector<256x128xf32> to vector<16x16x128xf32>
    %c1 = arith.constant 1 : index
    %c1_20 = arith.constant 1 : index
    %c0_21 = arith.constant 0 : index
    %16 = vector.load %arg7[%c1, %c1_20, %c0_21] : memref<18x18x128xf32, #tpu.memory_space<vmem>>, vector<16x16x128xf32>
    tpu.vector_store %arg7[%c1, %c1_20, %c0_21], %15 {strides = array<i32>} : memref<18x18x128xf32, #tpu.memory_space<vmem>>, vector<16x16x128xf32>,
    %cst_22 = arith.constant 0.000000e+00 : f32
    %17 = vector.broadcast %cst_22 : f32 to vector<256x128xf32>
    %c0_23 = arith.constant 0 : index
    %c0_24 = arith.constant 0 : index
    %c0_25 = arith.constant 0 : index
    %18 = vector.load %arg7[%c0_23, %c0_24, %c0_25] : memref<18x18x128xf32, #tpu.memory_space<vmem>>, vector<16x16x128xf32>
    %19 = vector.shape_cast %18 : vector<16x16x128xf32> to vector<256x128xf32>
    %c0_26 = arith.constant 0 : index
    %c0_27 = arith.constant 0 : index
    %c0_28 = arith.constant 0 : index
    %20 = vector.load %arg4[%c0_26, %c0_27, %c0_28] : memref<9x128x128xf32, #tpu.memory_space<vmem>>, vector<1x128x128xf32>
    %21 = vector.shape_cast %20 : vector<1x128x128xf32> to vector<128x128xf32>
    %cst_29 = arith.constant dense<0.000000e+00> : vector<256x128xf32>
    %22 = tpu.matmul %19, %21, %cst_29 {dimension_numbers = #tpu.dot_dimension_numbers<[1], [0], [0], [1], [0, 0, 1, 1], [], []>} : vector<256x128xf32>, vector<128x128xf32>, vector<256x128xf32> -> vector<256x128xf32>
    %23 = arith.addf %17, %22 : vector<256x128xf32>
    %c0_30 = arith.constant 0 : index
    %c1_31 = arith.constant 1 : index
    %c0_32 = arith.constant 0 : index
    %24 = vector.load %arg7[%c0_30, %c1_31, %c0_32] : memref<18x18x128xf32, #tpu.memory_space<vmem>>, vector<16x16x128xf32>
    %25 = vector.shape_cast %24 : vector<16x16x128xf32> to vector<256x128xf32>
    %c1_33 = arith.constant 1 : index
    %c0_34 = arith.constant 0 : index
    %c0_35 = arith.constant 0 : index
    %26 = vector.load %arg4[%c1_33, %c0_34, %c0_35] : memref<9x128x128xf32, #tpu.memory_space<vmem>>, vector<1x128x128xf32>
    %27 = vector.shape_cast %26 : vector<1x128x128xf32> to vector<128x128xf32>
    %cst_36 = arith.constant dense<0.000000e+00> : vector<256x128xf32>
    %28 = tpu.matmul %25, %27, %cst_36 {dimension_numbers = #tpu.dot_dimension_numbers<[1], [0], [0], [1], [0, 0, 1, 1], [], []>} : vector<256x128xf32>, vector<128x128xf32>, vector<256x128xf32> -> vector<256x128xf32>
    %29 = arith.addf %23, %28 : vector<256x128xf32>
    %c0_37 = arith.constant 0 : index
    %c2 = arith.constant 2 : index
    %c0_38 = arith.constant 0 : index
    %30 = vector.load %arg7[%c0_37, %c2, %c0_38] : memref<18x18x128xf32, #tpu.memory_space<vmem>>, vector<16x16x128xf32>
    %31 = vector.shape_cast %30 : vector<16x16x128xf32> to vector<256x128xf32>
    %c2_39 = arith.constant 2 : index
    %c0_40 = arith.constant 0 : index
    %c0_41 = arith.constant 0 : index
    %32 = vector.load %arg4[%c2_39, %c0_40, %c0_41] : memref<9x128x128xf32, #tpu.memory_space<vmem>>, vector<1x128x128xf32>
    %33 = vector.shape_cast %32 : vector<1x128x128xf32> to vector<128x128xf32>
    %cst_42 = arith.constant dense<0.000000e+00> : vector<256x128xf32>
    %34 = tpu.matmul %31, %33, %cst_42 {dimension_numbers = #tpu.dot_dimension_numbers<[1], [0], [0], [1], [0, 0, 1, 1], [], []>} : vector<256x128xf32>, vector<128x128xf32>, vector<256x128xf32> -> vector<256x128xf32>
    %35 = arith.addf %29, %34 : vector<256x128xf32>
    %c1_43 = arith.constant 1 : index
    %c0_44 = arith.constant 0 : index
    %c0_45 = arith.constant 0 : index
    %36 = vector.load %arg7[%c1_43, %c0_44, %c0_45] : memref<18x18x128xf32, #tpu.memory_space<vmem>>, vector<16x16x128xf32>
    %37 = vector.shape_cast %36 : vector<16x16x128xf32> to vector<256x128xf32>
    %c3 = arith.constant 3 : index
    %c0_46 = arith.constant 0 : index
    %c0_47 = arith.constant 0 : index
    %38 = vector.load %arg4[%c3, %c0_46, %c0_47] : memref<9x128x128xf32, #tpu.memory_space<vmem>>, vector<1x128x128xf32>
    %39 = vector.shape_cast %38 : vector<1x128x128xf32> to vector<128x128xf32>
    %cst_48 = arith.constant dense<0.000000e+00> : vector<256x128xf32>
    %40 = tpu.matmul %37, %39, %cst_48 {dimension_numbers = #tpu.dot_dimension_numbers<[1], [0], [0], [1], [0, 0, 1, 1], [], []>} : vector<256x128xf32>, vector<128x128xf32>, vector<256x128xf32> -> vector<256x128xf32>
    %41 = arith.addf %35, %40 : vector<256x128xf32>
    %c1_49 = arith.constant 1 : index
    %c1_50 = arith.constant 1 : index
    %c0_51 = arith.constant 0 : index
    %42 = vector.load %arg7[%c1_49, %c1_50, %c0_51] : memref<18x18x128xf32, #tpu.memory_space<vmem>>, vector<16x16x128xf32>
    %43 = vector.shape_cast %42 : vector<16x16x128xf32> to vector<256x128xf32>
    %c4 = arith.constant 4 : index
    %c0_52 = arith.constant 0 : index
    %c0_53 = arith.constant 0 : index
    %44 = vector.load %arg4[%c4, %c0_52, %c0_53] : memref<9x128x128xf32, #tpu.memory_space<vmem>>, vector<1x128x128xf32>
    %45 = vector.shape_cast %44 : vector<1x128x128xf32> to vector<128x128xf32>
    %cst_54 = arith.constant dense<0.000000e+00> : vector<256x128xf32>
    %46 = tpu.matmul %43, %45, %cst_54 {dimension_numbers = #tpu.dot_dimension_numbers<[1], [0], [0], [1], [0, 0, 1, 1], [], []>} : vector<256x128xf32>, vector<128x128xf32>, vector<256x128xf32> -> vector<256x128xf32>
    %47 = arith.addf %41, %46 : vector<256x128xf32>
    %c1_55 = arith.constant 1 : index
    %c2_56 = arith.constant 2 : index
    %c0_57 = arith.constant 0 : index
    %48 = vector.load %arg7[%c1_55, %c2_56, %c0_57] : memref<18x18x128xf32, #tpu.memory_space<vmem>>, vector<16x16x128xf32>
    %49 = vector.shape_cast %48 : vector<16x16x128xf32> to vector<256x128xf32>
    %c5 = arith.constant 5 : index
    %c0_58 = arith.constant 0 : index
    %c0_59 = arith.constant 0 : index
    %50 = vector.load %arg4[%c5, %c0_58, %c0_59] : memref<9x128x128xf32, #tpu.memory_space<vmem>>, vector<1x128x128xf32>
    %51 = vector.shape_cast %50 : vector<1x128x128xf32> to vector<128x128xf32>
    %cst_60 = arith.constant dense<0.000000e+00> : vector<256x128xf32>
    %52 = tpu.matmul %49, %51, %cst_60 {dimension_numbers = #tpu.dot_dimension_numbers<[1], [0], [0], [1], [0, 0, 1, 1], [], []>} : vector<256x128xf32>, vector<128x128xf32>, vector<256x128xf32> -> vector<256x128xf32>
    %53 = arith.addf %47, %52 : vector<256x128xf32>
    %c2_61 = arith.constant 2 : index
    %c0_62 = arith.constant 0 : index
    %c0_63 = arith.constant 0 : index
    %54 = vector.load %arg7[%c2_61, %c0_62, %c0_63] : memref<18x18x128xf32, #tpu.memory_space<vmem>>, vector<16x16x128xf32>
    %55 = vector.shape_cast %54 : vector<16x16x128xf32> to vector<256x128xf32>
    %c6 = arith.constant 6 : index
    %c0_64 = arith.constant 0 : index
    %c0_65 = arith.constant 0 : index
    %56 = vector.load %arg4[%c6, %c0_64, %c0_65] : memref<9x128x128xf32, #tpu.memory_space<vmem>>, vector<1x128x128xf32>
    %57 = vector.shape_cast %56 : vector<1x128x128xf32> to vector<128x128xf32>
    %cst_66 = arith.constant dense<0.000000e+00> : vector<256x128xf32>
    %58 = tpu.matmul %55, %57, %cst_66 {dimension_numbers = #tpu.dot_dimension_numbers<[1], [0], [0], [1], [0, 0, 1, 1], [], []>} : vector<256x128xf32>, vector<128x128xf32>, vector<256x128xf32> -> vector<256x128xf32>
    %59 = arith.addf %53, %58 : vector<256x128xf32>
    %c2_67 = arith.constant 2 : index
    %c1_68 = arith.constant 1 : index
    %c0_69 = arith.constant 0 : index
    %60 = vector.load %arg7[%c2_67, %c1_68, %c0_69] : memref<18x18x128xf32, #tpu.memory_space<vmem>>, vector<16x16x128xf32>
    %61 = vector.shape_cast %60 : vector<16x16x128xf32> to vector<256x128xf32>
    %c7 = arith.constant 7 : index
    %c0_70 = arith.constant 0 : index
    %c0_71 = arith.constant 0 : index
    %62 = vector.load %arg4[%c7, %c0_70, %c0_71] : memref<9x128x128xf32, #tpu.memory_space<vmem>>, vector<1x128x128xf32>
    %63 = vector.shape_cast %62 : vector<1x128x128xf32> to vector<128x128xf32>
    %cst_72 = arith.constant dense<0.000000e+00> : vector<256x128xf32>
    %64 = tpu.matmul %61, %63, %cst_72 {dimension_numbers = #tpu.dot_dimension_numbers<[1], [0], [0], [1], [0, 0, 1, 1], [], []>} : vector<256x128xf32>, vector<128x128xf32>, vector<256x128xf32> -> vector<256x128xf32>
    %65 = arith.addf %59, %64 : vector<256x128xf32>
    %c2_73 = arith.constant 2 : index
    %c2_74 = arith.constant 2 : index
    %c0_75 = arith.constant 0 : index
    %66 = vector.load %arg7[%c2_73, %c2_74, %c0_75] : memref<18x18x128xf32, #tpu.memory_space<vmem>>, vector<16x16x128xf32>
    %67 = vector.shape_cast %66 : vector<16x16x128xf32> to vector<256x128xf32>
    %c8 = arith.constant 8 : index
    %c0_76 = arith.constant 0 : index
    %c0_77 = arith.constant 0 : index
    %68 = vector.load %arg4[%c8, %c0_76, %c0_77] : memref<9x128x128xf32, #tpu.memory_space<vmem>>, vector<1x128x128xf32>
    %69 = vector.shape_cast %68 : vector<1x128x128xf32> to vector<128x128xf32>
    %cst_78 = arith.constant dense<0.000000e+00> : vector<256x128xf32>
    %70 = tpu.matmul %67, %69, %cst_78 {dimension_numbers = #tpu.dot_dimension_numbers<[1], [0], [0], [1], [0, 0, 1, 1], [], []>} : vector<256x128xf32>, vector<128x128xf32>, vector<256x128xf32> -> vector<256x128xf32>
    %71 = arith.addf %65, %70 : vector<256x128xf32>
    %c0_79 = arith.constant 0 : index
    %c0_80 = arith.constant 0 : index
    %72 = vector.load %arg5[%c0_79, %c0_80] : memref<1x128xf32, #tpu.memory_space<vmem>>, vector<1x128xf32>
    %73 = vector.broadcast %72 : vector<1x128xf32> to vector<256x128xf32>
    %74 = arith.addf %71, %73 : vector<256x128xf32>
    %cst_81 = arith.constant 0.000000e+00 : f32
    %75 = vector.broadcast %cst_81 : f32 to vector<256x128xf32>
    %76 = arith.maximumf %74, %75 : vector<256x128xf32>
    %77 = tpu.transpose %76, [1, 0] : vector<256x128xf32> -> vector<128x256xf32>
    %78 = vector.extract_strided_slice %77 {offsets = [0, 0], sizes = [8, 256], strides = [1, 1]} : vector<128x256xf32> to vector<8x256xf32>
    %79 = vector.shape_cast %78 : vector<8x256xf32> to vector<1x8x256xf32>
    %c0_82 = arith.constant 0 : index
    %c0_83 = arith.constant 0 : index
    %c0_84 = arith.constant 0 : index
    %80 = vector.load %arg6[%c0_82, %c0_83, %c0_84] : memref<1x8x256xf32, #tpu.memory_space<vmem>>, vector<1x8x256xf32>
    tpu.vector_store %arg6[%c0_82, %c0_83, %c0_84], %79 {strides = array<i32>} : memref<1x8x256xf32, #tpu.memory_space<vmem>>, vector<1x8x256xf32>,
    return
  }
  func.func @transform_0(%arg0: i32) -> (i32, i32, i32) {
    %c0_i32 = arith.constant 0 : i32
    %c0_i32_0 = arith.constant 0 : i32
    %c0_i32_1 = arith.constant 0 : i32
    return %arg0, %c0_i32, %c0_i32_0 : i32, i32, i32
  }
  func.func @transform_1(%arg0: i32) -> (i32, i32) {
    %c0_i32 = arith.constant 0 : i32
    %c0_i32_0 = arith.constant 0 : i32
    %c0_i32_1 = arith.constant 0 : i32
    return %c0_i32, %c0_i32_0 : i32, i32
  }
  func.func @transform_2(%arg0: i32) -> (i32, i32) {
    %c0_i32 = arith.constant 0 : i32
    %c0_i32_0 = arith.constant 0 : i32
    %c0_i32_1 = arith.constant 0 : i32
    return %c0_i32, %c0_i32_0 : i32, i32
  }
  func.func @transform_3(%arg0: i32) -> (i32, i32, i32) {
    %c0_i32 = arith.constant 0 : i32
    %c0_i32_0 = arith.constant 0 : i32
    %c0_i32_1 = arith.constant 0 : i32
    %c0_i32_2 = arith.constant 0 : i32
    return %c0_i32, %c0_i32_0, %c0_i32_1 : i32, i32, i32
  }
  func.func @transform_4(%arg0: i32) -> (i32, i32) {
    %c0_i32 = arith.constant 0 : i32
    %c0_i32_0 = arith.constant 0 : i32
    %c0_i32_1 = arith.constant 0 : i32
    return %c0_i32, %c0_i32_0 : i32, i32
  }
  func.func @transform_5(%arg0: i32) -> (i32, i32, i32) {
    %c0_i32 = arith.constant 0 : i32
    %c0_i32_0 = arith.constant 0 : i32
    %c0_i32_1 = arith.constant 0 : i32
    return %arg0, %c0_i32, %c0_i32_0 : i32, i32, i32
  }
}

</mosaic_0001>

<llo_original>
// kernel: tpu_custom_call.1
$region0: #{tpu_custom_call.1}
  #allocation0 [shape = 'u32[]', space=smem, size = 0x4, offset = 0x4, fixed_abs, tag = 'smem constant byte address 0x4 - core index']
  #allocation1 [shape = 'u32[144,128]{1,0:T(1,128)}', space=vmem, size = 0x12000, scoped, tag = 'internal scratch']
  #allocation2 [shape = 'f32[18,18,128]{2,1,0:T(8,128)}', space=vmem, size = 0x36000, scoped, tag = 'scratch operand']
  %s0 = inlined_call_operand.vmem [shape: f32[2,256,48], index: 0, kind: input, shape index: {}]
  %s1 = inlined_call_operand.vmem [shape: f32[48,128], index: 1, kind: input, shape index: {}]
  %s2 = inlined_call_operand.vmem [shape: f32[1,128], index: 2, kind: input, shape index: {}]
  %s3 = inlined_call_operand.hbm [shape: f32[9,128,128], index: 3, kind: input, shape index: {}]
  %s4 = inlined_call_operand.vmem [shape: f32[1,128], index: 4, kind: input, shape index: {}]
  %s5 = inlined_call_operand.hbm [shape: f32[2,8,256], index: 5, kind: output, shape index: {}]
  %s6 = sld [smem:[#allocation0]]
  $region57: #{tpu_custom_call.1} parent=0
    _
  %s8 = ssub.s32 1, %s6
  %s9 = scalar_select 0, %s8, %s6
  $region1: #{tpu_custom_call.1} parent=0
    #allocation3 [shape = 'u8[589824]{0}', space=vmem, size = 0x90000, scoped, tag = 'input window, operand 3, single buffered']
    #allocation4 [shape = 's32[2]{0}', space=sflag, size = 0x8, scoped, tag = 'scoped memory for tpu_custom_call.1']
    #allocation5 [shape = 's32[2]{0}', space=sflag, size = 0x8, scoped, tag = 'scoped memory for tpu_custom_call.1']
    #allocation6 [shape = 'u8[16384]{0}', space=vmem, size = 0x4000, scoped, tag = 'output window, operand 0']
    %10 = vsyncpa [#allocation4], 0
    %11 = vsyncpa [#allocation5], 0
    %s12 = scalar_lea.sflag [#allocation5], 1
    %13 = vsyncpa %s12, 0
    loop: start=0, step=1, limit=4
    $region2: #{tpu_custom_call.1} parent=1 // loop_pre_header
      _
    $region3: #{tpu_custom_call.1} parent=1 // loop_header
      %s15 = sphi 0, %s19
      %p16 = scmp.ge.s32.totalorder %s15, 4
      %s25 = sphi 0, %s27
      %s28 = sphi 0, %s25
      %s29 = sphi 0, %s28
      %s45 = sphi 0, %s29
      %s49 = sphi 0, %s49
      %s51 = sphi 0, %s49
      %s52 = sphi 0, %s51
      %s66 = sphi 0, %s52
      %s70 = sphi 0, %s70
      %s72 = sphi 0, %s70
      %s73 = sphi 0, %s72
      %s87 = sphi 0, %s73
      %s91 = sphi 0, %s91
      %s93 = sphi 0, %s91
      %s94 = sphi 0, %s93
      %s108 = sphi 0, %s94
      %s112 = sphi 0, %s112
      %s114 = sphi 0, %s112
      %s115 = sphi 0, %s114
      %s129 = sphi 0, %s115
      %s135 = sphi 0, %s137
      %s138 = sphi 0, %s135
      %s139 = sphi 0, %s138
      %s155 = sphi 0, %s139
    $region4: #{tpu_custom_call.1} parent=1 // loop_header_branch
      %18 = sbr.rel (%p16) target = $region8
    $region5: #{tpu_custom_call.1} parent=1 // loop_body
      %s20 = ssub.s32 %s15, 1
      %s21 = ssub.s32 %s15, 2
      %s22 = sadd.s32 %s15, 1
      %s23 = ssub.s32 %s15, %s22
      %p24 = scmp.eq.s32.totalorder %s23, 0
      %s26 = sadd.s32 %s25, 1
      %s27 = scalar_select %p24, %s25, %s26
      %p30 = pneg %p24
      %p31 = scmp.eq.s32.totalorder %s15, 1
      %p32 = por %p30, %p31
      %p33 = scmp.ne.s32.totalorder %s25, %s28
      %p34 = scmp.eq.s32.totalorder %s15, 0
      %p35 = por %p33, %p34
      %p36 = scmp.ne.s32.totalorder %s25, %s28
      %p37 = scmp.eq.s32.totalorder %s20, 1
      %p38 = por %p36, %p37
      %p39 = scmp.ne.s32.totalorder %s28, %s29
      %p40 = scmp.eq.s32.totalorder %s20, 0
      %p41 = por %p39, %p40
      %p42 = scmp.ne.s32.totalorder %s28, %s29
      %p43 = scmp.eq.s32.totalorder %s21, 1
      %p44 = por %p42, %p43
      %p46 = scmp.ne.s32.totalorder %s29, %s45
      %p47 = scmp.eq.s32.totalorder %s21, 0
      %p48 = por %p46, %p47
      %s50 = sadd.s32 %s49, 1
      %p53 = scmp.eq.s32.totalorder %s15, 1
      %p54 = scmp.ne.s32.totalorder %s49, %s51
      %p55 = scmp.eq.s32.totalorder %s15, 0
      %p56 = por %p54, %p55
      %p57 = scmp.ne.s32.totalorder %s49, %s51
      %p58 = scmp.eq.s32.totalorder %s20, 1
      %p59 = por %p57, %p58
      %p60 = scmp.ne.s32.totalorder %s51, %s52
      %p61 = scmp.eq.s32.totalorder %s20, 0
      %p62 = por %p60, %p61
      %p63 = scmp.ne.s32.totalorder %s51, %s52
      %p64 = scmp.eq.s32.totalorder %s21, 1
      %p65 = por %p63, %p64
      %p67 = scmp.ne.s32.totalorder %s52, %s66
      %p68 = scmp.eq.s32.totalorder %s21, 0
      %p69 = por %p67, %p68
      %s71 = sadd.s32 %s70, 1
      %p74 = scmp.eq.s32.totalorder %s15, 1
      %p75 = scmp.ne.s32.totalorder %s70, %s72
      %p76 = scmp.eq.s32.totalorder %s15, 0
      %p77 = por %p75, %p76
      %p78 = scmp.ne.s32.totalorder %s70, %s72
      %p79 = scmp.eq.s32.totalorder %s20, 1
      %p80 = por %p78, %p79
      %p81 = scmp.ne.s32.totalorder %s72, %s73
      %p82 = scmp.eq.s32.totalorder %s20, 0
      %p83 = por %p81, %p82
      %p84 = scmp.ne.s32.totalorder %s72, %s73
      %p85 = scmp.eq.s32.totalorder %s21, 1
      %p86 = por %p84, %p85
      %p88 = scmp.ne.s32.totalorder %s73, %s87
      %p89 = scmp.eq.s32.totalorder %s21, 0
      %p90 = por %p88, %p89
      %s92 = sadd.s32 %s91, 1
      %p95 = scmp.eq.s32.totalorder %s15, 1
      %p96 = scmp.ne.s32.totalorder %s91, %s93
      %p97 = scmp.eq.s32.totalorder %s15, 0
      %p98 = por %p96, %p97
      %p99 = scmp.ne.s32.totalorder %s91, %s93
      %p100 = scmp.eq.s32.totalorder %s20, 1
      %p101 = por %p99, %p100
      %p102 = scmp.ne.s32.totalorder %s93, %s94
      %p103 = scmp.eq.s32.totalorder %s20, 0
      %p104 = por %p102, %p103
      %p105 = scmp.ne.s32.totalorder %s93, %s94
      %p106 = scmp.eq.s32.totalorder %s21, 1
      %p107 = por %p105, %p106
      %p109 = scmp.ne.s32.totalorder %s94, %s108
      %p110 = scmp.eq.s32.totalorder %s21, 0
      %p111 = por %p109, %p110
      %s113 = sadd.s32 %s112, 1
      %p116 = scmp.eq.s32.totalorder %s15, 1
      %p117 = scmp.ne.s32.totalorder %s112, %s114
      %p118 = scmp.eq.s32.totalorder %s15, 0
      %p119 = por %p117, %p118
      %p120 = scmp.ne.s32.totalorder %s112, %s114
      %p121 = scmp.eq.s32.totalorder %s20, 1
      %p122 = por %p120, %p121
      %p123 = scmp.ne.s32.totalorder %s114, %s115
      %p124 = scmp.eq.s32.totalorder %s20, 0
      %p125 = por %p123, %p124
      %p126 = scmp.ne.s32.totalorder %s114, %s115
      %p127 = scmp.eq.s32.totalorder %s21, 1
      %p128 = por %p126, %p127
      %p130 = scmp.ne.s32.totalorder %s115, %s129
      %p131 = scmp.eq.s32.totalorder %s21, 0
      %p132 = por %p130, %p131
      %s133 = ssub.s32 %s15, %s22
      %p134 = scmp.eq.s32.totalorder %s133, 0
      %s136 = sadd.s32 %s135, 1
      %s137 = scalar_select %p134, %s135, %s136
      %p140 = pneg %p134
      %p141 = scmp.eq.s32.totalorder %s15, 1
      %p142 = por %p140, %p141
      %p143 = scmp.ne.s32.totalorder %s135, %s138
      %p144 = scmp.eq.s32.totalorder %s15, 0
      %p145 = por %p143, %p144
      %p146 = scmp.ne.s32.totalorder %s135, %s138
      %p147 = scmp.eq.s32.totalorder %s20, 1
      %p148 = por %p146, %p147
      %p149 = scmp.ne.s32.totalorder %s138, %s139
      %p150 = scmp.eq.s32.totalorder %s20, 0
      %p151 = por %p149, %p150
      %p152 = scmp.ne.s32.totalorder %s138, %s139
      %p153 = scmp.eq.s32.totalorder %s21, 1
      %p154 = por %p152, %p153
      %p156 = scmp.ne.s32.totalorder %s139, %s155
      %p157 = scmp.eq.s32.totalorder %s21, 0
      %p158 = por %p156, %p157
      %p159 = scmp.le.s32.totalorder 1, %s15
      %p160 = scmp.lt.s32.totalorder %s15, 3
      %p161 = pnand %p159, %p160
      %p162 = pneg %p161
      // Predicated region
      $region9: #{tpu_custom_call.1} parent=5 // pred_check
        _
      $region10: #{tpu_custom_call.1} parent=5 // pred_check_branch
        %164 = sbr.rel (%p161) target = $region12
      $region11: #{tpu_custom_call.1} parent=5 // pred_region
        %s165 = ssub.s32 %s15, 1
        // Predicated region
        $region13: #{tpu_custom_call.1} parent=11 // pred_check
          %p166 = pneg %p62
        $region14: #{tpu_custom_call.1} parent=11 // pred_check_branch
          %168 = sbr.rel (%p166) target = $region16
        $region15: #{tpu_custom_call.1} parent=11 // pred_region
          _
        $region16: #{tpu_custom_call.1} parent=11 // pred_fallthru
          _
        // Predicated region
        $region17: #{tpu_custom_call.1} parent=11 // pred_check
          %p169 = pneg %p83
        $region18: #{tpu_custom_call.1} parent=11 // pred_check_branch
          %171 = sbr.rel (%p169) target = $region20
        $region19: #{tpu_custom_call.1} parent=11 // pred_region
          _
        $region20: #{tpu_custom_call.1} parent=11 // pred_fallthru
          _
        // Predicated region
        $region21: #{tpu_custom_call.1} parent=11 // pred_check
          %p172 = pneg %p104
        $region22: #{tpu_custom_call.1} parent=11 // pred_check_branch
          %174 = sbr.rel (%p172) target = $region24
        $region23: #{tpu_custom_call.1} parent=11 // pred_region
          %s176 = ssub.s32 18432, 18432
          %177 = vsyncadd [#allocation4], %s176
          %s178 = sshll.u32 [#allocation3], 4
          %s179 = int_to_ptr.vmem [resolvable:$true] %s178
          %184 = dma.hbm_to_vmem [thread:$0]  %s3, 18432, %s179, [#allocation4], 128, 128, 8
        $region24: #{tpu_custom_call.1} parent=11 // pred_fallthru
          _
        // Predicated region
        $region25: #{tpu_custom_call.1} parent=11 // pred_check
          %p185 = pneg %p125
        $region26: #{tpu_custom_call.1} parent=11 // pred_check_branch
          %187 = sbr.rel (%p185) target = $region28
        $region27: #{tpu_custom_call.1} parent=11 // pred_region
          _
        $region28: #{tpu_custom_call.1} parent=11 // pred_fallthru
          _
      $region12: #{tpu_custom_call.1} parent=5 // pred_fallthru
        _
      %p188 = scmp.lt.s32.totalorder %s15, 2
      // Predicated region
      $region29: #{tpu_custom_call.1} parent=5 // pred_check
        %p189 = pneg %p188
      $region30: #{tpu_custom_call.1} parent=5 // pred_check_branch
        %191 = sbr.rel (%p189) target = $region32
      $region31: #{tpu_custom_call.1} parent=5 // pred_region
        // Predicated region
        $region33: #{tpu_custom_call.1} parent=31 // pred_check
          %p192 = pneg %p35
        $region34: #{tpu_custom_call.1} parent=31 // pred_check_branch
          %194 = sbr.rel (%p192) target = $region36
        $region35: #{tpu_custom_call.1} parent=31 // pred_region
          %p195 = scmp.lt.s32.totalorder %s15, 1
          %s196 = scalar_select %p195, %s15, 1
          %s197 = smul.addr %s196, 32
          %s198 = smul.addr %s197, 8
          %s199 = scalar_lea.vmem %s0, %s198
        $region36: #{tpu_custom_call.1} parent=31 // pred_fallthru
          _
      $region32: #{tpu_custom_call.1} parent=5 // pred_fallthru
        _
      %p200 = scmp.le.s32.totalorder 1, %s15
      %p201 = scmp.lt.s32.totalorder %s15, 3
      %p202 = pnand %p200, %p201
      %p203 = pneg %p202
      // Predicated region
      $region37: #{tpu_custom_call.1} parent=5 // pred_check
        _
      $region38: #{tpu_custom_call.1} parent=5 // pred_check_branch
        %205 = sbr.rel (%p202) target = $region40
      $region39: #{tpu_custom_call.1} parent=5 // pred_region
        %s206 = ssub.s32 %s15, 1
        // Predicated region
        $region41: #{tpu_custom_call.1} parent=39 // pred_check
          %p207 = pneg %p104
        $region42: #{tpu_custom_call.1} parent=39 // pred_check_branch
          %209 = sbr.rel (%p207) target = $region44
        $region43: #{tpu_custom_call.1} parent=39 // pred_region
          %210 = dma.done [#allocation4], 18432
        $region44: #{tpu_custom_call.1} parent=39 // pred_fallthru
          _
        %p211 = scmp.lt.s32.totalorder %s20, 1
        %s212 = scalar_select %p211, %s20, 1
        %s213 = smul.addr %s212, 32
        %s214 = smul.addr %s213, 8
        %s215 = scalar_lea.vmem %s0, %s214
        %p216 = pneg %p41
        %p217 = pneg %p38
        %p218 = pneg %p62
        %p219 = pneg %p59
        %p220 = pneg %p83
        %p221 = pneg %p80
        %p222 = pneg %p104
        %p223 = pneg %p101
        %p224 = pneg %p125
        %p225 = pneg %p122
        %p226 = pneg %p151
        %p227 = pneg %p148
        %s228 = sand.u32 %s138, 1
        %s229 = scalar_lea.sflag [#allocation5], %s228
        %s230 = sand.u32 %s138, 1
        %s231 = smul.addr %s230, 16
        %s232 = scalar_lea.vmem [#allocation6], %s231
        %p233 = scmp.lt.s32.totalorder %s20, 1
        %s234 = scalar_select %p233, %s20, 1
        %s235 = smul.addr %s234, 32
        %s236 = smul.addr %s235, 8
        %s237 = scalar_lea.vmem %s0, %s236
        %v238 = vld [vmem:[%s237] sm:$0xff]
        %v239 = vld [vmem:[%s237 + $0x8] sm:$0xff]
        %v240 = vld [vmem:[%s237 + $0x10] sm:$0xff]
        %v241 = vld [vmem:[%s237 + $0x18] sm:$0xff]
        %v242 = vld [vmem:[%s237 + $0x20] sm:$0xff]
        %v243 = vld [vmem:[%s237 + $0x28] sm:$0xff]
        %v244 = vld [vmem:[%s237 + $0x30] sm:$0xff]
        %v245 = vld [vmem:[%s237 + $0x38] sm:$0xff]
        %v246 = vld [vmem:[%s237 + $0x40] sm:$0xff]
        %v247 = vld [vmem:[%s237 + $0x48] sm:$0xff]
        %v248 = vld [vmem:[%s237 + $0x50] sm:$0xff]
        %v249 = vld [vmem:[%s237 + $0x58] sm:$0xff]
        %v250 = vld [vmem:[%s237 + $0x60] sm:$0xff]
        %v251 = vld [vmem:[%s237 + $0x68] sm:$0xff]
        %v252 = vld [vmem:[%s237 + $0x70] sm:$0xff]
        %v253 = vld [vmem:[%s237 + $0x78] sm:$0xff]
        %v254 = vld [vmem:[%s237 + $0x80] sm:$0xff]
        %v255 = vld [vmem:[%s237 + $0x88] sm:$0xff]
        %v256 = vld [vmem:[%s237 + $0x90] sm:$0xff]
        %v257 = vld [vmem:[%s237 + $0x98] sm:$0xff]
        %v258 = vld [vmem:[%s237 + $0xa0] sm:$0xff]
        %v259 = vld [vmem:[%s237 + $0xa8] sm:$0xff]
        %v260 = vld [vmem:[%s237 + $0xb0] sm:$0xff]
        %v261 = vld [vmem:[%s237 + $0xb8] sm:$0xff]
        %v262 = vld [vmem:[%s237 + $0xc0] sm:$0xff]
        %v263 = vld [vmem:[%s237 + $0xc8] sm:$0xff]
        %v264 = vld [vmem:[%s237 + $0xd0] sm:$0xff]
        %v265 = vld [vmem:[%s237 + $0xd8] sm:$0xff]
        %v266 = vld [vmem:[%s237 + $0xe0] sm:$0xff]
        %v267 = vld [vmem:[%s237 + $0xe8] sm:$0xff]
        %v268 = vld [vmem:[%s237 + $0xf0] sm:$0xff]
        %v269 = vld [vmem:[%s237 + $0xf8] sm:$0xff]
        %v270 = vld [vmem:[%s1] sm:$0xff]
        %v271 = vld [vmem:[%s1 + $0x8] sm:$0xff]
        %v272 = vld [vmem:[%s1 + $0x10] sm:$0xff]
        %v273 = vld [vmem:[%s1 + $0x18] sm:$0xff]
        %v274 = vld [vmem:[%s1 + $0x20] sm:$0xff]
        %v275 = vld [vmem:[%s1 + $0x28] sm:$0xff]
        %v276 = vld [vmem:[%s2] sm:$0x1]
        %v278 = vlaneseq
        %v279 = vshrl.u32 %v278, 7
        %v280 = vsub.s32 0, %v279
        %v281 = vrot.slane %v276, %v280
        %vm283 = vcmask 392192
        %v285 = vsel %vm283, %v238, 0
        %v288 = vsel %vm283, %v239, 0
        %v291 = vsel %vm283, %v240, 0
        %v294 = vsel %vm283, %v241, 0
        %v297 = vsel %vm283, %v242, 0
        %v300 = vsel %vm283, %v243, 0
        %v303 = vsel %vm283, %v244, 0
        %v306 = vsel %vm283, %v245, 0
        %v309 = vsel %vm283, %v246, 0
        %v312 = vsel %vm283, %v247, 0
        %v315 = vsel %vm283, %v248, 0
        %v318 = vsel %vm283, %v249, 0
        %v321 = vsel %vm283, %v250, 0
        %v324 = vsel %vm283, %v251, 0
        %v327 = vsel %vm283, %v252, 0
        %v330 = vsel %vm283, %v253, 0
        %v333 = vsel %vm283, %v254, 0
        %v336 = vsel %vm283, %v255, 0
        %v339 = vsel %vm283, %v256, 0
        %v342 = vsel %vm283, %v257, 0
        %v345 = vsel %vm283, %v258, 0
        %v348 = vsel %vm283, %v259, 0
        %v351 = vsel %vm283, %v260, 0
        %v354 = vsel %vm283, %v261, 0
        %v357 = vsel %vm283, %v262, 0
        %v360 = vsel %vm283, %v263, 0
        %v363 = vsel %vm283, %v264, 0
        %v366 = vsel %vm283, %v265, 0
        %v369 = vsel %vm283, %v266, 0
        %v372 = vsel %vm283, %v267, 0
        %v375 = vsel %vm283, %v268, 0
        %v378 = vsel %vm283, %v269, 0
        %380 = vmatprep.subr.mxu0 0.0
        %381 = vmatpush1.msra.mxu0 0.0
        %382 = vmatprep.subr.mxu0 0.0
        %383 = vmatpush1.msra.mxu0 0.0
        %384 = vmatprep.subr.mxu0 0.0
        %385 = vmatpush1.msra.mxu0 0.0
        %386 = vmatprep.subr.mxu0 0.0
        %387 = vmatpush1.msra.mxu0 0.0
        %388 = vmatprep.subr.mxu0 0.0
        %389 = vmatpush1.msra.mxu0 0.0
        %390 = vmatprep.subr.mxu0 0.0
        %391 = vmatpush1.msra.mxu0 0.0
        %392 = vmatprep.subr.mxu0 0.0
        %393 = vmatpush1.msra.mxu0 0.0
        %394 = vmatprep.subr.mxu0 0.0
        %395 = vmatpush1.msra.mxu0 0.0
        %396 = vmatprep.subr.mxu0 0.0
        %397 = vmatpush1.msra.mxu0 0.0
        %398 = vmatprep.subr.mxu0 0.0
        %399 = vmatpush1.msra.mxu0 0.0
        %400 = vmatprep.subr.mxu0 0.0
        %401 = vmatpush1.msra.mxu0 %v275
        %402 = vmatprep.subr.mxu0 0.0
        %403 = vmatpush1.msra.mxu0 %v274
        %404 = vmatprep.subr.mxu0 0.0
        %405 = vmatpush1.msra.mxu0 %v273
        %406 = vmatprep.subr.mxu0 0.0
        %407 = vmatpush1.msra.mxu0 %v272
        %408 = vmatprep.subr.mxu0 0.0
        %409 = vmatpush1.msra.mxu0 %v271
        %410 = vmatprep.subr.mxu0 0.0
        %411 = vmatpush1.msra.mxu0 %v270
        %412 = vmatprep.subr.mxu0 0.0
        %413 = vmatpush2.msra.mxu0 0.0
        %414 = vmatprep.subr.mxu0 0.0
        %415 = vmatpush2.msra.mxu0 0.0
        %416 = vmatprep.subr.mxu0 0.0
        %417 = vmatpush2.msra.mxu0 0.0
        %418 = vmatprep.subr.mxu0 0.0
        %419 = vmatpush2.msra.mxu0 0.0
        %420 = vmatprep.subr.mxu0 0.0
        %421 = vmatpush2.msra.mxu0 0.0
        %422 = vmatprep.subr.mxu0 0.0
        %423 = vmatpush2.msra.mxu0 0.0
        %424 = vmatprep.subr.mxu0 0.0
        %425 = vmatpush2.msra.mxu0 0.0
        %426 = vmatprep.subr.mxu0 0.0
        %427 = vmatpush2.msra.mxu0 0.0
        %428 = vmatprep.subr.mxu0 0.0
        %429 = vmatpush2.msra.mxu0 0.0
        %430 = vmatprep.subr.mxu0 0.0
        %431 = vmatpush2.msra.mxu0 0.0
        %432 = vmatprep.subr.mxu0 0.0
        %433 = vmatpush2.msra.mxu0 0.0
        %434 = vmatprep.subr.mxu0 0.0
        %435 = vmatpush2.msra.mxu0 0.0
        %436 = vmatprep.subr.mxu0 0.0
        %437 = vmatpush2.msra.mxu0 0.0
        %438 = vmatprep.subr.mxu0 0.0
        %439 = vmatpush2.msra.mxu0 0.0
        %440 = vmatprep.subr.mxu0 0.0
        %441 = vmatpush2.msra.mxu0 0.0
        %442 = vmatprep.subr.mxu0 0.0
        %443 = vmatpush2.msra.mxu0 0.0
        %444 = vmatprep.mubr.f32.mxu0 0.0
        %445 = vmatmul.mubr.f32.gmra.mxu0 %v285
        %v446 = vpop.f32.mrf.mxu0
        %v447 = vadd.f32 %v281, %v446
        %v448 = vpop.f32.mrf.mxu0
        %449 = vmatprep.mubr.f32.mxu0 0.0
        %450 = vmatmul.mubr.f32.gmra.mxu0 %v288
        %v451 = vpop.f32.mrf.mxu0
        %v452 = vadd.f32 %v281, %v451
        %v453 = vpop.f32.mrf.mxu0
        %454 = vmatprep.mubr.f32.mxu0 0.0
        %455 = vmatmul.mubr.f32.gmra.mxu0 %v291
        %v456 = vpop.f32.mrf.mxu0
        %v457 = vadd.f32 %v281, %v456
        %v458 = vpop.f32.mrf.mxu0
        %459 = vmatprep.mubr.f32.mxu0 0.0
        %460 = vmatmul.mubr.f32.gmra.mxu0 %v294
        %v461 = vpop.f32.mrf.mxu0
        %v462 = vadd.f32 %v281, %v461
        %v463 = vpop.f32.mrf.mxu0
        %464 = vmatprep.mubr.f32.mxu0 0.0
        %465 = vmatmul.mubr.f32.gmra.mxu0 %v297
        %v466 = vpop.f32.mrf.mxu0
        %v467 = vadd.f32 %v281, %v466
        %v468 = vpop.f32.mrf.mxu0
        %469 = vmatprep.mubr.f32.mxu0 0.0
        %470 = vmatmul.mubr.f32.gmra.mxu0 %v300
        %v471 = vpop.f32.mrf.mxu0
        %v472 = vadd.f32 %v281, %v471
        %v473 = vpop.f32.mrf.mxu0
        %474 = vmatprep.mubr.f32.mxu0 0.0
        %475 = vmatmul.mubr.f32.gmra.mxu0 %v303
        %v476 = vpop.f32.mrf.mxu0
        %v477 = vadd.f32 %v281, %v476
        %v478 = vpop.f32.mrf.mxu0
        %479 = vmatprep.mubr.f32.mxu0 0.0
        %480 = vmatmul.mubr.f32.gmra.mxu0 %v306
        %v481 = vpop.f32.mrf.mxu0
        %v482 = vadd.f32 %v281, %v481
        %v483 = vpop.f32.mrf.mxu0
        %484 = vmatprep.mubr.f32.mxu0 0.0
        %485 = vmatmul.mubr.f32.gmra.mxu0 %v309
        %v486 = vpop.f32.mrf.mxu0
        %v487 = vadd.f32 %v281, %v486
        %v488 = vpop.f32.mrf.mxu0
        %489 = vmatprep.mubr.f32.mxu0 0.0
        %490 = vmatmul.mubr.f32.gmra.mxu0 %v312
        %v491 = vpop.f32.mrf.mxu0
        %v492 = vadd.f32 %v281, %v491
        %v493 = vpop.f32.mrf.mxu0
        %494 = vmatprep.mubr.f32.mxu0 0.0
        %495 = vmatmul.mubr.f32.gmra.mxu0 %v315
        %v496 = vpop.f32.mrf.mxu0
        %v497 = vadd.f32 %v281, %v496
        %v498 = vpop.f32.mrf.mxu0
        %499 = vmatprep.mubr.f32.mxu0 0.0
        %500 = vmatmul.mubr.f32.gmra.mxu0 %v318
        %v501 = vpop.f32.mrf.mxu0
        %v502 = vadd.f32 %v281, %v501
        %v503 = vpop.f32.mrf.mxu0
        %504 = vmatprep.mubr.f32.mxu0 0.0
        %505 = vmatmul.mubr.f32.gmra.mxu0 %v321
        %v506 = vpop.f32.mrf.mxu0
        %v507 = vadd.f32 %v281, %v506
        %v508 = vpop.f32.mrf.mxu0
        %509 = vmatprep.mubr.f32.mxu0 0.0
        %510 = vmatmul.mubr.f32.gmra.mxu0 %v324
        %v511 = vpop.f32.mrf.mxu0
        %v512 = vadd.f32 %v281, %v511
        %v513 = vpop.f32.mrf.mxu0
        %514 = vmatprep.mubr.f32.mxu0 0.0
        %515 = vmatmul.mubr.f32.gmra.mxu0 %v327
        %v516 = vpop.f32.mrf.mxu0
        %v517 = vadd.f32 %v281, %v516
        %v518 = vpop.f32.mrf.mxu0
        %519 = vmatprep.mubr.f32.mxu0 0.0
        %520 = vmatmul.mubr.f32.gmra.mxu0 %v330
        %v521 = vpop.f32.mrf.mxu0
        %v522 = vadd.f32 %v281, %v521
        %v523 = vpop.f32.mrf.mxu0
        %524 = vmatprep.mubr.f32.mxu0 0.0
        %525 = vmatmul.mubr.f32.gmra.mxu0 %v333
        %v526 = vpop.f32.mrf.mxu0
        %v527 = vadd.f32 %v281, %v526
        %v528 = vpop.f32.mrf.mxu0
        %529 = vmatprep.mubr.f32.mxu0 0.0
        %530 = vmatmul.mubr.f32.gmra.mxu0 %v336
        %v531 = vpop.f32.mrf.mxu0
        %v532 = vadd.f32 %v281, %v531
        %v533 = vpop.f32.mrf.mxu0
        %534 = vmatprep.mubr.f32.mxu0 0.0
        %535 = vmatmul.mubr.f32.gmra.mxu0 %v339
        %v536 = vpop.f32.mrf.mxu0
        %v537 = vadd.f32 %v281, %v536
        %v538 = vpop.f32.mrf.mxu0
        %539 = vmatprep.mubr.f32.mxu0 0.0
        %540 = vmatmul.mubr.f32.gmra.mxu0 %v342
        %v541 = vpop.f32.mrf.mxu0
        %v542 = vadd.f32 %v281, %v541
        %v543 = vpop.f32.mrf.mxu0
        %544 = vmatprep.mubr.f32.mxu0 0.0
        %545 = vmatmul.mubr.f32.gmra.mxu0 %v345
        %v546 = vpop.f32.mrf.mxu0
        %v547 = vadd.f32 %v281, %v546
        %v548 = vpop.f32.mrf.mxu0
        %549 = vmatprep.mubr.f32.mxu0 0.0
        %550 = vmatmul.mubr.f32.gmra.mxu0 %v348
        %v551 = vpop.f32.mrf.mxu0
        %v552 = vadd.f32 %v281, %v551
        %v553 = vpop.f32.mrf.mxu0
        %554 = vmatprep.mubr.f32.mxu0 0.0
        %555 = vmatmul.mubr.f32.gmra.mxu0 %v351
        %v556 = vpop.f32.mrf.mxu0
        %v557 = vadd.f32 %v281, %v556
        %v558 = vpop.f32.mrf.mxu0
        %559 = vmatprep.mubr.f32.mxu0 0.0
        %560 = vmatmul.mubr.f32.gmra.mxu0 %v354
        %v561 = vpop.f32.mrf.mxu0
        %v562 = vadd.f32 %v281, %v561
        %v563 = vpop.f32.mrf.mxu0
        %564 = vmatprep.mubr.f32.mxu0 0.0
        %565 = vmatmul.mubr.f32.gmra.mxu0 %v357
        %v566 = vpop.f32.mrf.mxu0
        %v567 = vadd.f32 %v281, %v566
        %v568 = vpop.f32.mrf.mxu0
        %569 = vmatprep.mubr.f32.mxu0 0.0
        %570 = vmatmul.mubr.f32.gmra.mxu0 %v360
        %v571 = vpop.f32.mrf.mxu0
        %v572 = vadd.f32 %v281, %v571
        %v573 = vpop.f32.mrf.mxu0
        %574 = vmatprep.mubr.f32.mxu0 0.0
        %575 = vmatmul.mubr.f32.gmra.mxu0 %v363
        %v576 = vpop.f32.mrf.mxu0
        %v577 = vadd.f32 %v281, %v576
        %v578 = vpop.f32.mrf.mxu0
        %579 = vmatprep.mubr.f32.mxu0 0.0
        %580 = vmatmul.mubr.f32.gmra.mxu0 %v366
        %v581 = vpop.f32.mrf.mxu0
        %v582 = vadd.f32 %v281, %v581
        %v583 = vpop.f32.mrf.mxu0
        %584 = vmatprep.mubr.f32.mxu0 0.0
        %585 = vmatmul.mubr.f32.gmra.mxu0 %v369
        %v586 = vpop.f32.mrf.mxu0
        %v587 = vadd.f32 %v281, %v586
        %v588 = vpop.f32.mrf.mxu0
        %589 = vmatprep.mubr.f32.mxu0 0.0
        %590 = vmatmul.mubr.f32.gmra.mxu0 %v372
        %v591 = vpop.f32.mrf.mxu0
        %v592 = vadd.f32 %v281, %v591
        %v593 = vpop.f32.mrf.mxu0
        %594 = vmatprep.mubr.f32.mxu0 0.0
        %595 = vmatmul.mubr.f32.gmra.mxu0 %v375
        %v596 = vpop.f32.mrf.mxu0
        %v597 = vadd.f32 %v281, %v596
        %v598 = vpop.f32.mrf.mxu0
        %599 = vmatprep.mubr.f32.mxu0 0.0
        %600 = vmatmul.mubr.f32.gmra.mxu0 %v378
        %v601 = vpop.f32.mrf.mxu0
        %v602 = vadd.f32 %v281, %v601
        %v603 = vpop.f32.mrf.mxu0
        %604 = vdwg.mxu0
        %v605 = vmax.f32 %v447, 0.0
        %v606 = vmax.f32 %v452, 0.0
        %v607 = vmax.f32 %v457, 0.0
        %v608 = vmax.f32 %v462, 0.0
        %v609 = vmax.f32 %v467, 0.0
        %v610 = vmax.f32 %v472, 0.0
        %v611 = vmax.f32 %v477, 0.0
        %v612 = vmax.f32 %v482, 0.0
        %v613 = vmax.f32 %v487, 0.0
        %v614 = vmax.f32 %v492, 0.0
        %v615 = vmax.f32 %v497, 0.0
        %v616 = vmax.f32 %v502, 0.0
        %v617 = vmax.f32 %v507, 0.0
        %v618 = vmax.f32 %v512, 0.0
        %v619 = vmax.f32 %v517, 0.0
        %v620 = vmax.f32 %v522, 0.0
        %v621 = vmax.f32 %v527, 0.0
        %v622 = vmax.f32 %v532, 0.0
        %v623 = vmax.f32 %v537, 0.0
        %v624 = vmax.f32 %v542, 0.0
        %v625 = vmax.f32 %v547, 0.0
        %v626 = vmax.f32 %v552, 0.0
        %v627 = vmax.f32 %v557, 0.0
        %v628 = vmax.f32 %v562, 0.0
        %v629 = vmax.f32 %v567, 0.0
        %v630 = vmax.f32 %v572, 0.0
        %v631 = vmax.f32 %v577, 0.0
        %v632 = vmax.f32 %v582, 0.0
        %v633 = vmax.f32 %v587, 0.0
        %v634 = vmax.f32 %v592, 0.0
        %v635 = vmax.f32 %v597, 0.0
        %v636 = vmax.f32 %v602, 0.0
        %637 = vst [vmem:[#allocation2] sm:$0xff] 0.0
        %638 = vst [vmem:[#allocation2 + $0x8] sm:$0xff] 0.0
        %639 = vst [vmem:[#allocation2 + $0x10] sm:$0x3] 0.0
        %s640 = scalar_lea.vmem [#allocation2], 408
        %641 = vst [vmem:[%s640] sm:$0xff] 0.0
        %642 = vst [vmem:[%s640 + $0x8] sm:$0xff] 0.0
        %643 = vst [vmem:[%s640 + $0x10] sm:$0x3] 0.0
        %644 = vst [vmem:[#allocation2] sm:$0x1] 0.0
        %645 = vst [vmem:[#allocation2 + $0x18] sm:$0x1] 0.0
        %646 = vst [vmem:[#allocation2 + $0x30] sm:$0x1] 0.0
        %647 = vst [vmem:[#allocation2 + $0x48] sm:$0x1] 0.0
        %648 = vst [vmem:[#allocation2 + $0x60] sm:$0x1] 0.0
        %649 = vst [vmem:[#allocation2 + $0x78] sm:$0x1] 0.0
        %650 = vst [vmem:[#allocation2 + $0x90] sm:$0x1] 0.0
        %651 = vst [vmem:[#allocation2 + $0xa8] sm:$0x1] 0.0
        %652 = vst [vmem:[#allocation2 + $0xc0] sm:$0x1] 0.0
        %653 = vst [vmem:[#allocation2 + $0xd8] sm:$0x1] 0.0
        %654 = vst [vmem:[#allocation2 + $0xf0] sm:$0x1] 0.0
        %655 = vst [vmem:[#allocation2 + $0x108] sm:$0x1] 0.0
        %656 = vst [vmem:[#allocation2 + $0x120] sm:$0x1] 0.0
        %657 = vst [vmem:[#allocation2 + $0x138] sm:$0x1] 0.0
        %658 = vst [vmem:[#allocation2 + $0x150] sm:$0x1] 0.0
        %659 = vst [vmem:[#allocation2 + $0x168] sm:$0x1] 0.0
        %660 = vst [vmem:[#allocation2 + $0x180] sm:$0x1] 0.0
        %661 = vst [vmem:[#allocation2 + $0x198] sm:$0x1] 0.0
        %662 = vst [vmem:[#allocation2 + $0x11] sm:$0x1] 0.0
        %663 = vst [vmem:[#allocation2 + $0x29] sm:$0x1] 0.0
        %664 = vst [vmem:[#allocation2 + $0x41] sm:$0x1] 0.0
        %665 = vst [vmem:[#allocation2 + $0x59] sm:$0x1] 0.0
        %666 = vst [vmem:[#allocation2 + $0x71] sm:$0x1] 0.0
        %667 = vst [vmem:[#allocation2 + $0x89] sm:$0x1] 0.0
        %668 = vst [vmem:[#allocation2 + $0xa1] sm:$0x1] 0.0
        %669 = vst [vmem:[#allocation2 + $0xb9] sm:$0x1] 0.0
        %670 = vst [vmem:[#allocation2 + $0xd1] sm:$0x1] 0.0
        %671 = vst [vmem:[#allocation2 + $0xe9] sm:$0x1] 0.0
        %672 = vst [vmem:[#allocation2 + $0x101] sm:$0x1] 0.0
        %673 = vst [vmem:[#allocation2 + $0x119] sm:$0x1] 0.0
        %674 = vst [vmem:[#allocation2 + $0x131] sm:$0x1] 0.0
        %675 = vst [vmem:[#allocation2 + $0x149] sm:$0x1] 0.0
        %676 = vst [vmem:[#allocation2 + $0x161] sm:$0x1] 0.0
        %677 = vst [vmem:[#allocation2 + $0x179] sm:$0x1] 0.0
        %678 = vst [vmem:[#allocation2 + $0x191] sm:$0x1] 0.0
        %679 = vst [vmem:[#allocation2 + $0x1a9] sm:$0x1] 0.0
        %s680 = scalar_lea.vmem [#allocation2], 24
        %681 = vst [vmem:[%s680 + $0x1] sm:$0xff] %v605
        %682 = vst [vmem:[%s680 + $0x9] sm:$0xff] %v606
        %683 = vst [vmem:[%s680 + $0x19] sm:$0xff] %v607
        %684 = vst [vmem:[%s680 + $0x21] sm:$0xff] %v608
        %685 = vst [vmem:[%s680 + $0x31] sm:$0xff] %v609
        %686 = vst [vmem:[%s680 + $0x39] sm:$0xff] %v610
        %687 = vst [vmem:[%s680 + $0x49] sm:$0xff] %v611
        %688 = vst [vmem:[%s680 + $0x51] sm:$0xff] %v612
        %689 = vst [vmem:[%s680 + $0x61] sm:$0xff] %v613
        %690 = vst [vmem:[%s680 + $0x69] sm:$0xff] %v614
        %691 = vst [vmem:[%s680 + $0x79] sm:$0xff] %v615
        %692 = vst [vmem:[%s680 + $0x81] sm:$0xff] %v616
        %693 = vst [vmem:[%s680 + $0x91] sm:$0xff] %v617
        %694 = vst [vmem:[%s680 + $0x99] sm:$0xff] %v618
        %695 = vst [vmem:[%s680 + $0xa9] sm:$0xff] %v619
        %696 = vst [vmem:[%s680 + $0xb1] sm:$0xff] %v620
        %697 = vst [vmem:[%s680 + $0xc1] sm:$0xff] %v621
        %698 = vst [vmem:[%s680 + $0xc9] sm:$0xff] %v622
        %699 = vst [vmem:[%s680 + $0xd9] sm:$0xff] %v623
        %700 = vst [vmem:[%s680 + $0xe1] sm:$0xff] %v624
        %701 = vst [vmem:[%s680 + $0xf1] sm:$0xff] %v625
        %702 = vst [vmem:[%s680 + $0xf9] sm:$0xff] %v626
        %703 = vst [vmem:[%s680 + $0x109] sm:$0xff] %v627
        %704 = vst [vmem:[%s680 + $0x111] sm:$0xff] %v628
        %705 = vst [vmem:[%s680 + $0x121] sm:$0xff] %v629
        %706 = vst [vmem:[%s680 + $0x129] sm:$0xff] %v630
        %707 = vst [vmem:[%s680 + $0x139] sm:$0xff] %v631
        %708 = vst [vmem:[%s680 + $0x141] sm:$0xff] %v632
        %709 = vst [vmem:[%s680 + $0x151] sm:$0xff] %v633
        %710 = vst [vmem:[%s680 + $0x159] sm:$0xff] %v634
        %711 = vst [vmem:[%s680 + $0x169] sm:$0xff] %v635
        %712 = vst [vmem:[%s680 + $0x171] sm:$0xff] %v636
        %v713 = vld [vmem:[#allocation2] sm:$0xff]
        %v714 = vld [vmem:[#allocation2 + $0x8] sm:$0xff]
        %v715 = vld [vmem:[#allocation2 + $0x18] sm:$0xff]
        %v716 = vld [vmem:[#allocation2 + $0x20] sm:$0xff]
        %v717 = vld [vmem:[#allocation2 + $0x30] sm:$0xff]
        %v718 = vld [vmem:[#allocation2 + $0x38] sm:$0xff]
        %v719 = vld [vmem:[#allocation2 + $0x48] sm:$0xff]
        %v720 = vld [vmem:[#allocation2 + $0x50] sm:$0xff]
        %v721 = vld [vmem:[#allocation2 + $0x60] sm:$0xff]
        %v722 = vld [vmem:[#allocation2 + $0x68] sm:$0xff]
        %v723 = vld [vmem:[#allocation2 + $0x78] sm:$0xff]
        %v724 = vld [vmem:[#allocation2 + $0x80] sm:$0xff]
        %v725 = vld [vmem:[#allocation2 + $0x90] sm:$0xff]
        %v726 = vld [vmem:[#allocation2 + $0x98] sm:$0xff]
        %v727 = vld [vmem:[#allocation2 + $0xa8] sm:$0xff]
        %v728 = vld [vmem:[#allocation2 + $0xb0] sm:$0xff]
        %v729 = vld [vmem:[#allocation2 + $0xc0] sm:$0xff]
        %v730 = vld [vmem:[#allocation2 + $0xc8] sm:$0xff]
        %v731 = vld [vmem:[#allocation2 + $0xd8] sm:$0xff]
        %v732 = vld [vmem:[#allocation2 + $0xe0] sm:$0xff]
        %v733 = vld [vmem:[#allocation2 + $0xf0] sm:$0xff]
        %v734 = vld [vmem:[#allocation2 + $0xf8] sm:$0xff]
        %v735 = vld [vmem:[#allocation2 + $0x108] sm:$0xff]
        %v736 = vld [vmem:[#allocation2 + $0x110] sm:$0xff]
        %v737 = vld [vmem:[#allocation2 + $0x120] sm:$0xff]
        %v738 = vld [vmem:[#allocation2 + $0x128] sm:$0xff]
        %v739 = vld [vmem:[#allocation2 + $0x138] sm:$0xff]
        %v740 = vld [vmem:[#allocation2 + $0x140] sm:$0xff]
        %v741 = vld [vmem:[#allocation2 + $0x150] sm:$0xff]
        %v742 = vld [vmem:[#allocation2 + $0x158] sm:$0xff]
        %v743 = vld [vmem:[#allocation2 + $0x168] sm:$0xff]
        %v744 = vld [vmem:[#allocation2 + $0x170] sm:$0xff]
        %v745 = vld [vmem:[#allocation3] sm:$0xff]
        %v746 = vld [vmem:[#allocation3 + $0x8] sm:$0xff]
        %v747 = vld [vmem:[#allocation3 + $0x10] sm:$0xff]
        %v748 = vld [vmem:[#allocation3 + $0x18] sm:$0xff]
        %v749 = vld [vmem:[#allocation3 + $0x20] sm:$0xff]
        %v750 = vld [vmem:[#allocation3 + $0x28] sm:$0xff]
        %v751 = vld [vmem:[#allocation3 + $0x30] sm:$0xff]
        %v752 = vld [vmem:[#allocation3 + $0x38] sm:$0xff]
        %v753 = vld [vmem:[#allocation3 + $0x40] sm:$0xff]
        %v754 = vld [vmem:[#allocation3 + $0x48] sm:$0xff]
        %v755 = vld [vmem:[#allocation3 + $0x50] sm:$0xff]
        %v756 = vld [vmem:[#allocation3 + $0x58] sm:$0xff]
        %v757 = vld [vmem:[#allocation3 + $0x60] sm:$0xff]
        %v758 = vld [vmem:[#allocation3 + $0x68] sm:$0xff]
        %v759 = vld [vmem:[#allocation3 + $0x70] sm:$0xff]
        %v760 = vld [vmem:[#allocation3 + $0x78] sm:$0xff]
        %v761 = vld [vmem:[#allocation2 + $0x1] sm:$0xff]
        %v762 = vld [vmem:[#allocation2 + $0x9] sm:$0xff]
        %v763 = vld [vmem:[#allocation2 + $0x19] sm:$0xff]
        %v764 = vld [vmem:[#allocation2 + $0x21] sm:$0xff]
        %v765 = vld [vmem:[#allocation2 + $0x31] sm:$0xff]
        %v766 = vld [vmem:[#allocation2 + $0x39] sm:$0xff]
        %v767 = vld [vmem:[#allocation2 + $0x49] sm:$0xff]
        %v768 = vld [vmem:[#allocation2 + $0x51] sm:$0xff]
        %v769 = vld [vmem:[#allocation2 + $0x61] sm:$0xff]
        %v770 = vld [vmem:[#allocation2 + $0x69] sm:$0xff]
        %v771 = vld [vmem:[#allocation2 + $0x79] sm:$0xff]
        %v772 = vld [vmem:[#allocation2 + $0x81] sm:$0xff]
        %v773 = vld [vmem:[#allocation2 + $0x91] sm:$0xff]
        %v774 = vld [vmem:[#allocation2 + $0x99] sm:$0xff]
        %v775 = vld [vmem:[#allocation2 + $0xa9] sm:$0xff]
        %v776 = vld [vmem:[#allocation2 + $0xb1] sm:$0xff]
        %v777 = vld [vmem:[#allocation2 + $0xc1] sm:$0xff]
        %v778 = vld [vmem:[#allocation2 + $0xc9] sm:$0xff]
        %v779 = vld [vmem:[#allocation2 + $0xd9] sm:$0xff]
        %v780 = vld [vmem:[#allocation2 + $0xe1] sm:$0xff]
        %v781 = vld [vmem:[#allocation2 + $0xf1] sm:$0xff]
        %v782 = vld [vmem:[#allocation2 + $0xf9] sm:$0xff]
        %v783 = vld [vmem:[#allocation2 + $0x109] sm:$0xff]
        %v784 = vld [vmem:[#allocation2 + $0x111] sm:$0xff]
        %v785 = vld [vmem:[#allocation2 + $0x121] sm:$0xff]
        %v786 = vld [vmem:[#allocation2 + $0x129] sm:$0xff]
        %v787 = vld [vmem:[#allocation2 + $0x139] sm:$0xff]
        %v788 = vld [vmem:[#allocation2 + $0x141] sm:$0xff]
        %v789 = vld [vmem:[#allocation2 + $0x151] sm:$0xff]
        %v790 = vld [vmem:[#allocation2 + $0x159] sm:$0xff]
        %v791 = vld [vmem:[#allocation2 + $0x169] sm:$0xff]
        %v792 = vld [vmem:[#allocation2 + $0x171] sm:$0xff]
        %s793 = scalar_lea.vmem [#allocation3], 128
        %v794 = vld [vmem:[%s793] sm:$0xff]
        %v795 = vld [vmem:[%s793 + $0x8] sm:$0xff]
        %v796 = vld [vmem:[%s793 + $0x10] sm:$0xff]
        %v797 = vld [vmem:[%s793 + $0x18] sm:$0xff]
        %v798 = vld [vmem:[%s793 + $0x20] sm:$0xff]
        %v799 = vld [vmem:[%s793 + $0x28] sm:$0xff]
        %v800 = vld [vmem:[%s793 + $0x30] sm:$0xff]
        %v801 = vld [vmem:[%s793 + $0x38] sm:$0xff]
        %v802 = vld [vmem:[%s793 + $0x40] sm:$0xff]
        %v803 = vld [vmem:[%s793 + $0x48] sm:$0xff]
        %v804 = vld [vmem:[%s793 + $0x50] sm:$0xff]
        %v805 = vld [vmem:[%s793 + $0x58] sm:$0xff]
        %v806 = vld [vmem:[%s793 + $0x60] sm:$0xff]
        %v807 = vld [vmem:[%s793 + $0x68] sm:$0xff]
        %v808 = vld [vmem:[%s793 + $0x70] sm:$0xff]
        %v809 = vld [vmem:[%s793 + $0x78] sm:$0xff]
        %810 = vmatprep.subr.mxu0 0.0
        %811 = vmatpush1.msra.mxu0 %v809
        %812 = vmatprep.subr.mxu0 0.0
        %813 = vmatpush1.msra.mxu0 %v808
        %814 = vmatprep.subr.mxu0 0.0
        %815 = vmatpush1.msra.mxu0 %v807
        %816 = vmatprep.subr.mxu0 0.0
        %817 = vmatpush1.msra.mxu0 %v806
        %818 = vmatprep.subr.mxu0 0.0
        %819 = vmatpush1.msra.mxu0 %v805
        %820 = vmatprep.subr.mxu0 0.0
        %821 = vmatpush1.msra.mxu0 %v804
        %822 = vmatprep.subr.mxu0 0.0
        %823 = vmatpush1.msra.mxu0 %v803
        %824 = vmatprep.subr.mxu0 0.0
        %825 = vmatpush1.msra.mxu0 %v802
        %826 = vmatprep.subr.mxu0 0.0
        %827 = vmatpush1.msra.mxu0 %v801
        %828 = vmatprep.subr.mxu0 0.0
        %829 = vmatpush1.msra.mxu0 %v800
        %830 = vmatprep.subr.mxu0 0.0
        %831 = vmatpush1.msra.mxu0 %v799
        %832 = vmatprep.subr.mxu0 0.0
        %833 = vmatpush1.msra.mxu0 %v798
        %834 = vmatprep.subr.mxu0 0.0
        %835 = vmatpush1.msra.mxu0 %v797
        %836 = vmatprep.subr.mxu0 0.0
        %837 = vmatpush1.msra.mxu0 %v796
        %838 = vmatprep.subr.mxu0 0.0
        %839 = vmatpush1.msra.mxu0 %v795
        %840 = vmatprep.subr.mxu0 0.0
        %841 = vmatpush1.msra.mxu0 %v794
        %842 = vmatprep.subr.mxu0 0.0
        %843 = vmatpush2.msra.mxu0 0.0
        %844 = vmatprep.subr.mxu0 0.0
        %845 = vmatpush2.msra.mxu0 0.0
        %846 = vmatprep.subr.mxu0 0.0
        %847 = vmatpush2.msra.mxu0 0.0
        %848 = vmatprep.subr.mxu0 0.0
        %849 = vmatpush2.msra.mxu0 0.0
        %850 = vmatprep.subr.mxu0 0.0
        %851 = vmatpush2.msra.mxu0 0.0
        %852 = vmatprep.subr.mxu0 0.0
        %853 = vmatpush2.msra.mxu0 0.0
        %854 = vmatprep.subr.mxu0 0.0
        %855 = vmatpush2.msra.mxu0 0.0
        %856 = vmatprep.subr.mxu0 0.0
        %857 = vmatpush2.msra.mxu0 0.0
        %858 = vmatprep.subr.mxu0 0.0
        %859 = vmatpush2.msra.mxu0 0.0
        %860 = vmatprep.subr.mxu0 0.0
        %861 = vmatpush2.msra.mxu0 0.0
        %862 = vmatprep.subr.mxu0 0.0
        %863 = vmatpush2.msra.mxu0 0.0
        %864 = vmatprep.subr.mxu0 0.0
        %865 = vmatpush2.msra.mxu0 0.0
        %866 = vmatprep.subr.mxu0 0.0
        %867 = vmatpush2.msra.mxu0 0.0
        %868 = vmatprep.subr.mxu0 0.0
        %869 = vmatpush2.msra.mxu0 0.0
        %870 = vmatprep.subr.mxu0 0.0
        %871 = vmatpush2.msra.mxu0 0.0
        %872 = vmatprep.subr.mxu0 0.0
        %873 = vmatpush2.msra.mxu0 0.0
        %874 = vmatprep.mubr.f32.mxu0 0.0
        %875 = vmatmul.mubr.f32.gmra.mxu0 %v761
        %v876 = vpop.f32.mrf.mxu0
        %v877 = vadd.f32 0.0, %v876
        %v878 = vpop.f32.mrf.mxu0
        %879 = vmatprep.mubr.f32.mxu0 0.0
        %880 = vmatmul.mubr.f32.gmra.mxu0 %v762
        %v881 = vpop.f32.mrf.mxu0
        %v882 = vadd.f32 0.0, %v881
        %v883 = vpop.f32.mrf.mxu0
        %884 = vmatprep.mubr.f32.mxu0 0.0
        %885 = vmatmul.mubr.f32.gmra.mxu0 %v763
        %v886 = vpop.f32.mrf.mxu0
        %v887 = vadd.f32 0.0, %v886
        %v888 = vpop.f32.mrf.mxu0
        %889 = vmatprep.mubr.f32.mxu0 0.0
        %890 = vmatmul.mubr.f32.gmra.mxu0 %v764
        %v891 = vpop.f32.mrf.mxu0
        %v892 = vadd.f32 0.0, %v891
        %v893 = vpop.f32.mrf.mxu0
        %894 = vmatprep.mubr.f32.mxu0 0.0
        %895 = vmatmul.mubr.f32.gmra.mxu0 %v765
        %v896 = vpop.f32.mrf.mxu0
        %v897 = vadd.f32 0.0, %v896
        %v898 = vpop.f32.mrf.mxu0
        %899 = vmatprep.mubr.f32.mxu0 0.0
        %900 = vmatmul.mubr.f32.gmra.mxu0 %v766
        %v901 = vpop.f32.mrf.mxu0
        %v902 = vadd.f32 0.0, %v901
        %v903 = vpop.f32.mrf.mxu0
        %904 = vmatprep.mubr.f32.mxu0 0.0
        %905 = vmatmul.mubr.f32.gmra.mxu0 %v767
        %v906 = vpop.f32.mrf.mxu0
        %v907 = vadd.f32 0.0, %v906
        %v908 = vpop.f32.mrf.mxu0
        %909 = vmatprep.mubr.f32.mxu0 0.0
        %910 = vmatmul.mubr.f32.gmra.mxu0 %v768
        %v911 = vpop.f32.mrf.mxu0
        %v912 = vadd.f32 0.0, %v911
        %v913 = vpop.f32.mrf.mxu0
        %914 = vmatprep.mubr.f32.mxu0 0.0
        %915 = vmatmul.mubr.f32.gmra.mxu0 %v769
        %v916 = vpop.f32.mrf.mxu0
        %v917 = vadd.f32 0.0, %v916
        %v918 = vpop.f32.mrf.mxu0
        %919 = vmatprep.mubr.f32.mxu0 0.0
        %920 = vmatmul.mubr.f32.gmra.mxu0 %v770
        %v921 = vpop.f32.mrf.mxu0
        %v922 = vadd.f32 0.0, %v921
        %v923 = vpop.f32.mrf.mxu0
        %924 = vmatprep.mubr.f32.mxu0 0.0
        %925 = vmatmul.mubr.f32.gmra.mxu0 %v771
        %v926 = vpop.f32.mrf.mxu0
        %v927 = vadd.f32 0.0, %v926
        %v928 = vpop.f32.mrf.mxu0
        %929 = vmatprep.mubr.f32.mxu0 0.0
        %930 = vmatmul.mubr.f32.gmra.mxu0 %v772
        %v931 = vpop.f32.mrf.mxu0
        %v932 = vadd.f32 0.0, %v931
        %v933 = vpop.f32.mrf.mxu0
        %934 = vmatprep.mubr.f32.mxu0 0.0
        %935 = vmatmul.mubr.f32.gmra.mxu0 %v773
        %v936 = vpop.f32.mrf.mxu0
        %v937 = vadd.f32 0.0, %v936
        %v938 = vpop.f32.mrf.mxu0
        %939 = vmatprep.mubr.f32.mxu0 0.0
        %940 = vmatmul.mubr.f32.gmra.mxu0 %v774
        %v941 = vpop.f32.mrf.mxu0
        %v942 = vadd.f32 0.0, %v941
        %v943 = vpop.f32.mrf.mxu0
        %944 = vmatprep.mubr.f32.mxu0 0.0
        %945 = vmatmul.mubr.f32.gmra.mxu0 %v775
        %v946 = vpop.f32.mrf.mxu0
        %v947 = vadd.f32 0.0, %v946
        %v948 = vpop.f32.mrf.mxu0
        %949 = vmatprep.mubr.f32.mxu0 0.0
        %950 = vmatmul.mubr.f32.gmra.mxu0 %v776
        %v951 = vpop.f32.mrf.mxu0
        %v952 = vadd.f32 0.0, %v951
        %v953 = vpop.f32.mrf.mxu0
        %954 = vmatprep.mubr.f32.mxu0 0.0
        %955 = vmatmul.mubr.f32.gmra.mxu0 %v777
        %v956 = vpop.f32.mrf.mxu0
        %v957 = vadd.f32 0.0, %v956
        %v958 = vpop.f32.mrf.mxu0
        %959 = vmatprep.mubr.f32.mxu0 0.0
        %960 = vmatmul.mubr.f32.gmra.mxu0 %v778
        %v961 = vpop.f32.mrf.mxu0
        %v962 = vadd.f32 0.0, %v961
        %v963 = vpop.f32.mrf.mxu0
        %964 = vmatprep.mubr.f32.mxu0 0.0
        %965 = vmatmul.mubr.f32.gmra.mxu0 %v779
        %v966 = vpop.f32.mrf.mxu0
        %v967 = vadd.f32 0.0, %v966
        %v968 = vpop.f32.mrf.mxu0
        %969 = vmatprep.mubr.f32.mxu0 0.0
        %970 = vmatmul.mubr.f32.gmra.mxu0 %v780
        %v971 = vpop.f32.mrf.mxu0
        %v972 = vadd.f32 0.0, %v971
        %v973 = vpop.f32.mrf.mxu0
        %974 = vmatprep.mubr.f32.mxu0 0.0
        %975 = vmatmul.mubr.f32.gmra.mxu0 %v781
        %v976 = vpop.f32.mrf.mxu0
        %v977 = vadd.f32 0.0, %v976
        %v978 = vpop.f32.mrf.mxu0
        %979 = vmatprep.mubr.f32.mxu0 0.0
        %980 = vmatmul.mubr.f32.gmra.mxu0 %v782
        %v981 = vpop.f32.mrf.mxu0
        %v982 = vadd.f32 0.0, %v981
        %v983 = vpop.f32.mrf.mxu0
        %984 = vmatprep.mubr.f32.mxu0 0.0
        %985 = vmatmul.mubr.f32.gmra.mxu0 %v783
        %v986 = vpop.f32.mrf.mxu0
        %v987 = vadd.f32 0.0, %v986
        %v988 = vpop.f32.mrf.mxu0
        %989 = vmatprep.mubr.f32.mxu0 0.0
        %990 = vmatmul.mubr.f32.gmra.mxu0 %v784
        %v991 = vpop.f32.mrf.mxu0
        %v992 = vadd.f32 0.0, %v991
        %v993 = vpop.f32.mrf.mxu0
        %994 = vmatprep.mubr.f32.mxu0 0.0
        %995 = vmatmul.mubr.f32.gmra.mxu0 %v785
        %v996 = vpop.f32.mrf.mxu0
        %v997 = vadd.f32 0.0, %v996
        %v998 = vpop.f32.mrf.mxu0
        %999 = vmatprep.mubr.f32.mxu0 0.0
        %1000 = vmatmul.mubr.f32.gmra.mxu0 %v786
        %v1001 = vpop.f32.mrf.mxu0
        %v1002 = vadd.f32 0.0, %v1001
        %v1003 = vpop.f32.mrf.mxu0
        %1004 = vmatprep.mubr.f32.mxu0 0.0
        %1005 = vmatmul.mubr.f32.gmra.mxu0 %v787
        %v1006 = vpop.f32.mrf.mxu0
        %v1007 = vadd.f32 0.0, %v1006
        %v1008 = vpop.f32.mrf.mxu0
        %1009 = vmatprep.mubr.f32.mxu0 0.0
        %1010 = vmatmul.mubr.f32.gmra.mxu0 %v788
        %v1011 = vpop.f32.mrf.mxu0
        %v1012 = vadd.f32 0.0, %v1011
        %v1013 = vpop.f32.mrf.mxu0
        %1014 = vmatprep.mubr.f32.mxu0 0.0
        %1015 = vmatmul.mubr.f32.gmra.mxu0 %v789
        %v1016 = vpop.f32.mrf.mxu0
        %v1017 = vadd.f32 0.0, %v1016
        %v1018 = vpop.f32.mrf.mxu0
        %1019 = vmatprep.mubr.f32.mxu0 0.0
        %1020 = vmatmul.mubr.f32.gmra.mxu0 %v790
        %v1021 = vpop.f32.mrf.mxu0
        %v1022 = vadd.f32 0.0, %v1021
        %v1023 = vpop.f32.mrf.mxu0
        %1024 = vmatprep.mubr.f32.mxu0 0.0
        %1025 = vmatmul.mubr.f32.gmra.mxu0 %v791
        %v1026 = vpop.f32.mrf.mxu0
        %v1027 = vadd.f32 0.0, %v1026
        %v1028 = vpop.f32.mrf.mxu0
        %1029 = vmatprep.mubr.f32.mxu0 0.0
        %1030 = vmatmul.mubr.f32.gmra.mxu0 %v792
        %v1031 = vpop.f32.mrf.mxu0
        %v1032 = vadd.f32 0.0, %v1031
        %v1033 = vpop.f32.mrf.mxu0
        %1034 = vdwg.mxu0
        %1035 = vmatprep.subr.mxu0 0.0
        %1036 = vmatpush1.msra.mxu0 %v760
        %1037 = vmatprep.subr.mxu0 0.0
        %1038 = vmatpush1.msra.mxu0 %v759
        %1039 = vmatprep.subr.mxu0 0.0
        %1040 = vmatpush1.msra.mxu0 %v758
        %1041 = vmatprep.subr.mxu0 0.0
        %1042 = vmatpush1.msra.mxu0 %v757
        %1043 = vmatprep.subr.mxu0 0.0
        %1044 = vmatpush1.msra.mxu0 %v756
        %1045 = vmatprep.subr.mxu0 0.0
        %1046 = vmatpush1.msra.mxu0 %v755
        %1047 = vmatprep.subr.mxu0 0.0
        %1048 = vmatpush1.msra.mxu0 %v754
        %1049 = vmatprep.subr.mxu0 0.0
        %1050 = vmatpush1.msra.mxu0 %v753
        %1051 = vmatprep.subr.mxu0 0.0
        %1052 = vmatpush1.msra.mxu0 %v752
        %1053 = vmatprep.subr.mxu0 0.0
        %1054 = vmatpush1.msra.mxu0 %v751
        %1055 = vmatprep.subr.mxu0 0.0
        %1056 = vmatpush1.msra.mxu0 %v750
        %1057 = vmatprep.subr.mxu0 0.0
        %1058 = vmatpush1.msra.mxu0 %v749
        %1059 = vmatprep.subr.mxu0 0.0
        %1060 = vmatpush1.msra.mxu0 %v748
        %1061 = vmatprep.subr.mxu0 0.0
        %1062 = vmatpush1.msra.mxu0 %v747
        %1063 = vmatprep.subr.mxu0 0.0
        %1064 = vmatpush1.msra.mxu0 %v746
        %1065 = vmatprep.subr.mxu0 0.0
        %1066 = vmatpush1.msra.mxu0 %v745
        %1067 = vmatprep.subr.mxu0 0.0
        %1068 = vmatpush2.msra.mxu0 0.0
        %1069 = vmatprep.subr.mxu0 0.0
        %1070 = vmatpush2.msra.mxu0 0.0
        %1071 = vmatprep.subr.mxu0 0.0
        %1072 = vmatpush2.msra.mxu0 0.0
        %1073 = vmatprep.subr.mxu0 0.0
        %1074 = vmatpush2.msra.mxu0 0.0
        %1075 = vmatprep.subr.mxu0 0.0
        %1076 = vmatpush2.msra.mxu0 0.0
        %1077 = vmatprep.subr.mxu0 0.0
        %1078 = vmatpush2.msra.mxu0 0.0
        %1079 = vmatprep.subr.mxu0 0.0
        %1080 = vmatpush2.msra.mxu0 0.0
        %1081 = vmatprep.subr.mxu0 0.0
        %1082 = vmatpush2.msra.mxu0 0.0
        %1083 = vmatprep.subr.mxu0 0.0
        %1084 = vmatpush2.msra.mxu0 0.0
        %1085 = vmatprep.subr.mxu0 0.0
        %1086 = vmatpush2.msra.mxu0 0.0
        %1087 = vmatprep.subr.mxu0 0.0
        %1088 = vmatpush2.msra.mxu0 0.0
        %1089 = vmatprep.subr.mxu0 0.0
        %1090 = vmatpush2.msra.mxu0 0.0
        %1091 = vmatprep.subr.mxu0 0.0
        %1092 = vmatpush2.msra.mxu0 0.0
        %1093 = vmatprep.subr.mxu0 0.0
        %1094 = vmatpush2.msra.mxu0 0.0
        %1095 = vmatprep.subr.mxu0 0.0
        %1096 = vmatpush2.msra.mxu0 0.0
        %1097 = vmatprep.subr.mxu0 0.0
        %1098 = vmatpush2.msra.mxu0 0.0
        %1099 = vmatprep.mubr.f32.mxu0 0.0
        %1100 = vmatmul.mubr.f32.gmra.mxu0 %v713
        %v1101 = vpop.f32.mrf.mxu0
        %v1102 = vadd.f32 %v877, %v1101
        %v1103 = vpop.f32.mrf.mxu0
        %1104 = vmatprep.mubr.f32.mxu0 0.0
        %1105 = vmatmul.mubr.f32.gmra.mxu0 %v714
        %v1106 = vpop.f32.mrf.mxu0
        %v1107 = vadd.f32 %v882, %v1106
        %v1108 = vpop.f32.mrf.mxu0
        %1109 = vmatprep.mubr.f32.mxu0 0.0
        %1110 = vmatmul.mubr.f32.gmra.mxu0 %v715
        %v1111 = vpop.f32.mrf.mxu0
        %v1112 = vadd.f32 %v887, %v1111
        %v1113 = vpop.f32.mrf.mxu0
        %1114 = vmatprep.mubr.f32.mxu0 0.0
        %1115 = vmatmul.mubr.f32.gmra.mxu0 %v716
        %v1116 = vpop.f32.mrf.mxu0
        %v1117 = vadd.f32 %v892, %v1116
        %v1118 = vpop.f32.mrf.mxu0
        %1119 = vmatprep.mubr.f32.mxu0 0.0
        %1120 = vmatmul.mubr.f32.gmra.mxu0 %v717
        %v1121 = vpop.f32.mrf.mxu0
        %v1122 = vadd.f32 %v897, %v1121
        %v1123 = vpop.f32.mrf.mxu0
        %1124 = vmatprep.mubr.f32.mxu0 0.0
        %1125 = vmatmul.mubr.f32.gmra.mxu0 %v718
        %v1126 = vpop.f32.mrf.mxu0
        %v1127 = vadd.f32 %v902, %v1126
        %v1128 = vpop.f32.mrf.mxu0
        %1129 = vmatprep.mubr.f32.mxu0 0.0
        %1130 = vmatmul.mubr.f32.gmra.mxu0 %v719
        %v1131 = vpop.f32.mrf.mxu0
        %v1132 = vadd.f32 %v907, %v1131
        %v1133 = vpop.f32.mrf.mxu0
        %1134 = vmatprep.mubr.f32.mxu0 0.0
        %1135 = vmatmul.mubr.f32.gmra.mxu0 %v720
        %v1136 = vpop.f32.mrf.mxu0
        %v1137 = vadd.f32 %v912, %v1136
        %v1138 = vpop.f32.mrf.mxu0
        %1139 = vmatprep.mubr.f32.mxu0 0.0
        %1140 = vmatmul.mubr.f32.gmra.mxu0 %v721
        %v1141 = vpop.f32.mrf.mxu0
        %v1142 = vadd.f32 %v917, %v1141
        %v1143 = vpop.f32.mrf.mxu0
        %1144 = vmatprep.mubr.f32.mxu0 0.0
        %1145 = vmatmul.mubr.f32.gmra.mxu0 %v722
        %v1146 = vpop.f32.mrf.mxu0
        %v1147 = vadd.f32 %v922, %v1146
        %v1148 = vpop.f32.mrf.mxu0
        %1149 = vmatprep.mubr.f32.mxu0 0.0
        %1150 = vmatmul.mubr.f32.gmra.mxu0 %v723
        %v1151 = vpop.f32.mrf.mxu0
        %v1152 = vadd.f32 %v927, %v1151
        %v1153 = vpop.f32.mrf.mxu0
        %1154 = vmatprep.mubr.f32.mxu0 0.0
        %1155 = vmatmul.mubr.f32.gmra.mxu0 %v724
        %v1156 = vpop.f32.mrf.mxu0
        %v1157 = vadd.f32 %v932, %v1156
        %v1158 = vpop.f32.mrf.mxu0
        %1159 = vmatprep.mubr.f32.mxu0 0.0
        %1160 = vmatmul.mubr.f32.gmra.mxu0 %v725
        %v1161 = vpop.f32.mrf.mxu0
        %v1162 = vadd.f32 %v937, %v1161
        %v1163 = vpop.f32.mrf.mxu0
        %1164 = vmatprep.mubr.f32.mxu0 0.0
        %1165 = vmatmul.mubr.f32.gmra.mxu0 %v726
        %v1166 = vpop.f32.mrf.mxu0
        %v1167 = vadd.f32 %v942, %v1166
        %v1168 = vpop.f32.mrf.mxu0
        %1169 = vmatprep.mubr.f32.mxu0 0.0
        %1170 = vmatmul.mubr.f32.gmra.mxu0 %v727
        %v1171 = vpop.f32.mrf.mxu0
        %v1172 = vadd.f32 %v947, %v1171
        %v1173 = vpop.f32.mrf.mxu0
        %1174 = vmatprep.mubr.f32.mxu0 0.0
        %1175 = vmatmul.mubr.f32.gmra.mxu0 %v728
        %v1176 = vpop.f32.mrf.mxu0
        %v1177 = vadd.f32 %v952, %v1176
        %v1178 = vpop.f32.mrf.mxu0
        %1179 = vmatprep.mubr.f32.mxu0 0.0
        %1180 = vmatmul.mubr.f32.gmra.mxu0 %v729
        %v1181 = vpop.f32.mrf.mxu0
        %v1182 = vadd.f32 %v957, %v1181
        %v1183 = vpop.f32.mrf.mxu0
        %1184 = vmatprep.mubr.f32.mxu0 0.0
        %1185 = vmatmul.mubr.f32.gmra.mxu0 %v730
        %v1186 = vpop.f32.mrf.mxu0
        %v1187 = vadd.f32 %v962, %v1186
        %v1188 = vpop.f32.mrf.mxu0
        %1189 = vmatprep.mubr.f32.mxu0 0.0
        %1190 = vmatmul.mubr.f32.gmra.mxu0 %v731
        %v1191 = vpop.f32.mrf.mxu0
        %v1192 = vadd.f32 %v967, %v1191
        %v1193 = vpop.f32.mrf.mxu0
        %1194 = vmatprep.mubr.f32.mxu0 0.0
        %1195 = vmatmul.mubr.f32.gmra.mxu0 %v732
        %v1196 = vpop.f32.mrf.mxu0
        %v1197 = vadd.f32 %v972, %v1196
        %v1198 = vpop.f32.mrf.mxu0
        %1199 = vmatprep.mubr.f32.mxu0 0.0
        %1200 = vmatmul.mubr.f32.gmra.mxu0 %v733
        %v1201 = vpop.f32.mrf.mxu0
        %v1202 = vadd.f32 %v977, %v1201
        %v1203 = vpop.f32.mrf.mxu0
        %1204 = vmatprep.mubr.f32.mxu0 0.0
        %1205 = vmatmul.mubr.f32.gmra.mxu0 %v734
        %v1206 = vpop.f32.mrf.mxu0
        %v1207 = vadd.f32 %v982, %v1206
        %v1208 = vpop.f32.mrf.mxu0
        %1209 = vmatprep.mubr.f32.mxu0 0.0
        %1210 = vmatmul.mubr.f32.gmra.mxu0 %v735
        %v1211 = vpop.f32.mrf.mxu0
        %v1212 = vadd.f32 %v987, %v1211
        %v1213 = vpop.f32.mrf.mxu0
        %1214 = vmatprep.mubr.f32.mxu0 0.0
        %1215 = vmatmul.mubr.f32.gmra.mxu0 %v736
        %v1216 = vpop.f32.mrf.mxu0
        %v1217 = vadd.f32 %v992, %v1216
        %v1218 = vpop.f32.mrf.mxu0
        %1219 = vmatprep.mubr.f32.mxu0 0.0
        %1220 = vmatmul.mubr.f32.gmra.mxu0 %v737
        %v1221 = vpop.f32.mrf.mxu0
        %v1222 = vadd.f32 %v997, %v1221
        %v1223 = vpop.f32.mrf.mxu0
        %1224 = vmatprep.mubr.f32.mxu0 0.0
        %1225 = vmatmul.mubr.f32.gmra.mxu0 %v738
        %v1226 = vpop.f32.mrf.mxu0
        %v1227 = vadd.f32 %v1002, %v1226
        %v1228 = vpop.f32.mrf.mxu0
        %1229 = vmatprep.mubr.f32.mxu0 0.0
        %1230 = vmatmul.mubr.f32.gmra.mxu0 %v739
        %v1231 = vpop.f32.mrf.mxu0
        %v1232 = vadd.f32 %v1007, %v1231
        %v1233 = vpop.f32.mrf.mxu0
        %1234 = vmatprep.mubr.f32.mxu0 0.0
        %1235 = vmatmul.mubr.f32.gmra.mxu0 %v740
        %v1236 = vpop.f32.mrf.mxu0
        %v1237 = vadd.f32 %v1012, %v1236
        %v1238 = vpop.f32.mrf.mxu0
        %1239 = vmatprep.mubr.f32.mxu0 0.0
        %1240 = vmatmul.mubr.f32.gmra.mxu0 %v741
        %v1241 = vpop.f32.mrf.mxu0
        %v1242 = vadd.f32 %v1017, %v1241
        %v1243 = vpop.f32.mrf.mxu0
        %1244 = vmatprep.mubr.f32.mxu0 0.0
        %1245 = vmatmul.mubr.f32.gmra.mxu0 %v742
        %v1246 = vpop.f32.mrf.mxu0
        %v1247 = vadd.f32 %v1022, %v1246
        %v1248 = vpop.f32.mrf.mxu0
        %1249 = vmatprep.mubr.f32.mxu0 0.0
        %1250 = vmatmul.mubr.f32.gmra.mxu0 %v743
        %v1251 = vpop.f32.mrf.mxu0
        %v1252 = vadd.f32 %v1027, %v1251
        %v1253 = vpop.f32.mrf.mxu0
        %1254 = vmatprep.mubr.f32.mxu0 0.0
        %1255 = vmatmul.mubr.f32.gmra.mxu0 %v744
        %v1256 = vpop.f32.mrf.mxu0
        %v1257 = vadd.f32 %v1032, %v1256
        %v1258 = vpop.f32.mrf.mxu0
        %1259 = vdwg.mxu0
        %v1260 = vld [vmem:[#allocation2 + $0x2] sm:$0xff]
        %v1261 = vld [vmem:[#allocation2 + $0xa] sm:$0xff]
        %v1262 = vld [vmem:[#allocation2 + $0x1a] sm:$0xff]
        %v1263 = vld [vmem:[#allocation2 + $0x22] sm:$0xff]
        %v1264 = vld [vmem:[#allocation2 + $0x32] sm:$0xff]
        %v1265 = vld [vmem:[#allocation2 + $0x3a] sm:$0xff]
        %v1266 = vld [vmem:[#allocation2 + $0x4a] sm:$0xff]
        %v1267 = vld [vmem:[#allocation2 + $0x52] sm:$0xff]
        %v1268 = vld [vmem:[#allocation2 + $0x62] sm:$0xff]
        %v1269 = vld [vmem:[#allocation2 + $0x6a] sm:$0xff]
        %v1270 = vld [vmem:[#allocation2 + $0x7a] sm:$0xff]
        %v1271 = vld [vmem:[#allocation2 + $0x82] sm:$0xff]
        %v1272 = vld [vmem:[#allocation2 + $0x92] sm:$0xff]
        %v1273 = vld [vmem:[#allocation2 + $0x9a] sm:$0xff]
        %v1274 = vld [vmem:[#allocation2 + $0xaa] sm:$0xff]
        %v1275 = vld [vmem:[#allocation2 + $0xb2] sm:$0xff]
        %v1276 = vld [vmem:[#allocation2 + $0xc2] sm:$0xff]
        %v1277 = vld [vmem:[#allocation2 + $0xca] sm:$0xff]
        %v1278 = vld [vmem:[#allocation2 + $0xda] sm:$0xff]
        %v1279 = vld [vmem:[#allocation2 + $0xe2] sm:$0xff]
        %v1280 = vld [vmem:[#allocation2 + $0xf2] sm:$0xff]
        %v1281 = vld [vmem:[#allocation2 + $0xfa] sm:$0xff]
        %v1282 = vld [vmem:[#allocation2 + $0x10a] sm:$0xff]
        %v1283 = vld [vmem:[#allocation2 + $0x112] sm:$0xff]
        %v1284 = vld [vmem:[#allocation2 + $0x122] sm:$0xff]
        %v1285 = vld [vmem:[#allocation2 + $0x12a] sm:$0xff]
        %v1286 = vld [vmem:[#allocation2 + $0x13a] sm:$0xff]
        %v1287 = vld [vmem:[#allocation2 + $0x142] sm:$0xff]
        %v1288 = vld [vmem:[#allocation2 + $0x152] sm:$0xff]
        %v1289 = vld [vmem:[#allocation2 + $0x15a] sm:$0xff]
        %v1290 = vld [vmem:[#allocation2 + $0x16a] sm:$0xff]
        %v1291 = vld [vmem:[#allocation2 + $0x172] sm:$0xff]
        %s1292 = scalar_lea.vmem [#allocation3], 256
        %v1293 = vld [vmem:[%s1292] sm:$0xff]
        %v1294 = vld [vmem:[%s1292 + $0x8] sm:$0xff]
        %v1295 = vld [vmem:[%s1292 + $0x10] sm:$0xff]
        %v1296 = vld [vmem:[%s1292 + $0x18] sm:$0xff]
        %v1297 = vld [vmem:[%s1292 + $0x20] sm:$0xff]
        %v1298 = vld [vmem:[%s1292 + $0x28] sm:$0xff]
        %v1299 = vld [vmem:[%s1292 + $0x30] sm:$0xff]
        %v1300 = vld [vmem:[%s1292 + $0x38] sm:$0xff]
        %v1301 = vld [vmem:[%s1292 + $0x40] sm:$0xff]
        %v1302 = vld [vmem:[%s1292 + $0x48] sm:$0xff]
        %v1303 = vld [vmem:[%s1292 + $0x50] sm:$0xff]
        %v1304 = vld [vmem:[%s1292 + $0x58] sm:$0xff]
        %v1305 = vld [vmem:[%s1292 + $0x60] sm:$0xff]
        %v1306 = vld [vmem:[%s1292 + $0x68] sm:$0xff]
        %v1307 = vld [vmem:[%s1292 + $0x70] sm:$0xff]
        %v1308 = vld [vmem:[%s1292 + $0x78] sm:$0xff]
        %1309 = vmatprep.subr.mxu0 0.0
        %1310 = vmatpush1.msra.mxu0 %v1308
        %1311 = vmatprep.subr.mxu0 0.0
        %1312 = vmatpush1.msra.mxu0 %v1307
        %1313 = vmatprep.subr.mxu0 0.0
        %1314 = vmatpush1.msra.mxu0 %v1306
        %1315 = vmatprep.subr.mxu0 0.0
        %1316 = vmatpush1.msra.mxu0 %v1305
        %1317 = vmatprep.subr.mxu0 0.0
        %1318 = vmatpush1.msra.mxu0 %v1304
        %1319 = vmatprep.subr.mxu0 0.0
        %1320 = vmatpush1.msra.mxu0 %v1303
        %1321 = vmatprep.subr.mxu0 0.0
        %1322 = vmatpush1.msra.mxu0 %v1302
        %1323 = vmatprep.subr.mxu0 0.0
        %1324 = vmatpush1.msra.mxu0 %v1301
        %1325 = vmatprep.subr.mxu0 0.0
        %1326 = vmatpush1.msra.mxu0 %v1300
        %1327 = vmatprep.subr.mxu0 0.0
        %1328 = vmatpush1.msra.mxu0 %v1299
        %1329 = vmatprep.subr.mxu0 0.0
        %1330 = vmatpush1.msra.mxu0 %v1298
        %1331 = vmatprep.subr.mxu0 0.0
        %1332 = vmatpush1.msra.mxu0 %v1297
        %1333 = vmatprep.subr.mxu0 0.0
        %1334 = vmatpush1.msra.mxu0 %v1296
        %1335 = vmatprep.subr.mxu0 0.0
        %1336 = vmatpush1.msra.mxu0 %v1295
        %1337 = vmatprep.subr.mxu0 0.0
        %1338 = vmatpush1.msra.mxu0 %v1294
        %1339 = vmatprep.subr.mxu0 0.0
        %1340 = vmatpush1.msra.mxu0 %v1293
        %1341 = vmatprep.subr.mxu0 0.0
        %1342 = vmatpush2.msra.mxu0 0.0
        %1343 = vmatprep.subr.mxu0 0.0
        %1344 = vmatpush2.msra.mxu0 0.0
        %1345 = vmatprep.subr.mxu0 0.0
        %1346 = vmatpush2.msra.mxu0 0.0
        %1347 = vmatprep.subr.mxu0 0.0
        %1348 = vmatpush2.msra.mxu0 0.0
        %1349 = vmatprep.subr.mxu0 0.0
        %1350 = vmatpush2.msra.mxu0 0.0
        %1351 = vmatprep.subr.mxu0 0.0
        %1352 = vmatpush2.msra.mxu0 0.0
        %1353 = vmatprep.subr.mxu0 0.0
        %1354 = vmatpush2.msra.mxu0 0.0
        %1355 = vmatprep.subr.mxu0 0.0
        %1356 = vmatpush2.msra.mxu0 0.0
        %1357 = vmatprep.subr.mxu0 0.0
        %1358 = vmatpush2.msra.mxu0 0.0
        %1359 = vmatprep.subr.mxu0 0.0
        %1360 = vmatpush2.msra.mxu0 0.0
        %1361 = vmatprep.subr.mxu0 0.0
        %1362 = vmatpush2.msra.mxu0 0.0
        %1363 = vmatprep.subr.mxu0 0.0
        %1364 = vmatpush2.msra.mxu0 0.0
        %1365 = vmatprep.subr.mxu0 0.0
        %1366 = vmatpush2.msra.mxu0 0.0
        %1367 = vmatprep.subr.mxu0 0.0
        %1368 = vmatpush2.msra.mxu0 0.0
        %1369 = vmatprep.subr.mxu0 0.0
        %1370 = vmatpush2.msra.mxu0 0.0
        %1371 = vmatprep.subr.mxu0 0.0
        %1372 = vmatpush2.msra.mxu0 0.0
        %1373 = vmatprep.mubr.f32.mxu0 0.0
        %1374 = vmatmul.mubr.f32.gmra.mxu0 %v1260
        %v1375 = vpop.f32.mrf.mxu0
        %v1376 = vadd.f32 0.0, %v1375
        %v1377 = vpop.f32.mrf.mxu0
        %1378 = vmatprep.mubr.f32.mxu0 0.0
        %1379 = vmatmul.mubr.f32.gmra.mxu0 %v1261
        %v1380 = vpop.f32.mrf.mxu0
        %v1381 = vadd.f32 0.0, %v1380
        %v1382 = vpop.f32.mrf.mxu0
        %1383 = vmatprep.mubr.f32.mxu0 0.0
        %1384 = vmatmul.mubr.f32.gmra.mxu0 %v1262
        %v1385 = vpop.f32.mrf.mxu0
        %v1386 = vadd.f32 0.0, %v1385
        %v1387 = vpop.f32.mrf.mxu0
        %1388 = vmatprep.mubr.f32.mxu0 0.0
        %1389 = vmatmul.mubr.f32.gmra.mxu0 %v1263
        %v1390 = vpop.f32.mrf.mxu0
        %v1391 = vadd.f32 0.0, %v1390
        %v1392 = vpop.f32.mrf.mxu0
        %1393 = vmatprep.mubr.f32.mxu0 0.0
        %1394 = vmatmul.mubr.f32.gmra.mxu0 %v1264
        %v1395 = vpop.f32.mrf.mxu0
        %v1396 = vadd.f32 0.0, %v1395
        %v1397 = vpop.f32.mrf.mxu0
        %1398 = vmatprep.mubr.f32.mxu0 0.0
        %1399 = vmatmul.mubr.f32.gmra.mxu0 %v1265
        %v1400 = vpop.f32.mrf.mxu0
        %v1401 = vadd.f32 0.0, %v1400
        %v1402 = vpop.f32.mrf.mxu0
        %1403 = vmatprep.mubr.f32.mxu0 0.0
        %1404 = vmatmul.mubr.f32.gmra.mxu0 %v1266
        %v1405 = vpop.f32.mrf.mxu0
        %v1406 = vadd.f32 0.0, %v1405
        %v1407 = vpop.f32.mrf.mxu0
        %1408 = vmatprep.mubr.f32.mxu0 0.0
        %1409 = vmatmul.mubr.f32.gmra.mxu0 %v1267
        %v1410 = vpop.f32.mrf.mxu0
        %v1411 = vadd.f32 0.0, %v1410
        %v1412 = vpop.f32.mrf.mxu0
        %1413 = vmatprep.mubr.f32.mxu0 0.0
        %1414 = vmatmul.mubr.f32.gmra.mxu0 %v1268
        %v1415 = vpop.f32.mrf.mxu0
        %v1416 = vadd.f32 0.0, %v1415
        %v1417 = vpop.f32.mrf.mxu0
        %1418 = vmatprep.mubr.f32.mxu0 0.0
        %1419 = vmatmul.mubr.f32.gmra.mxu0 %v1269
        %v1420 = vpop.f32.mrf.mxu0
        %v1421 = vadd.f32 0.0, %v1420
        %v1422 = vpop.f32.mrf.mxu0
        %1423 = vmatprep.mubr.f32.mxu0 0.0
        %1424 = vmatmul.mubr.f32.gmra.mxu0 %v1270
        %v1425 = vpop.f32.mrf.mxu0
        %v1426 = vadd.f32 0.0, %v1425
        %v1427 = vpop.f32.mrf.mxu0
        %1428 = vmatprep.mubr.f32.mxu0 0.0
        %1429 = vmatmul.mubr.f32.gmra.mxu0 %v1271
        %v1430 = vpop.f32.mrf.mxu0
        %v1431 = vadd.f32 0.0, %v1430
        %v1432 = vpop.f32.mrf.mxu0
        %1433 = vmatprep.mubr.f32.mxu0 0.0
        %1434 = vmatmul.mubr.f32.gmra.mxu0 %v1272
        %v1435 = vpop.f32.mrf.mxu0
        %v1436 = vadd.f32 0.0, %v1435
        %v1437 = vpop.f32.mrf.mxu0
        %1438 = vmatprep.mubr.f32.mxu0 0.0
        %1439 = vmatmul.mubr.f32.gmra.mxu0 %v1273
        %v1440 = vpop.f32.mrf.mxu0
        %v1441 = vadd.f32 0.0, %v1440
        %v1442 = vpop.f32.mrf.mxu0
        %1443 = vmatprep.mubr.f32.mxu0 0.0
        %1444 = vmatmul.mubr.f32.gmra.mxu0 %v1274
        %v1445 = vpop.f32.mrf.mxu0
        %v1446 = vadd.f32 0.0, %v1445
        %v1447 = vpop.f32.mrf.mxu0
        %1448 = vmatprep.mubr.f32.mxu0 0.0
        %1449 = vmatmul.mubr.f32.gmra.mxu0 %v1275
        %v1450 = vpop.f32.mrf.mxu0
        %v1451 = vadd.f32 0.0, %v1450
        %v1452 = vpop.f32.mrf.mxu0
        %1453 = vmatprep.mubr.f32.mxu0 0.0
        %1454 = vmatmul.mubr.f32.gmra.mxu0 %v1276
        %v1455 = vpop.f32.mrf.mxu0
        %v1456 = vadd.f32 0.0, %v1455
        %v1457 = vpop.f32.mrf.mxu0
        %1458 = vmatprep.mubr.f32.mxu0 0.0
        %1459 = vmatmul.mubr.f32.gmra.mxu0 %v1277
        %v1460 = vpop.f32.mrf.mxu0
        %v1461 = vadd.f32 0.0, %v1460
        %v1462 = vpop.f32.mrf.mxu0
        %1463 = vmatprep.mubr.f32.mxu0 0.0
        %1464 = vmatmul.mubr.f32.gmra.mxu0 %v1278
        %v1465 = vpop.f32.mrf.mxu0
        %v1466 = vadd.f32 0.0, %v1465
        %v1467 = vpop.f32.mrf.mxu0
        %1468 = vmatprep.mubr.f32.mxu0 0.0
        %1469 = vmatmul.mubr.f32.gmra.mxu0 %v1279
        %v1470 = vpop.f32.mrf.mxu0
        %v1471 = vadd.f32 0.0, %v1470
        %v1472 = vpop.f32.mrf.mxu0
        %1473 = vmatprep.mubr.f32.mxu0 0.0
        %1474 = vmatmul.mubr.f32.gmra.mxu0 %v1280
        %v1475 = vpop.f32.mrf.mxu0
        %v1476 = vadd.f32 0.0, %v1475
        %v1477 = vpop.f32.mrf.mxu0
        %1478 = vmatprep.mubr.f32.mxu0 0.0
        %1479 = vmatmul.mubr.f32.gmra.mxu0 %v1281
        %v1480 = vpop.f32.mrf.mxu0
        %v1481 = vadd.f32 0.0, %v1480
        %v1482 = vpop.f32.mrf.mxu0
        %1483 = vmatprep.mubr.f32.mxu0 0.0
        %1484 = vmatmul.mubr.f32.gmra.mxu0 %v1282
        %v1485 = vpop.f32.mrf.mxu0
        %v1486 = vadd.f32 0.0, %v1485
        %v1487 = vpop.f32.mrf.mxu0
        %1488 = vmatprep.mubr.f32.mxu0 0.0
        %1489 = vmatmul.mubr.f32.gmra.mxu0 %v1283
        %v1490 = vpop.f32.mrf.mxu0
        %v1491 = vadd.f32 0.0, %v1490
        %v1492 = vpop.f32.mrf.mxu0
        %1493 = vmatprep.mubr.f32.mxu0 0.0
        %1494 = vmatmul.mubr.f32.gmra.mxu0 %v1284
        %v1495 = vpop.f32.mrf.mxu0
        %v1496 = vadd.f32 0.0, %v1495
        %v1497 = vpop.f32.mrf.mxu0
        %1498 = vmatprep.mubr.f32.mxu0 0.0
        %1499 = vmatmul.mubr.f32.gmra.mxu0 %v1285
        %v1500 = vpop.f32.mrf.mxu0
        %v1501 = vadd.f32 0.0, %v1500
        %v1502 = vpop.f32.mrf.mxu0
        %1503 = vmatprep.mubr.f32.mxu0 0.0
        %1504 = vmatmul.mubr.f32.gmra.mxu0 %v1286
        %v1505 = vpop.f32.mrf.mxu0
        %v1506 = vadd.f32 0.0, %v1505
        %v1507 = vpop.f32.mrf.mxu0
        %1508 = vmatprep.mubr.f32.mxu0 0.0
        %1509 = vmatmul.mubr.f32.gmra.mxu0 %v1287
        %v1510 = vpop.f32.mrf.mxu0
        %v1511 = vadd.f32 0.0, %v1510
        %v1512 = vpop.f32.mrf.mxu0
        %1513 = vmatprep.mubr.f32.mxu0 0.0
        %1514 = vmatmul.mubr.f32.gmra.mxu0 %v1288
        %v1515 = vpop.f32.mrf.mxu0
        %v1516 = vadd.f32 0.0, %v1515
        %v1517 = vpop.f32.mrf.mxu0
        %1518 = vmatprep.mubr.f32.mxu0 0.0
        %1519 = vmatmul.mubr.f32.gmra.mxu0 %v1289
        %v1520 = vpop.f32.mrf.mxu0
        %v1521 = vadd.f32 0.0, %v1520
        %v1522 = vpop.f32.mrf.mxu0
        %1523 = vmatprep.mubr.f32.mxu0 0.0
        %1524 = vmatmul.mubr.f32.gmra.mxu0 %v1290
        %v1525 = vpop.f32.mrf.mxu0
        %v1526 = vadd.f32 0.0, %v1525
        %v1527 = vpop.f32.mrf.mxu0
        %1528 = vmatprep.mubr.f32.mxu0 0.0
        %1529 = vmatmul.mubr.f32.gmra.mxu0 %v1291
        %v1530 = vpop.f32.mrf.mxu0
        %v1531 = vadd.f32 0.0, %v1530
        %v1532 = vpop.f32.mrf.mxu0
        %1533 = vdwg.mxu0
        %v1534 = vadd.f32 %v1102, %v1376
        %v1535 = vadd.f32 %v1107, %v1381
        %v1536 = vadd.f32 %v1112, %v1386
        %v1537 = vadd.f32 %v1117, %v1391
        %v1538 = vadd.f32 %v1122, %v1396
        %v1539 = vadd.f32 %v1127, %v1401
        %v1540 = vadd.f32 %v1132, %v1406
        %v1541 = vadd.f32 %v1137, %v1411
        %v1542 = vadd.f32 %v1142, %v1416
        %v1543 = vadd.f32 %v1147, %v1421
        %v1544 = vadd.f32 %v1152, %v1426
        %v1545 = vadd.f32 %v1157, %v1431
        %v1546 = vadd.f32 %v1162, %v1436
        %v1547 = vadd.f32 %v1167, %v1441
        %v1548 = vadd.f32 %v1172, %v1446
        %v1549 = vadd.f32 %v1177, %v1451
        %v1550 = vadd.f32 %v1182, %v1456
        %v1551 = vadd.f32 %v1187, %v1461
        %v1552 = vadd.f32 %v1192, %v1466
        %v1553 = vadd.f32 %v1197, %v1471
        %v1554 = vadd.f32 %v1202, %v1476
        %v1555 = vadd.f32 %v1207, %v1481
        %v1556 = vadd.f32 %v1212, %v1486
        %v1557 = vadd.f32 %v1217, %v1491
        %v1558 = vadd.f32 %v1222, %v1496
        %v1559 = vadd.f32 %v1227, %v1501
        %v1560 = vadd.f32 %v1232, %v1506
        %v1561 = vadd.f32 %v1237, %v1511
        %v1562 = vadd.f32 %v1242, %v1516
        %v1563 = vadd.f32 %v1247, %v1521
        %v1564 = vadd.f32 %v1252, %v1526
        %v1565 = vadd.f32 %v1257, %v1531
        %v1566 = vld [vmem:[%s680] sm:$0xff]
        %v1567 = vld [vmem:[%s680 + $0x8] sm:$0xff]
        %v1568 = vld [vmem:[%s680 + $0x18] sm:$0xff]
        %v1569 = vld [vmem:[%s680 + $0x20] sm:$0xff]
        %v1570 = vld [vmem:[%s680 + $0x30] sm:$0xff]
        %v1571 = vld [vmem:[%s680 + $0x38] sm:$0xff]
        %v1572 = vld [vmem:[%s680 + $0x48] sm:$0xff]
        %v1573 = vld [vmem:[%s680 + $0x50] sm:$0xff]
        %v1574 = vld [vmem:[%s680 + $0x60] sm:$0xff]
        %v1575 = vld [vmem:[%s680 + $0x68] sm:$0xff]
        %v1576 = vld [vmem:[%s680 + $0x78] sm:$0xff]
        %v1577 = vld [vmem:[%s680 + $0x80] sm:$0xff]
        %v1578 = vld [vmem:[%s680 + $0x90] sm:$0xff]
        %v1579 = vld [vmem:[%s680 + $0x98] sm:$0xff]
        %v1580 = vld [vmem:[%s680 + $0xa8] sm:$0xff]
        %v1581 = vld [vmem:[%s680 + $0xb0] sm:$0xff]
        %v1582 = vld [vmem:[%s680 + $0xc0] sm:$0xff]
        %v1583 = vld [vmem:[%s680 + $0xc8] sm:$0xff]
        %v1584 = vld [vmem:[%s680 + $0xd8] sm:$0xff]
        %v1585 = vld [vmem:[%s680 + $0xe0] sm:$0xff]
        %v1586 = vld [vmem:[%s680 + $0xf0] sm:$0xff]
        %v1587 = vld [vmem:[%s680 + $0xf8] sm:$0xff]
        %v1588 = vld [vmem:[%s680 + $0x108] sm:$0xff]
        %v1589 = vld [vmem:[%s680 + $0x110] sm:$0xff]
        %v1590 = vld [vmem:[%s680 + $0x120] sm:$0xff]
        %v1591 = vld [vmem:[%s680 + $0x128] sm:$0xff]
        %v1592 = vld [vmem:[%s680 + $0x138] sm:$0xff]
        %v1593 = vld [vmem:[%s680 + $0x140] sm:$0xff]
        %v1594 = vld [vmem:[%s680 + $0x150] sm:$0xff]
        %v1595 = vld [vmem:[%s680 + $0x158] sm:$0xff]
        %v1596 = vld [vmem:[%s680 + $0x168] sm:$0xff]
        %v1597 = vld [vmem:[%s680 + $0x170] sm:$0xff]
        %s1598 = scalar_lea.vmem [#allocation3], 384
        %v1599 = vld [vmem:[%s1598] sm:$0xff]
        %v1600 = vld [vmem:[%s1598 + $0x8] sm:$0xff]
        %v1601 = vld [vmem:[%s1598 + $0x10] sm:$0xff]
        %v1602 = vld [vmem:[%s1598 + $0x18] sm:$0xff]
        %v1603 = vld [vmem:[%s1598 + $0x20] sm:$0xff]
        %v1604 = vld [vmem:[%s1598 + $0x28] sm:$0xff]
        %v1605 = vld [vmem:[%s1598 + $0x30] sm:$0xff]
        %v1606 = vld [vmem:[%s1598 + $0x38] sm:$0xff]
        %v1607 = vld [vmem:[%s1598 + $0x40] sm:$0xff]
        %v1608 = vld [vmem:[%s1598 + $0x48] sm:$0xff]
        %v1609 = vld [vmem:[%s1598 + $0x50] sm:$0xff]
        %v1610 = vld [vmem:[%s1598 + $0x58] sm:$0xff]
        %v1611 = vld [vmem:[%s1598 + $0x60] sm:$0xff]
        %v1612 = vld [vmem:[%s1598 + $0x68] sm:$0xff]
        %v1613 = vld [vmem:[%s1598 + $0x70] sm:$0xff]
        %v1614 = vld [vmem:[%s1598 + $0x78] sm:$0xff]
        %1615 = vmatprep.subr.mxu0 0.0
        %1616 = vmatpush1.msra.mxu0 %v1614
        %1617 = vmatprep.subr.mxu0 0.0
        %1618 = vmatpush1.msra.mxu0 %v1613
        %1619 = vmatprep.subr.mxu0 0.0
        %1620 = vmatpush1.msra.mxu0 %v1612
        %1621 = vmatprep.subr.mxu0 0.0
        %1622 = vmatpush1.msra.mxu0 %v1611
        %1623 = vmatprep.subr.mxu0 0.0
        %1624 = vmatpush1.msra.mxu0 %v1610
        %1625 = vmatprep.subr.mxu0 0.0
        %1626 = vmatpush1.msra.mxu0 %v1609
        %1627 = vmatprep.subr.mxu0 0.0
        %1628 = vmatpush1.msra.mxu0 %v1608
        %1629 = vmatprep.subr.mxu0 0.0
        %1630 = vmatpush1.msra.mxu0 %v1607
        %1631 = vmatprep.subr.mxu0 0.0
        %1632 = vmatpush1.msra.mxu0 %v1606
        %1633 = vmatprep.subr.mxu0 0.0
        %1634 = vmatpush1.msra.mxu0 %v1605
        %1635 = vmatprep.subr.mxu0 0.0
        %1636 = vmatpush1.msra.mxu0 %v1604
        %1637 = vmatprep.subr.mxu0 0.0
        %1638 = vmatpush1.msra.mxu0 %v1603
        %1639 = vmatprep.subr.mxu0 0.0
        %1640 = vmatpush1.msra.mxu0 %v1602
        %1641 = vmatprep.subr.mxu0 0.0
        %1642 = vmatpush1.msra.mxu0 %v1601
        %1643 = vmatprep.subr.mxu0 0.0
        %1644 = vmatpush1.msra.mxu0 %v1600
        %1645 = vmatprep.subr.mxu0 0.0
        %1646 = vmatpush1.msra.mxu0 %v1599
        %1647 = vmatprep.subr.mxu0 0.0
        %1648 = vmatpush2.msra.mxu0 0.0
        %1649 = vmatprep.subr.mxu0 0.0
        %1650 = vmatpush2.msra.mxu0 0.0
        %1651 = vmatprep.subr.mxu0 0.0
        %1652 = vmatpush2.msra.mxu0 0.0
        %1653 = vmatprep.subr.mxu0 0.0
        %1654 = vmatpush2.msra.mxu0 0.0
        %1655 = vmatprep.subr.mxu0 0.0
        %1656 = vmatpush2.msra.mxu0 0.0
        %1657 = vmatprep.subr.mxu0 0.0
        %1658 = vmatpush2.msra.mxu0 0.0
        %1659 = vmatprep.subr.mxu0 0.0
        %1660 = vmatpush2.msra.mxu0 0.0
        %1661 = vmatprep.subr.mxu0 0.0
        %1662 = vmatpush2.msra.mxu0 0.0
        %1663 = vmatprep.subr.mxu0 0.0
        %1664 = vmatpush2.msra.mxu0 0.0
        %1665 = vmatprep.subr.mxu0 0.0
        %1666 = vmatpush2.msra.mxu0 0.0
        %1667 = vmatprep.subr.mxu0 0.0
        %1668 = vmatpush2.msra.mxu0 0.0
        %1669 = vmatprep.subr.mxu0 0.0
        %1670 = vmatpush2.msra.mxu0 0.0
        %1671 = vmatprep.subr.mxu0 0.0
        %1672 = vmatpush2.msra.mxu0 0.0
        %1673 = vmatprep.subr.mxu0 0.0
        %1674 = vmatpush2.msra.mxu0 0.0
        %1675 = vmatprep.subr.mxu0 0.0
        %1676 = vmatpush2.msra.mxu0 0.0
        %1677 = vmatprep.subr.mxu0 0.0
        %1678 = vmatpush2.msra.mxu0 0.0
        %1679 = vmatprep.mubr.f32.mxu0 0.0
        %1680 = vmatmul.mubr.f32.gmra.mxu0 %v1566
        %v1681 = vpop.f32.mrf.mxu0
        %v1682 = vadd.f32 0.0, %v1681
        %v1683 = vpop.f32.mrf.mxu0
        %1684 = vmatprep.mubr.f32.mxu0 0.0
        %1685 = vmatmul.mubr.f32.gmra.mxu0 %v1567
        %v1686 = vpop.f32.mrf.mxu0
        %v1687 = vadd.f32 0.0, %v1686
        %v1688 = vpop.f32.mrf.mxu0
        %1689 = vmatprep.mubr.f32.mxu0 0.0
        %1690 = vmatmul.mubr.f32.gmra.mxu0 %v1568
        %v1691 = vpop.f32.mrf.mxu0
        %v1692 = vadd.f32 0.0, %v1691
        %v1693 = vpop.f32.mrf.mxu0
        %1694 = vmatprep.mubr.f32.mxu0 0.0
        %1695 = vmatmul.mubr.f32.gmra.mxu0 %v1569
        %v1696 = vpop.f32.mrf.mxu0
        %v1697 = vadd.f32 0.0, %v1696
        %v1698 = vpop.f32.mrf.mxu0
        %1699 = vmatprep.mubr.f32.mxu0 0.0
        %1700 = vmatmul.mubr.f32.gmra.mxu0 %v1570
        %v1701 = vpop.f32.mrf.mxu0
        %v1702 = vadd.f32 0.0, %v1701
        %v1703 = vpop.f32.mrf.mxu0
        %1704 = vmatprep.mubr.f32.mxu0 0.0
        %1705 = vmatmul.mubr.f32.gmra.mxu0 %v1571
        %v1706 = vpop.f32.mrf.mxu0
        %v1707 = vadd.f32 0.0, %v1706
        %v1708 = vpop.f32.mrf.mxu0
        %1709 = vmatprep.mubr.f32.mxu0 0.0
        %1710 = vmatmul.mubr.f32.gmra.mxu0 %v1572
        %v1711 = vpop.f32.mrf.mxu0
        %v1712 = vadd.f32 0.0, %v1711
        %v1713 = vpop.f32.mrf.mxu0
        %1714 = vmatprep.mubr.f32.mxu0 0.0
        %1715 = vmatmul.mubr.f32.gmra.mxu0 %v1573
        %v1716 = vpop.f32.mrf.mxu0
        %v1717 = vadd.f32 0.0, %v1716
        %v1718 = vpop.f32.mrf.mxu0
        %1719 = vmatprep.mubr.f32.mxu0 0.0
        %1720 = vmatmul.mubr.f32.gmra.mxu0 %v1574
        %v1721 = vpop.f32.mrf.mxu0
        %v1722 = vadd.f32 0.0, %v1721
        %v1723 = vpop.f32.mrf.mxu0
        %1724 = vmatprep.mubr.f32.mxu0 0.0
        %1725 = vmatmul.mubr.f32.gmra.mxu0 %v1575
        %v1726 = vpop.f32.mrf.mxu0
        %v1727 = vadd.f32 0.0, %v1726
        %v1728 = vpop.f32.mrf.mxu0
        %1729 = vmatprep.mubr.f32.mxu0 0.0
        %1730 = vmatmul.mubr.f32.gmra.mxu0 %v1576
        %v1731 = vpop.f32.mrf.mxu0
        %v1732 = vadd.f32 0.0, %v1731
        %v1733 = vpop.f32.mrf.mxu0
        %1734 = vmatprep.mubr.f32.mxu0 0.0
        %1735 = vmatmul.mubr.f32.gmra.mxu0 %v1577
        %v1736 = vpop.f32.mrf.mxu0
        %v1737 = vadd.f32 0.0, %v1736
        %v1738 = vpop.f32.mrf.mxu0
        %1739 = vmatprep.mubr.f32.mxu0 0.0
        %1740 = vmatmul.mubr.f32.gmra.mxu0 %v1578
        %v1741 = vpop.f32.mrf.mxu0
        %v1742 = vadd.f32 0.0, %v1741
        %v1743 = vpop.f32.mrf.mxu0
        %1744 = vmatprep.mubr.f32.mxu0 0.0
        %1745 = vmatmul.mubr.f32.gmra.mxu0 %v1579
        %v1746 = vpop.f32.mrf.mxu0
        %v1747 = vadd.f32 0.0, %v1746
        %v1748 = vpop.f32.mrf.mxu0
        %1749 = vmatprep.mubr.f32.mxu0 0.0
        %1750 = vmatmul.mubr.f32.gmra.mxu0 %v1580
        %v1751 = vpop.f32.mrf.mxu0
        %v1752 = vadd.f32 0.0, %v1751
        %v1753 = vpop.f32.mrf.mxu0
        %1754 = vmatprep.mubr.f32.mxu0 0.0
        %1755 = vmatmul.mubr.f32.gmra.mxu0 %v1581
        %v1756 = vpop.f32.mrf.mxu0
        %v1757 = vadd.f32 0.0, %v1756
        %v1758 = vpop.f32.mrf.mxu0
        %1759 = vmatprep.mubr.f32.mxu0 0.0
        %1760 = vmatmul.mubr.f32.gmra.mxu0 %v1582
        %v1761 = vpop.f32.mrf.mxu0
        %v1762 = vadd.f32 0.0, %v1761
        %v1763 = vpop.f32.mrf.mxu0
        %1764 = vmatprep.mubr.f32.mxu0 0.0
        %1765 = vmatmul.mubr.f32.gmra.mxu0 %v1583
        %v1766 = vpop.f32.mrf.mxu0
        %v1767 = vadd.f32 0.0, %v1766
        %v1768 = vpop.f32.mrf.mxu0
        %1769 = vmatprep.mubr.f32.mxu0 0.0
        %1770 = vmatmul.mubr.f32.gmra.mxu0 %v1584
        %v1771 = vpop.f32.mrf.mxu0
        %v1772 = vadd.f32 0.0, %v1771
        %v1773 = vpop.f32.mrf.mxu0
        %1774 = vmatprep.mubr.f32.mxu0 0.0
        %1775 = vmatmul.mubr.f32.gmra.mxu0 %v1585
        %v1776 = vpop.f32.mrf.mxu0
        %v1777 = vadd.f32 0.0, %v1776
        %v1778 = vpop.f32.mrf.mxu0
        %1779 = vmatprep.mubr.f32.mxu0 0.0
        %1780 = vmatmul.mubr.f32.gmra.mxu0 %v1586
        %v1781 = vpop.f32.mrf.mxu0
        %v1782 = vadd.f32 0.0, %v1781
        %v1783 = vpop.f32.mrf.mxu0
        %1784 = vmatprep.mubr.f32.mxu0 0.0
        %1785 = vmatmul.mubr.f32.gmra.mxu0 %v1587
        %v1786 = vpop.f32.mrf.mxu0
        %v1787 = vadd.f32 0.0, %v1786
        %v1788 = vpop.f32.mrf.mxu0
        %1789 = vmatprep.mubr.f32.mxu0 0.0
        %1790 = vmatmul.mubr.f32.gmra.mxu0 %v1588
        %v1791 = vpop.f32.mrf.mxu0
        %v1792 = vadd.f32 0.0, %v1791
        %v1793 = vpop.f32.mrf.mxu0
        %1794 = vmatprep.mubr.f32.mxu0 0.0
        %1795 = vmatmul.mubr.f32.gmra.mxu0 %v1589
        %v1796 = vpop.f32.mrf.mxu0
        %v1797 = vadd.f32 0.0, %v1796
        %v1798 = vpop.f32.mrf.mxu0
        %1799 = vmatprep.mubr.f32.mxu0 0.0
        %1800 = vmatmul.mubr.f32.gmra.mxu0 %v1590
        %v1801 = vpop.f32.mrf.mxu0
        %v1802 = vadd.f32 0.0, %v1801
        %v1803 = vpop.f32.mrf.mxu0
        %1804 = vmatprep.mubr.f32.mxu0 0.0
        %1805 = vmatmul.mubr.f32.gmra.mxu0 %v1591
        %v1806 = vpop.f32.mrf.mxu0
        %v1807 = vadd.f32 0.0, %v1806
        %v1808 = vpop.f32.mrf.mxu0
        %1809 = vmatprep.mubr.f32.mxu0 0.0
        %1810 = vmatmul.mubr.f32.gmra.mxu0 %v1592
        %v1811 = vpop.f32.mrf.mxu0
        %v1812 = vadd.f32 0.0, %v1811
        %v1813 = vpop.f32.mrf.mxu0
        %1814 = vmatprep.mubr.f32.mxu0 0.0
        %1815 = vmatmul.mubr.f32.gmra.mxu0 %v1593
        %v1816 = vpop.f32.mrf.mxu0
        %v1817 = vadd.f32 0.0, %v1816
        %v1818 = vpop.f32.mrf.mxu0
        %1819 = vmatprep.mubr.f32.mxu0 0.0
        %1820 = vmatmul.mubr.f32.gmra.mxu0 %v1594
        %v1821 = vpop.f32.mrf.mxu0
        %v1822 = vadd.f32 0.0, %v1821
        %v1823 = vpop.f32.mrf.mxu0
        %1824 = vmatprep.mubr.f32.mxu0 0.0
        %1825 = vmatmul.mubr.f32.gmra.mxu0 %v1595
        %v1826 = vpop.f32.mrf.mxu0
        %v1827 = vadd.f32 0.0, %v1826
        %v1828 = vpop.f32.mrf.mxu0
        %1829 = vmatprep.mubr.f32.mxu0 0.0
        %1830 = vmatmul.mubr.f32.gmra.mxu0 %v1596
        %v1831 = vpop.f32.mrf.mxu0
        %v1832 = vadd.f32 0.0, %v1831
        %v1833 = vpop.f32.mrf.mxu0
        %1834 = vmatprep.mubr.f32.mxu0 0.0
        %1835 = vmatmul.mubr.f32.gmra.mxu0 %v1597
        %v1836 = vpop.f32.mrf.mxu0
        %v1837 = vadd.f32 0.0, %v1836
        %v1838 = vpop.f32.mrf.mxu0
        %1839 = vdwg.mxu0
        %v1840 = vadd.f32 %v1534, %v1682
        %v1841 = vadd.f32 %v1535, %v1687
        %v1842 = vadd.f32 %v1536, %v1692
        %v1843 = vadd.f32 %v1537, %v1697
        %v1844 = vadd.f32 %v1538, %v1702
        %v1845 = vadd.f32 %v1539, %v1707
        %v1846 = vadd.f32 %v1540, %v1712
        %v1847 = vadd.f32 %v1541, %v1717
        %v1848 = vadd.f32 %v1542, %v1722
        %v1849 = vadd.f32 %v1543, %v1727
        %v1850 = vadd.f32 %v1544, %v1732
        %v1851 = vadd.f32 %v1545, %v1737
        %v1852 = vadd.f32 %v1546, %v1742
        %v1853 = vadd.f32 %v1547, %v1747
        %v1854 = vadd.f32 %v1548, %v1752
        %v1855 = vadd.f32 %v1549, %v1757
        %v1856 = vadd.f32 %v1550, %v1762
        %v1857 = vadd.f32 %v1551, %v1767
        %v1858 = vadd.f32 %v1552, %v1772
        %v1859 = vadd.f32 %v1553, %v1777
        %v1860 = vadd.f32 %v1554, %v1782
        %v1861 = vadd.f32 %v1555, %v1787
        %v1862 = vadd.f32 %v1556, %v1792
        %v1863 = vadd.f32 %v1557, %v1797
        %v1864 = vadd.f32 %v1558, %v1802
        %v1865 = vadd.f32 %v1559, %v1807
        %v1866 = vadd.f32 %v1560, %v1812
        %v1867 = vadd.f32 %v1561, %v1817
        %v1868 = vadd.f32 %v1562, %v1822
        %v1869 = vadd.f32 %v1563, %v1827
        %v1870 = vadd.f32 %v1564, %v1832
        %v1871 = vadd.f32 %v1565, %v1837
        %v1872 = vld [vmem:[%s680 + $0x1] sm:$0xff]
        %v1873 = vld [vmem:[%s680 + $0x9] sm:$0xff]
        %v1874 = vld [vmem:[%s680 + $0x19] sm:$0xff]
        %v1875 = vld [vmem:[%s680 + $0x21] sm:$0xff]
        %v1876 = vld [vmem:[%s680 + $0x31] sm:$0xff]
        %v1877 = vld [vmem:[%s680 + $0x39] sm:$0xff]
        %v1878 = vld [vmem:[%s680 + $0x49] sm:$0xff]
        %v1879 = vld [vmem:[%s680 + $0x51] sm:$0xff]
        %v1880 = vld [vmem:[%s680 + $0x61] sm:$0xff]
        %v1881 = vld [vmem:[%s680 + $0x69] sm:$0xff]
        %v1882 = vld [vmem:[%s680 + $0x79] sm:$0xff]
        %v1883 = vld [vmem:[%s680 + $0x81] sm:$0xff]
        %v1884 = vld [vmem:[%s680 + $0x91] sm:$0xff]
        %v1885 = vld [vmem:[%s680 + $0x99] sm:$0xff]
        %v1886 = vld [vmem:[%s680 + $0xa9] sm:$0xff]
        %v1887 = vld [vmem:[%s680 + $0xb1] sm:$0xff]
        %v1888 = vld [vmem:[%s680 + $0xc1] sm:$0xff]
        %v1889 = vld [vmem:[%s680 + $0xc9] sm:$0xff]
        %v1890 = vld [vmem:[%s680 + $0xd9] sm:$0xff]
        %v1891 = vld [vmem:[%s680 + $0xe1] sm:$0xff]
        %v1892 = vld [vmem:[%s680 + $0xf1] sm:$0xff]
        %v1893 = vld [vmem:[%s680 + $0xf9] sm:$0xff]
        %v1894 = vld [vmem:[%s680 + $0x109] sm:$0xff]
        %v1895 = vld [vmem:[%s680 + $0x111] sm:$0xff]
        %v1896 = vld [vmem:[%s680 + $0x121] sm:$0xff]
        %v1897 = vld [vmem:[%s680 + $0x129] sm:$0xff]
        %v1898 = vld [vmem:[%s680 + $0x139] sm:$0xff]
        %v1899 = vld [vmem:[%s680 + $0x141] sm:$0xff]
        %v1900 = vld [vmem:[%s680 + $0x151] sm:$0xff]
        %v1901 = vld [vmem:[%s680 + $0x159] sm:$0xff]
        %v1902 = vld [vmem:[%s680 + $0x169] sm:$0xff]
        %v1903 = vld [vmem:[%s680 + $0x171] sm:$0xff]
        %s1904 = scalar_lea.vmem [#allocation3], 512
        %v1905 = vld [vmem:[%s1904] sm:$0xff]
        %v1906 = vld [vmem:[%s1904 + $0x8] sm:$0xff]
        %v1907 = vld [vmem:[%s1904 + $0x10] sm:$0xff]
        %v1908 = vld [vmem:[%s1904 + $0x18] sm:$0xff]
        %v1909 = vld [vmem:[%s1904 + $0x20] sm:$0xff]
        %v1910 = vld [vmem:[%s1904 + $0x28] sm:$0xff]
        %v1911 = vld [vmem:[%s1904 + $0x30] sm:$0xff]
        %v1912 = vld [vmem:[%s1904 + $0x38] sm:$0xff]
        %v1913 = vld [vmem:[%s1904 + $0x40] sm:$0xff]
        %v1914 = vld [vmem:[%s1904 + $0x48] sm:$0xff]
        %v1915 = vld [vmem:[%s1904 + $0x50] sm:$0xff]
        %v1916 = vld [vmem:[%s1904 + $0x58] sm:$0xff]
        %v1917 = vld [vmem:[%s1904 + $0x60] sm:$0xff]
        %v1918 = vld [vmem:[%s1904 + $0x68] sm:$0xff]
        %v1919 = vld [vmem:[%s1904 + $0x70] sm:$0xff]
        %v1920 = vld [vmem:[%s1904 + $0x78] sm:$0xff]
        %1921 = vmatprep.subr.mxu0 0.0
        %1922 = vmatpush1.msra.mxu0 %v1920
        %1923 = vmatprep.subr.mxu0 0.0
        %1924 = vmatpush1.msra.mxu0 %v1919
        %1925 = vmatprep.subr.mxu0 0.0
        %1926 = vmatpush1.msra.mxu0 %v1918
        %1927 = vmatprep.subr.mxu0 0.0
        %1928 = vmatpush1.msra.mxu0 %v1917
        %1929 = vmatprep.subr.mxu0 0.0
        %1930 = vmatpush1.msra.mxu0 %v1916
        %1931 = vmatprep.subr.mxu0 0.0
        %1932 = vmatpush1.msra.mxu0 %v1915
        %1933 = vmatprep.subr.mxu0 0.0
        %1934 = vmatpush1.msra.mxu0 %v1914
        %1935 = vmatprep.subr.mxu0 0.0
        %1936 = vmatpush1.msra.mxu0 %v1913
        %1937 = vmatprep.subr.mxu0 0.0
        %1938 = vmatpush1.msra.mxu0 %v1912
        %1939 = vmatprep.subr.mxu0 0.0
        %1940 = vmatpush1.msra.mxu0 %v1911
        %1941 = vmatprep.subr.mxu0 0.0
        %1942 = vmatpush1.msra.mxu0 %v1910
        %1943 = vmatprep.subr.mxu0 0.0
        %1944 = vmatpush1.msra.mxu0 %v1909
        %1945 = vmatprep.subr.mxu0 0.0
        %1946 = vmatpush1.msra.mxu0 %v1908
        %1947 = vmatprep.subr.mxu0 0.0
        %1948 = vmatpush1.msra.mxu0 %v1907
        %1949 = vmatprep.subr.mxu0 0.0
        %1950 = vmatpush1.msra.mxu0 %v1906
        %1951 = vmatprep.subr.mxu0 0.0
        %1952 = vmatpush1.msra.mxu0 %v1905
        %1953 = vmatprep.subr.mxu0 0.0
        %1954 = vmatpush2.msra.mxu0 0.0
        %1955 = vmatprep.subr.mxu0 0.0
        %1956 = vmatpush2.msra.mxu0 0.0
        %1957 = vmatprep.subr.mxu0 0.0
        %1958 = vmatpush2.msra.mxu0 0.0
        %1959 = vmatprep.subr.mxu0 0.0
        %1960 = vmatpush2.msra.mxu0 0.0
        %1961 = vmatprep.subr.mxu0 0.0
        %1962 = vmatpush2.msra.mxu0 0.0
        %1963 = vmatprep.subr.mxu0 0.0
        %1964 = vmatpush2.msra.mxu0 0.0
        %1965 = vmatprep.subr.mxu0 0.0
        %1966 = vmatpush2.msra.mxu0 0.0
        %1967 = vmatprep.subr.mxu0 0.0
        %1968 = vmatpush2.msra.mxu0 0.0
        %1969 = vmatprep.subr.mxu0 0.0
        %1970 = vmatpush2.msra.mxu0 0.0
        %1971 = vmatprep.subr.mxu0 0.0
        %1972 = vmatpush2.msra.mxu0 0.0
        %1973 = vmatprep.subr.mxu0 0.0
        %1974 = vmatpush2.msra.mxu0 0.0
        %1975 = vmatprep.subr.mxu0 0.0
        %1976 = vmatpush2.msra.mxu0 0.0
        %1977 = vmatprep.subr.mxu0 0.0
        %1978 = vmatpush2.msra.mxu0 0.0
        %1979 = vmatprep.subr.mxu0 0.0
        %1980 = vmatpush2.msra.mxu0 0.0
        %1981 = vmatprep.subr.mxu0 0.0
        %1982 = vmatpush2.msra.mxu0 0.0
        %1983 = vmatprep.subr.mxu0 0.0
        %1984 = vmatpush2.msra.mxu0 0.0
        %1985 = vmatprep.mubr.f32.mxu0 0.0
        %1986 = vmatmul.mubr.f32.gmra.mxu0 %v1872
        %v1987 = vpop.f32.mrf.mxu0
        %v1988 = vadd.f32 0.0, %v1987
        %v1989 = vpop.f32.mrf.mxu0
        %1990 = vmatprep.mubr.f32.mxu0 0.0
        %1991 = vmatmul.mubr.f32.gmra.mxu0 %v1873
        %v1992 = vpop.f32.mrf.mxu0
        %v1993 = vadd.f32 0.0, %v1992
        %v1994 = vpop.f32.mrf.mxu0
        %1995 = vmatprep.mubr.f32.mxu0 0.0
        %1996 = vmatmul.mubr.f32.gmra.mxu0 %v1874
        %v1997 = vpop.f32.mrf.mxu0
        %v1998 = vadd.f32 0.0, %v1997
        %v1999 = vpop.f32.mrf.mxu0
        %2000 = vmatprep.mubr.f32.mxu0 0.0
        %2001 = vmatmul.mubr.f32.gmra.mxu0 %v1875
        %v2002 = vpop.f32.mrf.mxu0
        %v2003 = vadd.f32 0.0, %v2002
        %v2004 = vpop.f32.mrf.mxu0
        %2005 = vmatprep.mubr.f32.mxu0 0.0
        %2006 = vmatmul.mubr.f32.gmra.mxu0 %v1876
        %v2007 = vpop.f32.mrf.mxu0
        %v2008 = vadd.f32 0.0, %v2007
        %v2009 = vpop.f32.mrf.mxu0
        %2010 = vmatprep.mubr.f32.mxu0 0.0
        %2011 = vmatmul.mubr.f32.gmra.mxu0 %v1877
        %v2012 = vpop.f32.mrf.mxu0
        %v2013 = vadd.f32 0.0, %v2012
        %v2014 = vpop.f32.mrf.mxu0
        %2015 = vmatprep.mubr.f32.mxu0 0.0
        %2016 = vmatmul.mubr.f32.gmra.mxu0 %v1878
        %v2017 = vpop.f32.mrf.mxu0
        %v2018 = vadd.f32 0.0, %v2017
        %v2019 = vpop.f32.mrf.mxu0
        %2020 = vmatprep.mubr.f32.mxu0 0.0
        %2021 = vmatmul.mubr.f32.gmra.mxu0 %v1879
        %v2022 = vpop.f32.mrf.mxu0
        %v2023 = vadd.f32 0.0, %v2022
        %v2024 = vpop.f32.mrf.mxu0
        %2025 = vmatprep.mubr.f32.mxu0 0.0
        %2026 = vmatmul.mubr.f32.gmra.mxu0 %v1880
        %v2027 = vpop.f32.mrf.mxu0
        %v2028 = vadd.f32 0.0, %v2027
        %v2029 = vpop.f32.mrf.mxu0
        %2030 = vmatprep.mubr.f32.mxu0 0.0
        %2031 = vmatmul.mubr.f32.gmra.mxu0 %v1881
        %v2032 = vpop.f32.mrf.mxu0
        %v2033 = vadd.f32 0.0, %v2032
        %v2034 = vpop.f32.mrf.mxu0
        %2035 = vmatprep.mubr.f32.mxu0 0.0
        %2036 = vmatmul.mubr.f32.gmra.mxu0 %v1882
        %v2037 = vpop.f32.mrf.mxu0
        %v2038 = vadd.f32 0.0, %v2037
        %v2039 = vpop.f32.mrf.mxu0
        %2040 = vmatprep.mubr.f32.mxu0 0.0
        %2041 = vmatmul.mubr.f32.gmra.mxu0 %v1883
        %v2042 = vpop.f32.mrf.mxu0
        %v2043 = vadd.f32 0.0, %v2042
        %v2044 = vpop.f32.mrf.mxu0
        %2045 = vmatprep.mubr.f32.mxu0 0.0
        %2046 = vmatmul.mubr.f32.gmra.mxu0 %v1884
        %v2047 = vpop.f32.mrf.mxu0
        %v2048 = vadd.f32 0.0, %v2047
        %v2049 = vpop.f32.mrf.mxu0
        %2050 = vmatprep.mubr.f32.mxu0 0.0
        %2051 = vmatmul.mubr.f32.gmra.mxu0 %v1885
        %v2052 = vpop.f32.mrf.mxu0
        %v2053 = vadd.f32 0.0, %v2052
        %v2054 = vpop.f32.mrf.mxu0
        %2055 = vmatprep.mubr.f32.mxu0 0.0
        %2056 = vmatmul.mubr.f32.gmra.mxu0 %v1886
        %v2057 = vpop.f32.mrf.mxu0
        %v2058 = vadd.f32 0.0, %v2057
        %v2059 = vpop.f32.mrf.mxu0
        %2060 = vmatprep.mubr.f32.mxu0 0.0
        %2061 = vmatmul.mubr.f32.gmra.mxu0 %v1887
        %v2062 = vpop.f32.mrf.mxu0
        %v2063 = vadd.f32 0.0, %v2062
        %v2064 = vpop.f32.mrf.mxu0
        %2065 = vmatprep.mubr.f32.mxu0 0.0
        %2066 = vmatmul.mubr.f32.gmra.mxu0 %v1888
        %v2067 = vpop.f32.mrf.mxu0
        %v2068 = vadd.f32 0.0, %v2067
        %v2069 = vpop.f32.mrf.mxu0
        %2070 = vmatprep.mubr.f32.mxu0 0.0
        %2071 = vmatmul.mubr.f32.gmra.mxu0 %v1889
        %v2072 = vpop.f32.mrf.mxu0
        %v2073 = vadd.f32 0.0, %v2072
        %v2074 = vpop.f32.mrf.mxu0
        %2075 = vmatprep.mubr.f32.mxu0 0.0
        %2076 = vmatmul.mubr.f32.gmra.mxu0 %v1890
        %v2077 = vpop.f32.mrf.mxu0
        %v2078 = vadd.f32 0.0, %v2077
        %v2079 = vpop.f32.mrf.mxu0
        %2080 = vmatprep.mubr.f32.mxu0 0.0
        %2081 = vmatmul.mubr.f32.gmra.mxu0 %v1891
        %v2082 = vpop.f32.mrf.mxu0
        %v2083 = vadd.f32 0.0, %v2082
        %v2084 = vpop.f32.mrf.mxu0
        %2085 = vmatprep.mubr.f32.mxu0 0.0
        %2086 = vmatmul.mubr.f32.gmra.mxu0 %v1892
        %v2087 = vpop.f32.mrf.mxu0
        %v2088 = vadd.f32 0.0, %v2087
        %v2089 = vpop.f32.mrf.mxu0
        %2090 = vmatprep.mubr.f32.mxu0 0.0
        %2091 = vmatmul.mubr.f32.gmra.mxu0 %v1893
        %v2092 = vpop.f32.mrf.mxu0
        %v2093 = vadd.f32 0.0, %v2092
        %v2094 = vpop.f32.mrf.mxu0
        %2095 = vmatprep.mubr.f32.mxu0 0.0
        %2096 = vmatmul.mubr.f32.gmra.mxu0 %v1894
        %v2097 = vpop.f32.mrf.mxu0
        %v2098 = vadd.f32 0.0, %v2097
        %v2099 = vpop.f32.mrf.mxu0
        %2100 = vmatprep.mubr.f32.mxu0 0.0
        %2101 = vmatmul.mubr.f32.gmra.mxu0 %v1895
        %v2102 = vpop.f32.mrf.mxu0
        %v2103 = vadd.f32 0.0, %v2102
        %v2104 = vpop.f32.mrf.mxu0
        %2105 = vmatprep.mubr.f32.mxu0 0.0
        %2106 = vmatmul.mubr.f32.gmra.mxu0 %v1896
        %v2107 = vpop.f32.mrf.mxu0
        %v2108 = vadd.f32 0.0, %v2107
        %v2109 = vpop.f32.mrf.mxu0
        %2110 = vmatprep.mubr.f32.mxu0 0.0
        %2111 = vmatmul.mubr.f32.gmra.mxu0 %v1897
        %v2112 = vpop.f32.mrf.mxu0
        %v2113 = vadd.f32 0.0, %v2112
        %v2114 = vpop.f32.mrf.mxu0
        %2115 = vmatprep.mubr.f32.mxu0 0.0
        %2116 = vmatmul.mubr.f32.gmra.mxu0 %v1898
        %v2117 = vpop.f32.mrf.mxu0
        %v2118 = vadd.f32 0.0, %v2117
        %v2119 = vpop.f32.mrf.mxu0
        %2120 = vmatprep.mubr.f32.mxu0 0.0
        %2121 = vmatmul.mubr.f32.gmra.mxu0 %v1899
        %v2122 = vpop.f32.mrf.mxu0
        %v2123 = vadd.f32 0.0, %v2122
        %v2124 = vpop.f32.mrf.mxu0
        %2125 = vmatprep.mubr.f32.mxu0 0.0
        %2126 = vmatmul.mubr.f32.gmra.mxu0 %v1900
        %v2127 = vpop.f32.mrf.mxu0
        %v2128 = vadd.f32 0.0, %v2127
        %v2129 = vpop.f32.mrf.mxu0
        %2130 = vmatprep.mubr.f32.mxu0 0.0
        %2131 = vmatmul.mubr.f32.gmra.mxu0 %v1901
        %v2132 = vpop.f32.mrf.mxu0
        %v2133 = vadd.f32 0.0, %v2132
        %v2134 = vpop.f32.mrf.mxu0
        %2135 = vmatprep.mubr.f32.mxu0 0.0
        %2136 = vmatmul.mubr.f32.gmra.mxu0 %v1902
        %v2137 = vpop.f32.mrf.mxu0
        %v2138 = vadd.f32 0.0, %v2137
        %v2139 = vpop.f32.mrf.mxu0
        %2140 = vmatprep.mubr.f32.mxu0 0.0
        %2141 = vmatmul.mubr.f32.gmra.mxu0 %v1903
        %v2142 = vpop.f32.mrf.mxu0
        %v2143 = vadd.f32 0.0, %v2142
        %v2144 = vpop.f32.mrf.mxu0
        %2145 = vdwg.mxu0
        %v2146 = vadd.f32 %v1840, %v1988
        %v2147 = vadd.f32 %v1841, %v1993
        %v2148 = vadd.f32 %v1842, %v1998
        %v2149 = vadd.f32 %v1843, %v2003
        %v2150 = vadd.f32 %v1844, %v2008
        %v2151 = vadd.f32 %v1845, %v2013
        %v2152 = vadd.f32 %v1846, %v2018
        %v2153 = vadd.f32 %v1847, %v2023
        %v2154 = vadd.f32 %v1848, %v2028
        %v2155 = vadd.f32 %v1849, %v2033
        %v2156 = vadd.f32 %v1850, %v2038
        %v2157 = vadd.f32 %v1851, %v2043
        %v2158 = vadd.f32 %v1852, %v2048
        %v2159 = vadd.f32 %v1853, %v2053
        %v2160 = vadd.f32 %v1854, %v2058
        %v2161 = vadd.f32 %v1855, %v2063
        %v2162 = vadd.f32 %v1856, %v2068
        %v2163 = vadd.f32 %v1857, %v2073
        %v2164 = vadd.f32 %v1858, %v2078
        %v2165 = vadd.f32 %v1859, %v2083
        %v2166 = vadd.f32 %v1860, %v2088
        %v2167 = vadd.f32 %v1861, %v2093
        %v2168 = vadd.f32 %v1862, %v2098
        %v2169 = vadd.f32 %v1863, %v2103
        %v2170 = vadd.f32 %v1864, %v2108
        %v2171 = vadd.f32 %v1865, %v2113
        %v2172 = vadd.f32 %v1866, %v2118
        %v2173 = vadd.f32 %v1867, %v2123
        %v2174 = vadd.f32 %v1868, %v2128
        %v2175 = vadd.f32 %v1869, %v2133
        %v2176 = vadd.f32 %v1870, %v2138
        %v2177 = vadd.f32 %v1871, %v2143
        %v2178 = vld [vmem:[%s680 + $0x2] sm:$0xff]
        %v2179 = vld [vmem:[%s680 + $0xa] sm:$0xff]
        %v2180 = vld [vmem:[%s680 + $0x1a] sm:$0xff]
        %v2181 = vld [vmem:[%s680 + $0x22] sm:$0xff]
        %v2182 = vld [vmem:[%s680 + $0x32] sm:$0xff]
        %v2183 = vld [vmem:[%s680 + $0x3a] sm:$0xff]
        %v2184 = vld [vmem:[%s680 + $0x4a] sm:$0xff]
        %v2185 = vld [vmem:[%s680 + $0x52] sm:$0xff]
        %v2186 = vld [vmem:[%s680 + $0x62] sm:$0xff]
        %v2187 = vld [vmem:[%s680 + $0x6a] sm:$0xff]
        %v2188 = vld [vmem:[%s680 + $0x7a] sm:$0xff]
        %v2189 = vld [vmem:[%s680 + $0x82] sm:$0xff]
        %v2190 = vld [vmem:[%s680 + $0x92] sm:$0xff]
        %v2191 = vld [vmem:[%s680 + $0x9a] sm:$0xff]
        %v2192 = vld [vmem:[%s680 + $0xaa] sm:$0xff]
        %v2193 = vld [vmem:[%s680 + $0xb2] sm:$0xff]
        %v2194 = vld [vmem:[%s680 + $0xc2] sm:$0xff]
        %v2195 = vld [vmem:[%s680 + $0xca] sm:$0xff]
        %v2196 = vld [vmem:[%s680 + $0xda] sm:$0xff]
        %v2197 = vld [vmem:[%s680 + $0xe2] sm:$0xff]
        %v2198 = vld [vmem:[%s680 + $0xf2] sm:$0xff]
        %v2199 = vld [vmem:[%s680 + $0xfa] sm:$0xff]
        %v2200 = vld [vmem:[%s680 + $0x10a] sm:$0xff]
        %v2201 = vld [vmem:[%s680 + $0x112] sm:$0xff]
        %v2202 = vld [vmem:[%s680 + $0x122] sm:$0xff]
        %v2203 = vld [vmem:[%s680 + $0x12a] sm:$0xff]
        %v2204 = vld [vmem:[%s680 + $0x13a] sm:$0xff]
        %v2205 = vld [vmem:[%s680 + $0x142] sm:$0xff]
        %v2206 = vld [vmem:[%s680 + $0x152] sm:$0xff]
        %v2207 = vld [vmem:[%s680 + $0x15a] sm:$0xff]
        %v2208 = vld [vmem:[%s680 + $0x16a] sm:$0xff]
        %v2209 = vld [vmem:[%s680 + $0x172] sm:$0xff]
        %s2210 = scalar_lea.vmem [#allocation3], 640
        %v2211 = vld [vmem:[%s2210] sm:$0xff]
        %v2212 = vld [vmem:[%s2210 + $0x8] sm:$0xff]
        %v2213 = vld [vmem:[%s2210 + $0x10] sm:$0xff]
        %v2214 = vld [vmem:[%s2210 + $0x18] sm:$0xff]
        %v2215 = vld [vmem:[%s2210 + $0x20] sm:$0xff]
        %v2216 = vld [vmem:[%s2210 + $0x28] sm:$0xff]
        %v2217 = vld [vmem:[%s2210 + $0x30] sm:$0xff]
        %v2218 = vld [vmem:[%s2210 + $0x38] sm:$0xff]
        %v2219 = vld [vmem:[%s2210 + $0x40] sm:$0xff]
        %v2220 = vld [vmem:[%s2210 + $0x48] sm:$0xff]
        %v2221 = vld [vmem:[%s2210 + $0x50] sm:$0xff]
        %v2222 = vld [vmem:[%s2210 + $0x58] sm:$0xff]
        %v2223 = vld [vmem:[%s2210 + $0x60] sm:$0xff]
        %v2224 = vld [vmem:[%s2210 + $0x68] sm:$0xff]
        %v2225 = vld [vmem:[%s2210 + $0x70] sm:$0xff]
        %v2226 = vld [vmem:[%s2210 + $0x78] sm:$0xff]
        %2227 = vmatprep.subr.mxu0 0.0
        %2228 = vmatpush1.msra.mxu0 %v2226
        %2229 = vmatprep.subr.mxu0 0.0
        %2230 = vmatpush1.msra.mxu0 %v2225
        %2231 = vmatprep.subr.mxu0 0.0
        %2232 = vmatpush1.msra.mxu0 %v2224
        %2233 = vmatprep.subr.mxu0 0.0
        %2234 = vmatpush1.msra.mxu0 %v2223
        %2235 = vmatprep.subr.mxu0 0.0
        %2236 = vmatpush1.msra.mxu0 %v2222
        %2237 = vmatprep.subr.mxu0 0.0
        %2238 = vmatpush1.msra.mxu0 %v2221
        %2239 = vmatprep.subr.mxu0 0.0
        %2240 = vmatpush1.msra.mxu0 %v2220
        %2241 = vmatprep.subr.mxu0 0.0
        %2242 = vmatpush1.msra.mxu0 %v2219
        %2243 = vmatprep.subr.mxu0 0.0
        %2244 = vmatpush1.msra.mxu0 %v2218
        %2245 = vmatprep.subr.mxu0 0.0
        %2246 = vmatpush1.msra.mxu0 %v2217
        %2247 = vmatprep.subr.mxu0 0.0
        %2248 = vmatpush1.msra.mxu0 %v2216
        %2249 = vmatprep.subr.mxu0 0.0
        %2250 = vmatpush1.msra.mxu0 %v2215
        %2251 = vmatprep.subr.mxu0 0.0
        %2252 = vmatpush1.msra.mxu0 %v2214
        %2253 = vmatprep.subr.mxu0 0.0
        %2254 = vmatpush1.msra.mxu0 %v2213
        %2255 = vmatprep.subr.mxu0 0.0
        %2256 = vmatpush1.msra.mxu0 %v2212
        %2257 = vmatprep.subr.mxu0 0.0
        %2258 = vmatpush1.msra.mxu0 %v2211
        %2259 = vmatprep.subr.mxu0 0.0
        %2260 = vmatpush2.msra.mxu0 0.0
        %2261 = vmatprep.subr.mxu0 0.0
        %2262 = vmatpush2.msra.mxu0 0.0
        %2263 = vmatprep.subr.mxu0 0.0
        %2264 = vmatpush2.msra.mxu0 0.0
        %2265 = vmatprep.subr.mxu0 0.0
        %2266 = vmatpush2.msra.mxu0 0.0
        %2267 = vmatprep.subr.mxu0 0.0
        %2268 = vmatpush2.msra.mxu0 0.0
        %2269 = vmatprep.subr.mxu0 0.0
        %2270 = vmatpush2.msra.mxu0 0.0
        %2271 = vmatprep.subr.mxu0 0.0
        %2272 = vmatpush2.msra.mxu0 0.0
        %2273 = vmatprep.subr.mxu0 0.0
        %2274 = vmatpush2.msra.mxu0 0.0
        %2275 = vmatprep.subr.mxu0 0.0
        %2276 = vmatpush2.msra.mxu0 0.0
        %2277 = vmatprep.subr.mxu0 0.0
        %2278 = vmatpush2.msra.mxu0 0.0
        %2279 = vmatprep.subr.mxu0 0.0
        %2280 = vmatpush2.msra.mxu0 0.0
        %2281 = vmatprep.subr.mxu0 0.0
        %2282 = vmatpush2.msra.mxu0 0.0
        %2283 = vmatprep.subr.mxu0 0.0
        %2284 = vmatpush2.msra.mxu0 0.0
        %2285 = vmatprep.subr.mxu0 0.0
        %2286 = vmatpush2.msra.mxu0 0.0
        %2287 = vmatprep.subr.mxu0 0.0
        %2288 = vmatpush2.msra.mxu0 0.0
        %2289 = vmatprep.subr.mxu0 0.0
        %2290 = vmatpush2.msra.mxu0 0.0
        %2291 = vmatprep.mubr.f32.mxu0 0.0
        %2292 = vmatmul.mubr.f32.gmra.mxu0 %v2178
        %v2293 = vpop.f32.mrf.mxu0
        %v2294 = vadd.f32 0.0, %v2293
        %v2295 = vpop.f32.mrf.mxu0
        %2296 = vmatprep.mubr.f32.mxu0 0.0
        %2297 = vmatmul.mubr.f32.gmra.mxu0 %v2179
        %v2298 = vpop.f32.mrf.mxu0
        %v2299 = vadd.f32 0.0, %v2298
        %v2300 = vpop.f32.mrf.mxu0
        %2301 = vmatprep.mubr.f32.mxu0 0.0
        %2302 = vmatmul.mubr.f32.gmra.mxu0 %v2180
        %v2303 = vpop.f32.mrf.mxu0
        %v2304 = vadd.f32 0.0, %v2303
        %v2305 = vpop.f32.mrf.mxu0
        %2306 = vmatprep.mubr.f32.mxu0 0.0
        %2307 = vmatmul.mubr.f32.gmra.mxu0 %v2181
        %v2308 = vpop.f32.mrf.mxu0
        %v2309 = vadd.f32 0.0, %v2308
        %v2310 = vpop.f32.mrf.mxu0
        %2311 = vmatprep.mubr.f32.mxu0 0.0
        %2312 = vmatmul.mubr.f32.gmra.mxu0 %v2182
        %v2313 = vpop.f32.mrf.mxu0
        %v2314 = vadd.f32 0.0, %v2313
        %v2315 = vpop.f32.mrf.mxu0
        %2316 = vmatprep.mubr.f32.mxu0 0.0
        %2317 = vmatmul.mubr.f32.gmra.mxu0 %v2183
        %v2318 = vpop.f32.mrf.mxu0
        %v2319 = vadd.f32 0.0, %v2318
        %v2320 = vpop.f32.mrf.mxu0
        %2321 = vmatprep.mubr.f32.mxu0 0.0
        %2322 = vmatmul.mubr.f32.gmra.mxu0 %v2184
        %v2323 = vpop.f32.mrf.mxu0
        %v2324 = vadd.f32 0.0, %v2323
        %v2325 = vpop.f32.mrf.mxu0
        %2326 = vmatprep.mubr.f32.mxu0 0.0
        %2327 = vmatmul.mubr.f32.gmra.mxu0 %v2185
        %v2328 = vpop.f32.mrf.mxu0
        %v2329 = vadd.f32 0.0, %v2328
        %v2330 = vpop.f32.mrf.mxu0
        %2331 = vmatprep.mubr.f32.mxu0 0.0
        %2332 = vmatmul.mubr.f32.gmra.mxu0 %v2186
        %v2333 = vpop.f32.mrf.mxu0
        %v2334 = vadd.f32 0.0, %v2333
        %v2335 = vpop.f32.mrf.mxu0
        %2336 = vmatprep.mubr.f32.mxu0 0.0
        %2337 = vmatmul.mubr.f32.gmra.mxu0 %v2187
        %v2338 = vpop.f32.mrf.mxu0
        %v2339 = vadd.f32 0.0, %v2338
        %v2340 = vpop.f32.mrf.mxu0
        %2341 = vmatprep.mubr.f32.mxu0 0.0
        %2342 = vmatmul.mubr.f32.gmra.mxu0 %v2188
        %v2343 = vpop.f32.mrf.mxu0
        %v2344 = vadd.f32 0.0, %v2343
        %v2345 = vpop.f32.mrf.mxu0
        %2346 = vmatprep.mubr.f32.mxu0 0.0
        %2347 = vmatmul.mubr.f32.gmra.mxu0 %v2189
        %v2348 = vpop.f32.mrf.mxu0
        %v2349 = vadd.f32 0.0, %v2348
        %v2350 = vpop.f32.mrf.mxu0
        %2351 = vmatprep.mubr.f32.mxu0 0.0
        %2352 = vmatmul.mubr.f32.gmra.mxu0 %v2190
        %v2353 = vpop.f32.mrf.mxu0
        %v2354 = vadd.f32 0.0, %v2353
        %v2355 = vpop.f32.mrf.mxu0
        %2356 = vmatprep.mubr.f32.mxu0 0.0
        %2357 = vmatmul.mubr.f32.gmra.mxu0 %v2191
        %v2358 = vpop.f32.mrf.mxu0
        %v2359 = vadd.f32 0.0, %v2358
        %v2360 = vpop.f32.mrf.mxu0
        %2361 = vmatprep.mubr.f32.mxu0 0.0
        %2362 = vmatmul.mubr.f32.gmra.mxu0 %v2192
        %v2363 = vpop.f32.mrf.mxu0
        %v2364 = vadd.f32 0.0, %v2363
        %v2365 = vpop.f32.mrf.mxu0
        %2366 = vmatprep.mubr.f32.mxu0 0.0
        %2367 = vmatmul.mubr.f32.gmra.mxu0 %v2193
        %v2368 = vpop.f32.mrf.mxu0
        %v2369 = vadd.f32 0.0, %v2368
        %v2370 = vpop.f32.mrf.mxu0
        %2371 = vmatprep.mubr.f32.mxu0 0.0
        %2372 = vmatmul.mubr.f32.gmra.mxu0 %v2194
        %v2373 = vpop.f32.mrf.mxu0
        %v2374 = vadd.f32 0.0, %v2373
        %v2375 = vpop.f32.mrf.mxu0
        %2376 = vmatprep.mubr.f32.mxu0 0.0
        %2377 = vmatmul.mubr.f32.gmra.mxu0 %v2195
        %v2378 = vpop.f32.mrf.mxu0
        %v2379 = vadd.f32 0.0, %v2378
        %v2380 = vpop.f32.mrf.mxu0
        %2381 = vmatprep.mubr.f32.mxu0 0.0
        %2382 = vmatmul.mubr.f32.gmra.mxu0 %v2196
        %v2383 = vpop.f32.mrf.mxu0
        %v2384 = vadd.f32 0.0, %v2383
        %v2385 = vpop.f32.mrf.mxu0
        %2386 = vmatprep.mubr.f32.mxu0 0.0
        %2387 = vmatmul.mubr.f32.gmra.mxu0 %v2197
        %v2388 = vpop.f32.mrf.mxu0
        %v2389 = vadd.f32 0.0, %v2388
        %v2390 = vpop.f32.mrf.mxu0
        %2391 = vmatprep.mubr.f32.mxu0 0.0
        %2392 = vmatmul.mubr.f32.gmra.mxu0 %v2198
        %v2393 = vpop.f32.mrf.mxu0
        %v2394 = vadd.f32 0.0, %v2393
        %v2395 = vpop.f32.mrf.mxu0
        %2396 = vmatprep.mubr.f32.mxu0 0.0
        %2397 = vmatmul.mubr.f32.gmra.mxu0 %v2199
        %v2398 = vpop.f32.mrf.mxu0
        %v2399 = vadd.f32 0.0, %v2398
        %v2400 = vpop.f32.mrf.mxu0
        %2401 = vmatprep.mubr.f32.mxu0 0.0
        %2402 = vmatmul.mubr.f32.gmra.mxu0 %v2200
        %v2403 = vpop.f32.mrf.mxu0
        %v2404 = vadd.f32 0.0, %v2403
        %v2405 = vpop.f32.mrf.mxu0
        %2406 = vmatprep.mubr.f32.mxu0 0.0
        %2407 = vmatmul.mubr.f32.gmra.mxu0 %v2201
        %v2408 = vpop.f32.mrf.mxu0
        %v2409 = vadd.f32 0.0, %v2408
        %v2410 = vpop.f32.mrf.mxu0
        %2411 = vmatprep.mubr.f32.mxu0 0.0
        %2412 = vmatmul.mubr.f32.gmra.mxu0 %v2202
        %v2413 = vpop.f32.mrf.mxu0
        %v2414 = vadd.f32 0.0, %v2413
        %v2415 = vpop.f32.mrf.mxu0
        %2416 = vmatprep.mubr.f32.mxu0 0.0
        %2417 = vmatmul.mubr.f32.gmra.mxu0 %v2203
        %v2418 = vpop.f32.mrf.mxu0
        %v2419 = vadd.f32 0.0, %v2418
        %v2420 = vpop.f32.mrf.mxu0
        %2421 = vmatprep.mubr.f32.mxu0 0.0
        %2422 = vmatmul.mubr.f32.gmra.mxu0 %v2204
        %v2423 = vpop.f32.mrf.mxu0
        %v2424 = vadd.f32 0.0, %v2423
        %v2425 = vpop.f32.mrf.mxu0
        %2426 = vmatprep.mubr.f32.mxu0 0.0
        %2427 = vmatmul.mubr.f32.gmra.mxu0 %v2205
        %v2428 = vpop.f32.mrf.mxu0
        %v2429 = vadd.f32 0.0, %v2428
        %v2430 = vpop.f32.mrf.mxu0
        %2431 = vmatprep.mubr.f32.mxu0 0.0
        %2432 = vmatmul.mubr.f32.gmra.mxu0 %v2206
        %v2433 = vpop.f32.mrf.mxu0
        %v2434 = vadd.f32 0.0, %v2433
        %v2435 = vpop.f32.mrf.mxu0
        %2436 = vmatprep.mubr.f32.mxu0 0.0
        %2437 = vmatmul.mubr.f32.gmra.mxu0 %v2207
        %v2438 = vpop.f32.mrf.mxu0
        %v2439 = vadd.f32 0.0, %v2438
        %v2440 = vpop.f32.mrf.mxu0
        %2441 = vmatprep.mubr.f32.mxu0 0.0
        %2442 = vmatmul.mubr.f32.gmra.mxu0 %v2208
        %v2443 = vpop.f32.mrf.mxu0
        %v2444 = vadd.f32 0.0, %v2443
        %v2445 = vpop.f32.mrf.mxu0
        %2446 = vmatprep.mubr.f32.mxu0 0.0
        %2447 = vmatmul.mubr.f32.gmra.mxu0 %v2209
        %v2448 = vpop.f32.mrf.mxu0
        %v2449 = vadd.f32 0.0, %v2448
        %v2450 = vpop.f32.mrf.mxu0
        %2451 = vdwg.mxu0
        %v2452 = vadd.f32 %v2146, %v2294
        %v2453 = vadd.f32 %v2147, %v2299
        %v2454 = vadd.f32 %v2148, %v2304
        %v2455 = vadd.f32 %v2149, %v2309
        %v2456 = vadd.f32 %v2150, %v2314
        %v2457 = vadd.f32 %v2151, %v2319
        %v2458 = vadd.f32 %v2152, %v2324
        %v2459 = vadd.f32 %v2153, %v2329
        %v2460 = vadd.f32 %v2154, %v2334
        %v2461 = vadd.f32 %v2155, %v2339
        %v2462 = vadd.f32 %v2156, %v2344
        %v2463 = vadd.f32 %v2157, %v2349
        %v2464 = vadd.f32 %v2158, %v2354
        %v2465 = vadd.f32 %v2159, %v2359
        %v2466 = vadd.f32 %v2160, %v2364
        %v2467 = vadd.f32 %v2161, %v2369
        %v2468 = vadd.f32 %v2162, %v2374
        %v2469 = vadd.f32 %v2163, %v2379
        %v2470 = vadd.f32 %v2164, %v2384
        %v2471 = vadd.f32 %v2165, %v2389
        %v2472 = vadd.f32 %v2166, %v2394
        %v2473 = vadd.f32 %v2167, %v2399
        %v2474 = vadd.f32 %v2168, %v2404
        %v2475 = vadd.f32 %v2169, %v2409
        %v2476 = vadd.f32 %v2170, %v2414
        %v2477 = vadd.f32 %v2171, %v2419
        %v2478 = vadd.f32 %v2172, %v2424
        %v2479 = vadd.f32 %v2173, %v2429
        %v2480 = vadd.f32 %v2174, %v2434
        %v2481 = vadd.f32 %v2175, %v2439
        %v2482 = vadd.f32 %v2176, %v2444
        %v2483 = vadd.f32 %v2177, %v2449
        %s2484 = scalar_lea.vmem [#allocation2], 48
        %v2485 = vld [vmem:[%s2484] sm:$0xff]
        %v2486 = vld [vmem:[%s2484 + $0x8] sm:$0xff]
        %v2487 = vld [vmem:[%s2484 + $0x18] sm:$0xff]
        %v2488 = vld [vmem:[%s2484 + $0x20] sm:$0xff]
        %v2489 = vld [vmem:[%s2484 + $0x30] sm:$0xff]
        %v2490 = vld [vmem:[%s2484 + $0x38] sm:$0xff]
        %v2491 = vld [vmem:[%s2484 + $0x48] sm:$0xff]
        %v2492 = vld [vmem:[%s2484 + $0x50] sm:$0xff]
        %v2493 = vld [vmem:[%s2484 + $0x60] sm:$0xff]
        %v2494 = vld [vmem:[%s2484 + $0x68] sm:$0xff]
        %v2495 = vld [vmem:[%s2484 + $0x78] sm:$0xff]
        %v2496 = vld [vmem:[%s2484 + $0x80] sm:$0xff]
        %v2497 = vld [vmem:[%s2484 + $0x90] sm:$0xff]
        %v2498 = vld [vmem:[%s2484 + $0x98] sm:$0xff]
        %v2499 = vld [vmem:[%s2484 + $0xa8] sm:$0xff]
        %v2500 = vld [vmem:[%s2484 + $0xb0] sm:$0xff]
        %v2501 = vld [vmem:[%s2484 + $0xc0] sm:$0xff]
        %v2502 = vld [vmem:[%s2484 + $0xc8] sm:$0xff]
        %v2503 = vld [vmem:[%s2484 + $0xd8] sm:$0xff]
        %v2504 = vld [vmem:[%s2484 + $0xe0] sm:$0xff]
        %v2505 = vld [vmem:[%s2484 + $0xf0] sm:$0xff]
        %v2506 = vld [vmem:[%s2484 + $0xf8] sm:$0xff]
        %v2507 = vld [vmem:[%s2484 + $0x108] sm:$0xff]
        %v2508 = vld [vmem:[%s2484 + $0x110] sm:$0xff]
        %v2509 = vld [vmem:[%s2484 + $0x120] sm:$0xff]
        %v2510 = vld [vmem:[%s2484 + $0x128] sm:$0xff]
        %v2511 = vld [vmem:[%s2484 + $0x138] sm:$0xff]
        %v2512 = vld [vmem:[%s2484 + $0x140] sm:$0xff]
        %v2513 = vld [vmem:[%s2484 + $0x150] sm:$0xff]
        %v2514 = vld [vmem:[%s2484 + $0x158] sm:$0xff]
        %v2515 = vld [vmem:[%s2484 + $0x168] sm:$0xff]
        %v2516 = vld [vmem:[%s2484 + $0x170] sm:$0xff]
        %s2517 = scalar_lea.vmem [#allocation3], 768
        %v2518 = vld [vmem:[%s2517] sm:$0xff]
        %v2519 = vld [vmem:[%s2517 + $0x8] sm:$0xff]
        %v2520 = vld [vmem:[%s2517 + $0x10] sm:$0xff]
        %v2521 = vld [vmem:[%s2517 + $0x18] sm:$0xff]
        %v2522 = vld [vmem:[%s2517 + $0x20] sm:$0xff]
        %v2523 = vld [vmem:[%s2517 + $0x28] sm:$0xff]
        %v2524 = vld [vmem:[%s2517 + $0x30] sm:$0xff]
        %v2525 = vld [vmem:[%s2517 + $0x38] sm:$0xff]
        %v2526 = vld [vmem:[%s2517 + $0x40] sm:$0xff]
        %v2527 = vld [vmem:[%s2517 + $0x48] sm:$0xff]
        %v2528 = vld [vmem:[%s2517 + $0x50] sm:$0xff]
        %v2529 = vld [vmem:[%s2517 + $0x58] sm:$0xff]
        %v2530 = vld [vmem:[%s2517 + $0x60] sm:$0xff]
        %v2531 = vld [vmem:[%s2517 + $0x68] sm:$0xff]
        %v2532 = vld [vmem:[%s2517 + $0x70] sm:$0xff]
        %v2533 = vld [vmem:[%s2517 + $0x78] sm:$0xff]
        %2534 = vmatprep.subr.mxu0 0.0
        %2535 = vmatpush1.msra.mxu0 %v2533
        %2536 = vmatprep.subr.mxu0 0.0
        %2537 = vmatpush1.msra.mxu0 %v2532
        %2538 = vmatprep.subr.mxu0 0.0
        %2539 = vmatpush1.msra.mxu0 %v2531
        %2540 = vmatprep.subr.mxu0 0.0
        %2541 = vmatpush1.msra.mxu0 %v2530
        %2542 = vmatprep.subr.mxu0 0.0
        %2543 = vmatpush1.msra.mxu0 %v2529
        %2544 = vmatprep.subr.mxu0 0.0
        %2545 = vmatpush1.msra.mxu0 %v2528
        %2546 = vmatprep.subr.mxu0 0.0
        %2547 = vmatpush1.msra.mxu0 %v2527
        %2548 = vmatprep.subr.mxu0 0.0
        %2549 = vmatpush1.msra.mxu0 %v2526
        %2550 = vmatprep.subr.mxu0 0.0
        %2551 = vmatpush1.msra.mxu0 %v2525
        %2552 = vmatprep.subr.mxu0 0.0
        %2553 = vmatpush1.msra.mxu0 %v2524
        %2554 = vmatprep.subr.mxu0 0.0
        %2555 = vmatpush1.msra.mxu0 %v2523
        %2556 = vmatprep.subr.mxu0 0.0
        %2557 = vmatpush1.msra.mxu0 %v2522
        %2558 = vmatprep.subr.mxu0 0.0
        %2559 = vmatpush1.msra.mxu0 %v2521
        %2560 = vmatprep.subr.mxu0 0.0
        %2561 = vmatpush1.msra.mxu0 %v2520
        %2562 = vmatprep.subr.mxu0 0.0
        %2563 = vmatpush1.msra.mxu0 %v2519
        %2564 = vmatprep.subr.mxu0 0.0
        %2565 = vmatpush1.msra.mxu0 %v2518
        %2566 = vmatprep.subr.mxu0 0.0
        %2567 = vmatpush2.msra.mxu0 0.0
        %2568 = vmatprep.subr.mxu0 0.0
        %2569 = vmatpush2.msra.mxu0 0.0
        %2570 = vmatprep.subr.mxu0 0.0
        %2571 = vmatpush2.msra.mxu0 0.0
        %2572 = vmatprep.subr.mxu0 0.0
        %2573 = vmatpush2.msra.mxu0 0.0
        %2574 = vmatprep.subr.mxu0 0.0
        %2575 = vmatpush2.msra.mxu0 0.0
        %2576 = vmatprep.subr.mxu0 0.0
        %2577 = vmatpush2.msra.mxu0 0.0
        %2578 = vmatprep.subr.mxu0 0.0
        %2579 = vmatpush2.msra.mxu0 0.0
        %2580 = vmatprep.subr.mxu0 0.0
        %2581 = vmatpush2.msra.mxu0 0.0
        %2582 = vmatprep.subr.mxu0 0.0
        %2583 = vmatpush2.msra.mxu0 0.0
        %2584 = vmatprep.subr.mxu0 0.0
        %2585 = vmatpush2.msra.mxu0 0.0
        %2586 = vmatprep.subr.mxu0 0.0
        %2587 = vmatpush2.msra.mxu0 0.0
        %2588 = vmatprep.subr.mxu0 0.0
        %2589 = vmatpush2.msra.mxu0 0.0
        %2590 = vmatprep.subr.mxu0 0.0
        %2591 = vmatpush2.msra.mxu0 0.0
        %2592 = vmatprep.subr.mxu0 0.0
        %2593 = vmatpush2.msra.mxu0 0.0
        %2594 = vmatprep.subr.mxu0 0.0
        %2595 = vmatpush2.msra.mxu0 0.0
        %2596 = vmatprep.subr.mxu0 0.0
        %2597 = vmatpush2.msra.mxu0 0.0
        %2598 = vmatprep.mubr.f32.mxu0 0.0
        %2599 = vmatmul.mubr.f32.gmra.mxu0 %v2485
        %v2600 = vpop.f32.mrf.mxu0
        %v2601 = vadd.f32 0.0, %v2600
        %v2602 = vpop.f32.mrf.mxu0
        %2603 = vmatprep.mubr.f32.mxu0 0.0
        %2604 = vmatmul.mubr.f32.gmra.mxu0 %v2486
        %v2605 = vpop.f32.mrf.mxu0
        %v2606 = vadd.f32 0.0, %v2605
        %v2607 = vpop.f32.mrf.mxu0
        %2608 = vmatprep.mubr.f32.mxu0 0.0
        %2609 = vmatmul.mubr.f32.gmra.mxu0 %v2487
        %v2610 = vpop.f32.mrf.mxu0
        %v2611 = vadd.f32 0.0, %v2610
        %v2612 = vpop.f32.mrf.mxu0
        %2613 = vmatprep.mubr.f32.mxu0 0.0
        %2614 = vmatmul.mubr.f32.gmra.mxu0 %v2488
        %v2615 = vpop.f32.mrf.mxu0
        %v2616 = vadd.f32 0.0, %v2615
        %v2617 = vpop.f32.mrf.mxu0
        %2618 = vmatprep.mubr.f32.mxu0 0.0
        %2619 = vmatmul.mubr.f32.gmra.mxu0 %v2489
        %v2620 = vpop.f32.mrf.mxu0
        %v2621 = vadd.f32 0.0, %v2620
        %v2622 = vpop.f32.mrf.mxu0
        %2623 = vmatprep.mubr.f32.mxu0 0.0
        %2624 = vmatmul.mubr.f32.gmra.mxu0 %v2490
        %v2625 = vpop.f32.mrf.mxu0
        %v2626 = vadd.f32 0.0, %v2625
        %v2627 = vpop.f32.mrf.mxu0
        %2628 = vmatprep.mubr.f32.mxu0 0.0
        %2629 = vmatmul.mubr.f32.gmra.mxu0 %v2491
        %v2630 = vpop.f32.mrf.mxu0
        %v2631 = vadd.f32 0.0, %v2630
        %v2632 = vpop.f32.mrf.mxu0
        %2633 = vmatprep.mubr.f32.mxu0 0.0
        %2634 = vmatmul.mubr.f32.gmra.mxu0 %v2492
        %v2635 = vpop.f32.mrf.mxu0
        %v2636 = vadd.f32 0.0, %v2635
        %v2637 = vpop.f32.mrf.mxu0
        %2638 = vmatprep.mubr.f32.mxu0 0.0
        %2639 = vmatmul.mubr.f32.gmra.mxu0 %v2493
        %v2640 = vpop.f32.mrf.mxu0
        %v2641 = vadd.f32 0.0, %v2640
        %v2642 = vpop.f32.mrf.mxu0
        %2643 = vmatprep.mubr.f32.mxu0 0.0
        %2644 = vmatmul.mubr.f32.gmra.mxu0 %v2494
        %v2645 = vpop.f32.mrf.mxu0
        %v2646 = vadd.f32 0.0, %v2645
        %v2647 = vpop.f32.mrf.mxu0
        %2648 = vmatprep.mubr.f32.mxu0 0.0
        %2649 = vmatmul.mubr.f32.gmra.mxu0 %v2495
        %v2650 = vpop.f32.mrf.mxu0
        %v2651 = vadd.f32 0.0, %v2650
        %v2652 = vpop.f32.mrf.mxu0
        %2653 = vmatprep.mubr.f32.mxu0 0.0
        %2654 = vmatmul.mubr.f32.gmra.mxu0 %v2496
        %v2655 = vpop.f32.mrf.mxu0
        %v2656 = vadd.f32 0.0, %v2655
        %v2657 = vpop.f32.mrf.mxu0
        %2658 = vmatprep.mubr.f32.mxu0 0.0
        %2659 = vmatmul.mubr.f32.gmra.mxu0 %v2497
        %v2660 = vpop.f32.mrf.mxu0
        %v2661 = vadd.f32 0.0, %v2660
        %v2662 = vpop.f32.mrf.mxu0
        %2663 = vmatprep.mubr.f32.mxu0 0.0
        %2664 = vmatmul.mubr.f32.gmra.mxu0 %v2498
        %v2665 = vpop.f32.mrf.mxu0
        %v2666 = vadd.f32 0.0, %v2665
        %v2667 = vpop.f32.mrf.mxu0
        %2668 = vmatprep.mubr.f32.mxu0 0.0
        %2669 = vmatmul.mubr.f32.gmra.mxu0 %v2499
        %v2670 = vpop.f32.mrf.mxu0
        %v2671 = vadd.f32 0.0, %v2670
        %v2672 = vpop.f32.mrf.mxu0
        %2673 = vmatprep.mubr.f32.mxu0 0.0
        %2674 = vmatmul.mubr.f32.gmra.mxu0 %v2500
        %v2675 = vpop.f32.mrf.mxu0
        %v2676 = vadd.f32 0.0, %v2675
        %v2677 = vpop.f32.mrf.mxu0
        %2678 = vmatprep.mubr.f32.mxu0 0.0
        %2679 = vmatmul.mubr.f32.gmra.mxu0 %v2501
        %v2680 = vpop.f32.mrf.mxu0
        %v2681 = vadd.f32 0.0, %v2680
        %v2682 = vpop.f32.mrf.mxu0
        %2683 = vmatprep.mubr.f32.mxu0 0.0
        %2684 = vmatmul.mubr.f32.gmra.mxu0 %v2502
        %v2685 = vpop.f32.mrf.mxu0
        %v2686 = vadd.f32 0.0, %v2685
        %v2687 = vpop.f32.mrf.mxu0
        %2688 = vmatprep.mubr.f32.mxu0 0.0
        %2689 = vmatmul.mubr.f32.gmra.mxu0 %v2503
        %v2690 = vpop.f32.mrf.mxu0
        %v2691 = vadd.f32 0.0, %v2690
        %v2692 = vpop.f32.mrf.mxu0
        %2693 = vmatprep.mubr.f32.mxu0 0.0
        %2694 = vmatmul.mubr.f32.gmra.mxu0 %v2504
        %v2695 = vpop.f32.mrf.mxu0
        %v2696 = vadd.f32 0.0, %v2695
        %v2697 = vpop.f32.mrf.mxu0
        %2698 = vmatprep.mubr.f32.mxu0 0.0
        %2699 = vmatmul.mubr.f32.gmra.mxu0 %v2505
        %v2700 = vpop.f32.mrf.mxu0
        %v2701 = vadd.f32 0.0, %v2700
        %v2702 = vpop.f32.mrf.mxu0
        %2703 = vmatprep.mubr.f32.mxu0 0.0
        %2704 = vmatmul.mubr.f32.gmra.mxu0 %v2506
        %v2705 = vpop.f32.mrf.mxu0
        %v2706 = vadd.f32 0.0, %v2705
        %v2707 = vpop.f32.mrf.mxu0
        %2708 = vmatprep.mubr.f32.mxu0 0.0
        %2709 = vmatmul.mubr.f32.gmra.mxu0 %v2507
        %v2710 = vpop.f32.mrf.mxu0
        %v2711 = vadd.f32 0.0, %v2710
        %v2712 = vpop.f32.mrf.mxu0
        %2713 = vmatprep.mubr.f32.mxu0 0.0
        %2714 = vmatmul.mubr.f32.gmra.mxu0 %v2508
        %v2715 = vpop.f32.mrf.mxu0
        %v2716 = vadd.f32 0.0, %v2715
        %v2717 = vpop.f32.mrf.mxu0
        %2718 = vmatprep.mubr.f32.mxu0 0.0
        %2719 = vmatmul.mubr.f32.gmra.mxu0 %v2509
        %v2720 = vpop.f32.mrf.mxu0
        %v2721 = vadd.f32 0.0, %v2720
        %v2722 = vpop.f32.mrf.mxu0
        %2723 = vmatprep.mubr.f32.mxu0 0.0
        %2724 = vmatmul.mubr.f32.gmra.mxu0 %v2510
        %v2725 = vpop.f32.mrf.mxu0
        %v2726 = vadd.f32 0.0, %v2725
        %v2727 = vpop.f32.mrf.mxu0
        %2728 = vmatprep.mubr.f32.mxu0 0.0
        %2729 = vmatmul.mubr.f32.gmra.mxu0 %v2511
        %v2730 = vpop.f32.mrf.mxu0
        %v2731 = vadd.f32 0.0, %v2730
        %v2732 = vpop.f32.mrf.mxu0
        %2733 = vmatprep.mubr.f32.mxu0 0.0
        %2734 = vmatmul.mubr.f32.gmra.mxu0 %v2512
        %v2735 = vpop.f32.mrf.mxu0
        %v2736 = vadd.f32 0.0, %v2735
        %v2737 = vpop.f32.mrf.mxu0
        %2738 = vmatprep.mubr.f32.mxu0 0.0
        %2739 = vmatmul.mubr.f32.gmra.mxu0 %v2513
        %v2740 = vpop.f32.mrf.mxu0
        %v2741 = vadd.f32 0.0, %v2740
        %v2742 = vpop.f32.mrf.mxu0
        %2743 = vmatprep.mubr.f32.mxu0 0.0
        %2744 = vmatmul.mubr.f32.gmra.mxu0 %v2514
        %v2745 = vpop.f32.mrf.mxu0
        %v2746 = vadd.f32 0.0, %v2745
        %v2747 = vpop.f32.mrf.mxu0
        %2748 = vmatprep.mubr.f32.mxu0 0.0
        %2749 = vmatmul.mubr.f32.gmra.mxu0 %v2515
        %v2750 = vpop.f32.mrf.mxu0
        %v2751 = vadd.f32 0.0, %v2750
        %v2752 = vpop.f32.mrf.mxu0
        %2753 = vmatprep.mubr.f32.mxu0 0.0
        %2754 = vmatmul.mubr.f32.gmra.mxu0 %v2516
        %v2755 = vpop.f32.mrf.mxu0
        %v2756 = vadd.f32 0.0, %v2755
        %v2757 = vpop.f32.mrf.mxu0
        %2758 = vdwg.mxu0
        %v2759 = vadd.f32 %v2452, %v2601
        %v2760 = vadd.f32 %v2453, %v2606
        %v2761 = vadd.f32 %v2454, %v2611
        %v2762 = vadd.f32 %v2455, %v2616
        %v2763 = vadd.f32 %v2456, %v2621
        %v2764 = vadd.f32 %v2457, %v2626
        %v2765 = vadd.f32 %v2458, %v2631
        %v2766 = vadd.f32 %v2459, %v2636
        %v2767 = vadd.f32 %v2460, %v2641
        %v2768 = vadd.f32 %v2461, %v2646
        %v2769 = vadd.f32 %v2462, %v2651
        %v2770 = vadd.f32 %v2463, %v2656
        %v2771 = vadd.f32 %v2464, %v2661
        %v2772 = vadd.f32 %v2465, %v2666
        %v2773 = vadd.f32 %v2466, %v2671
        %v2774 = vadd.f32 %v2467, %v2676
        %v2775 = vadd.f32 %v2468, %v2681
        %v2776 = vadd.f32 %v2469, %v2686
        %v2777 = vadd.f32 %v2470, %v2691
        %v2778 = vadd.f32 %v2471, %v2696
        %v2779 = vadd.f32 %v2472, %v2701
        %v2780 = vadd.f32 %v2473, %v2706
        %v2781 = vadd.f32 %v2474, %v2711
        %v2782 = vadd.f32 %v2475, %v2716
        %v2783 = vadd.f32 %v2476, %v2721
        %v2784 = vadd.f32 %v2477, %v2726
        %v2785 = vadd.f32 %v2478, %v2731
        %v2786 = vadd.f32 %v2479, %v2736
        %v2787 = vadd.f32 %v2480, %v2741
        %v2788 = vadd.f32 %v2481, %v2746
        %v2789 = vadd.f32 %v2482, %v2751
        %v2790 = vadd.f32 %v2483, %v2756
        %v2791 = vld [vmem:[%s2484 + $0x1] sm:$0xff]
        %v2792 = vld [vmem:[%s2484 + $0x9] sm:$0xff]
        %v2793 = vld [vmem:[%s2484 + $0x19] sm:$0xff]
        %v2794 = vld [vmem:[%s2484 + $0x21] sm:$0xff]
        %v2795 = vld [vmem:[%s2484 + $0x31] sm:$0xff]
        %v2796 = vld [vmem:[%s2484 + $0x39] sm:$0xff]
        %v2797 = vld [vmem:[%s2484 + $0x49] sm:$0xff]
        %v2798 = vld [vmem:[%s2484 + $0x51] sm:$0xff]
        %v2799 = vld [vmem:[%s2484 + $0x61] sm:$0xff]
        %v2800 = vld [vmem:[%s2484 + $0x69] sm:$0xff]
        %v2801 = vld [vmem:[%s2484 + $0x79] sm:$0xff]
        %v2802 = vld [vmem:[%s2484 + $0x81] sm:$0xff]
        %v2803 = vld [vmem:[%s2484 + $0x91] sm:$0xff]
        %v2804 = vld [vmem:[%s2484 + $0x99] sm:$0xff]
        %v2805 = vld [vmem:[%s2484 + $0xa9] sm:$0xff]
        %v2806 = vld [vmem:[%s2484 + $0xb1] sm:$0xff]
        %v2807 = vld [vmem:[%s2484 + $0xc1] sm:$0xff]
        %v2808 = vld [vmem:[%s2484 + $0xc9] sm:$0xff]
        %v2809 = vld [vmem:[%s2484 + $0xd9] sm:$0xff]
        %v2810 = vld [vmem:[%s2484 + $0xe1] sm:$0xff]
        %v2811 = vld [vmem:[%s2484 + $0xf1] sm:$0xff]
        %v2812 = vld [vmem:[%s2484 + $0xf9] sm:$0xff]
        %v2813 = vld [vmem:[%s2484 + $0x109] sm:$0xff]
        %v2814 = vld [vmem:[%s2484 + $0x111] sm:$0xff]
        %v2815 = vld [vmem:[%s2484 + $0x121] sm:$0xff]
        %v2816 = vld [vmem:[%s2484 + $0x129] sm:$0xff]
        %v2817 = vld [vmem:[%s2484 + $0x139] sm:$0xff]
        %v2818 = vld [vmem:[%s2484 + $0x141] sm:$0xff]
        %v2819 = vld [vmem:[%s2484 + $0x151] sm:$0xff]
        %v2820 = vld [vmem:[%s2484 + $0x159] sm:$0xff]
        %v2821 = vld [vmem:[%s2484 + $0x169] sm:$0xff]
        %v2822 = vld [vmem:[%s2484 + $0x171] sm:$0xff]
        %s2823 = scalar_lea.vmem [#allocation3], 896
        %v2824 = vld [vmem:[%s2823] sm:$0xff]
        %v2825 = vld [vmem:[%s2823 + $0x8] sm:$0xff]
        %v2826 = vld [vmem:[%s2823 + $0x10] sm:$0xff]
        %v2827 = vld [vmem:[%s2823 + $0x18] sm:$0xff]
        %v2828 = vld [vmem:[%s2823 + $0x20] sm:$0xff]
        %v2829 = vld [vmem:[%s2823 + $0x28] sm:$0xff]
        %v2830 = vld [vmem:[%s2823 + $0x30] sm:$0xff]
        %v2831 = vld [vmem:[%s2823 + $0x38] sm:$0xff]
        %v2832 = vld [vmem:[%s2823 + $0x40] sm:$0xff]
        %v2833 = vld [vmem:[%s2823 + $0x48] sm:$0xff]
        %v2834 = vld [vmem:[%s2823 + $0x50] sm:$0xff]
        %v2835 = vld [vmem:[%s2823 + $0x58] sm:$0xff]
        %v2836 = vld [vmem:[%s2823 + $0x60] sm:$0xff]
        %v2837 = vld [vmem:[%s2823 + $0x68] sm:$0xff]
        %v2838 = vld [vmem:[%s2823 + $0x70] sm:$0xff]
        %v2839 = vld [vmem:[%s2823 + $0x78] sm:$0xff]
        %2840 = vmatprep.subr.mxu0 0.0
        %2841 = vmatpush1.msra.mxu0 %v2839
        %2842 = vmatprep.subr.mxu0 0.0
        %2843 = vmatpush1.msra.mxu0 %v2838
        %2844 = vmatprep.subr.mxu0 0.0
        %2845 = vmatpush1.msra.mxu0 %v2837
        %2846 = vmatprep.subr.mxu0 0.0
        %2847 = vmatpush1.msra.mxu0 %v2836
        %2848 = vmatprep.subr.mxu0 0.0
        %2849 = vmatpush1.msra.mxu0 %v2835
        %2850 = vmatprep.subr.mxu0 0.0
        %2851 = vmatpush1.msra.mxu0 %v2834
        %2852 = vmatprep.subr.mxu0 0.0
        %2853 = vmatpush1.msra.mxu0 %v2833
        %2854 = vmatprep.subr.mxu0 0.0
        %2855 = vmatpush1.msra.mxu0 %v2832
        %2856 = vmatprep.subr.mxu0 0.0
        %2857 = vmatpush1.msra.mxu0 %v2831
        %2858 = vmatprep.subr.mxu0 0.0
        %2859 = vmatpush1.msra.mxu0 %v2830
        %2860 = vmatprep.subr.mxu0 0.0
        %2861 = vmatpush1.msra.mxu0 %v2829
        %2862 = vmatprep.subr.mxu0 0.0
        %2863 = vmatpush1.msra.mxu0 %v2828
        %2864 = vmatprep.subr.mxu0 0.0
        %2865 = vmatpush1.msra.mxu0 %v2827
        %2866 = vmatprep.subr.mxu0 0.0
        %2867 = vmatpush1.msra.mxu0 %v2826
        %2868 = vmatprep.subr.mxu0 0.0
        %2869 = vmatpush1.msra.mxu0 %v2825
        %2870 = vmatprep.subr.mxu0 0.0
        %2871 = vmatpush1.msra.mxu0 %v2824
        %2872 = vmatprep.subr.mxu0 0.0
        %2873 = vmatpush2.msra.mxu0 0.0
        %2874 = vmatprep.subr.mxu0 0.0
        %2875 = vmatpush2.msra.mxu0 0.0
        %2876 = vmatprep.subr.mxu0 0.0
        %2877 = vmatpush2.msra.mxu0 0.0
        %2878 = vmatprep.subr.mxu0 0.0
        %2879 = vmatpush2.msra.mxu0 0.0
        %2880 = vmatprep.subr.mxu0 0.0
        %2881 = vmatpush2.msra.mxu0 0.0
        %2882 = vmatprep.subr.mxu0 0.0
        %2883 = vmatpush2.msra.mxu0 0.0
        %2884 = vmatprep.subr.mxu0 0.0
        %2885 = vmatpush2.msra.mxu0 0.0
        %2886 = vmatprep.subr.mxu0 0.0
        %2887 = vmatpush2.msra.mxu0 0.0
        %2888 = vmatprep.subr.mxu0 0.0
        %2889 = vmatpush2.msra.mxu0 0.0
        %2890 = vmatprep.subr.mxu0 0.0
        %2891 = vmatpush2.msra.mxu0 0.0
        %2892 = vmatprep.subr.mxu0 0.0
        %2893 = vmatpush2.msra.mxu0 0.0
        %2894 = vmatprep.subr.mxu0 0.0
        %2895 = vmatpush2.msra.mxu0 0.0
        %2896 = vmatprep.subr.mxu0 0.0
        %2897 = vmatpush2.msra.mxu0 0.0
        %2898 = vmatprep.subr.mxu0 0.0
        %2899 = vmatpush2.msra.mxu0 0.0
        %2900 = vmatprep.subr.mxu0 0.0
        %2901 = vmatpush2.msra.mxu0 0.0
        %2902 = vmatprep.subr.mxu0 0.0
        %2903 = vmatpush2.msra.mxu0 0.0
        %2904 = vmatprep.mubr.f32.mxu0 0.0
        %2905 = vmatmul.mubr.f32.gmra.mxu0 %v2791
        %v2906 = vpop.f32.mrf.mxu0
        %v2907 = vadd.f32 0.0, %v2906
        %v2908 = vpop.f32.mrf.mxu0
        %2909 = vmatprep.mubr.f32.mxu0 0.0
        %2910 = vmatmul.mubr.f32.gmra.mxu0 %v2792
        %v2911 = vpop.f32.mrf.mxu0
        %v2912 = vadd.f32 0.0, %v2911
        %v2913 = vpop.f32.mrf.mxu0
        %2914 = vmatprep.mubr.f32.mxu0 0.0
        %2915 = vmatmul.mubr.f32.gmra.mxu0 %v2793
        %v2916 = vpop.f32.mrf.mxu0
        %v2917 = vadd.f32 0.0, %v2916
        %v2918 = vpop.f32.mrf.mxu0
        %2919 = vmatprep.mubr.f32.mxu0 0.0
        %2920 = vmatmul.mubr.f32.gmra.mxu0 %v2794
        %v2921 = vpop.f32.mrf.mxu0
        %v2922 = vadd.f32 0.0, %v2921
        %v2923 = vpop.f32.mrf.mxu0
        %2924 = vmatprep.mubr.f32.mxu0 0.0
        %2925 = vmatmul.mubr.f32.gmra.mxu0 %v2795
        %v2926 = vpop.f32.mrf.mxu0
        %v2927 = vadd.f32 0.0, %v2926
        %v2928 = vpop.f32.mrf.mxu0
        %2929 = vmatprep.mubr.f32.mxu0 0.0
        %2930 = vmatmul.mubr.f32.gmra.mxu0 %v2796
        %v2931 = vpop.f32.mrf.mxu0
        %v2932 = vadd.f32 0.0, %v2931
        %v2933 = vpop.f32.mrf.mxu0
        %2934 = vmatprep.mubr.f32.mxu0 0.0
        %2935 = vmatmul.mubr.f32.gmra.mxu0 %v2797
        %v2936 = vpop.f32.mrf.mxu0
        %v2937 = vadd.f32 0.0, %v2936
        %v2938 = vpop.f32.mrf.mxu0
        %2939 = vmatprep.mubr.f32.mxu0 0.0
        %2940 = vmatmul.mubr.f32.gmra.mxu0 %v2798
        %v2941 = vpop.f32.mrf.mxu0
        %v2942 = vadd.f32 0.0, %v2941
        %v2943 = vpop.f32.mrf.mxu0
        %2944 = vmatprep.mubr.f32.mxu0 0.0
        %2945 = vmatmul.mubr.f32.gmra.mxu0 %v2799
        %v2946 = vpop.f32.mrf.mxu0
        %v2947 = vadd.f32 0.0, %v2946
        %v2948 = vpop.f32.mrf.mxu0
        %2949 = vmatprep.mubr.f32.mxu0 0.0
        %2950 = vmatmul.mubr.f32.gmra.mxu0 %v2800
        %v2951 = vpop.f32.mrf.mxu0
        %v2952 = vadd.f32 0.0, %v2951
        %v2953 = vpop.f32.mrf.mxu0
        %2954 = vmatprep.mubr.f32.mxu0 0.0
        %2955 = vmatmul.mubr.f32.gmra.mxu0 %v2801
        %v2956 = vpop.f32.mrf.mxu0
        %v2957 = vadd.f32 0.0, %v2956
        %v2958 = vpop.f32.mrf.mxu0
        %2959 = vmatprep.mubr.f32.mxu0 0.0
        %2960 = vmatmul.mubr.f32.gmra.mxu0 %v2802
        %v2961 = vpop.f32.mrf.mxu0
        %v2962 = vadd.f32 0.0, %v2961
        %v2963 = vpop.f32.mrf.mxu0
        %2964 = vmatprep.mubr.f32.mxu0 0.0
        %2965 = vmatmul.mubr.f32.gmra.mxu0 %v2803
        %v2966 = vpop.f32.mrf.mxu0
        %v2967 = vadd.f32 0.0, %v2966
        %v2968 = vpop.f32.mrf.mxu0
        %2969 = vmatprep.mubr.f32.mxu0 0.0
        %2970 = vmatmul.mubr.f32.gmra.mxu0 %v2804
        %v2971 = vpop.f32.mrf.mxu0
        %v2972 = vadd.f32 0.0, %v2971
        %v2973 = vpop.f32.mrf.mxu0
        %2974 = vmatprep.mubr.f32.mxu0 0.0
        %2975 = vmatmul.mubr.f32.gmra.mxu0 %v2805
        %v2976 = vpop.f32.mrf.mxu0
        %v2977 = vadd.f32 0.0, %v2976
        %v2978 = vpop.f32.mrf.mxu0
        %2979 = vmatprep.mubr.f32.mxu0 0.0
        %2980 = vmatmul.mubr.f32.gmra.mxu0 %v2806
        %v2981 = vpop.f32.mrf.mxu0
        %v2982 = vadd.f32 0.0, %v2981
        %v2983 = vpop.f32.mrf.mxu0
        %2984 = vmatprep.mubr.f32.mxu0 0.0
        %2985 = vmatmul.mubr.f32.gmra.mxu0 %v2807
        %v2986 = vpop.f32.mrf.mxu0
        %v2987 = vadd.f32 0.0, %v2986
        %v2988 = vpop.f32.mrf.mxu0
        %2989 = vmatprep.mubr.f32.mxu0 0.0
        %2990 = vmatmul.mubr.f32.gmra.mxu0 %v2808
        %v2991 = vpop.f32.mrf.mxu0
        %v2992 = vadd.f32 0.0, %v2991
        %v2993 = vpop.f32.mrf.mxu0
        %2994 = vmatprep.mubr.f32.mxu0 0.0
        %2995 = vmatmul.mubr.f32.gmra.mxu0 %v2809
        %v2996 = vpop.f32.mrf.mxu0
        %v2997 = vadd.f32 0.0, %v2996
        %v2998 = vpop.f32.mrf.mxu0
        %2999 = vmatprep.mubr.f32.mxu0 0.0
        %3000 = vmatmul.mubr.f32.gmra.mxu0 %v2810
        %v3001 = vpop.f32.mrf.mxu0
        %v3002 = vadd.f32 0.0, %v3001
        %v3003 = vpop.f32.mrf.mxu0
        %3004 = vmatprep.mubr.f32.mxu0 0.0
        %3005 = vmatmul.mubr.f32.gmra.mxu0 %v2811
        %v3006 = vpop.f32.mrf.mxu0
        %v3007 = vadd.f32 0.0, %v3006
        %v3008 = vpop.f32.mrf.mxu0
        %3009 = vmatprep.mubr.f32.mxu0 0.0
        %3010 = vmatmul.mubr.f32.gmra.mxu0 %v2812
        %v3011 = vpop.f32.mrf.mxu0
        %v3012 = vadd.f32 0.0, %v3011
        %v3013 = vpop.f32.mrf.mxu0
        %3014 = vmatprep.mubr.f32.mxu0 0.0
        %3015 = vmatmul.mubr.f32.gmra.mxu0 %v2813
        %v3016 = vpop.f32.mrf.mxu0
        %v3017 = vadd.f32 0.0, %v3016
        %v3018 = vpop.f32.mrf.mxu0
        %3019 = vmatprep.mubr.f32.mxu0 0.0
        %3020 = vmatmul.mubr.f32.gmra.mxu0 %v2814
        %v3021 = vpop.f32.mrf.mxu0
        %v3022 = vadd.f32 0.0, %v3021
        %v3023 = vpop.f32.mrf.mxu0
        %3024 = vmatprep.mubr.f32.mxu0 0.0
        %3025 = vmatmul.mubr.f32.gmra.mxu0 %v2815
        %v3026 = vpop.f32.mrf.mxu0
        %v3027 = vadd.f32 0.0, %v3026
        %v3028 = vpop.f32.mrf.mxu0
        %3029 = vmatprep.mubr.f32.mxu0 0.0
        %3030 = vmatmul.mubr.f32.gmra.mxu0 %v2816
        %v3031 = vpop.f32.mrf.mxu0
        %v3032 = vadd.f32 0.0, %v3031
        %v3033 = vpop.f32.mrf.mxu0
        %3034 = vmatprep.mubr.f32.mxu0 0.0
        %3035 = vmatmul.mubr.f32.gmra.mxu0 %v2817
        %v3036 = vpop.f32.mrf.mxu0
        %v3037 = vadd.f32 0.0, %v3036
        %v3038 = vpop.f32.mrf.mxu0
        %3039 = vmatprep.mubr.f32.mxu0 0.0
        %3040 = vmatmul.mubr.f32.gmra.mxu0 %v2818
        %v3041 = vpop.f32.mrf.mxu0
        %v3042 = vadd.f32 0.0, %v3041
        %v3043 = vpop.f32.mrf.mxu0
        %3044 = vmatprep.mubr.f32.mxu0 0.0
        %3045 = vmatmul.mubr.f32.gmra.mxu0 %v2819
        %v3046 = vpop.f32.mrf.mxu0
        %v3047 = vadd.f32 0.0, %v3046
        %v3048 = vpop.f32.mrf.mxu0
        %3049 = vmatprep.mubr.f32.mxu0 0.0
        %3050 = vmatmul.mubr.f32.gmra.mxu0 %v2820
        %v3051 = vpop.f32.mrf.mxu0
        %v3052 = vadd.f32 0.0, %v3051
        %v3053 = vpop.f32.mrf.mxu0
        %3054 = vmatprep.mubr.f32.mxu0 0.0
        %3055 = vmatmul.mubr.f32.gmra.mxu0 %v2821
        %v3056 = vpop.f32.mrf.mxu0
        %v3057 = vadd.f32 0.0, %v3056
        %v3058 = vpop.f32.mrf.mxu0
        %3059 = vmatprep.mubr.f32.mxu0 0.0
        %3060 = vmatmul.mubr.f32.gmra.mxu0 %v2822
        %v3061 = vpop.f32.mrf.mxu0
        %v3062 = vadd.f32 0.0, %v3061
        %v3063 = vpop.f32.mrf.mxu0
        %3064 = vdwg.mxu0
        %v3065 = vadd.f32 %v2759, %v2907
        %v3066 = vadd.f32 %v2760, %v2912
        %v3067 = vadd.f32 %v2761, %v2917
        %v3068 = vadd.f32 %v2762, %v2922
        %v3069 = vadd.f32 %v2763, %v2927
        %v3070 = vadd.f32 %v2764, %v2932
        %v3071 = vadd.f32 %v2765, %v2937
        %v3072 = vadd.f32 %v2766, %v2942
        %v3073 = vadd.f32 %v2767, %v2947
        %v3074 = vadd.f32 %v2768, %v2952
        %v3075 = vadd.f32 %v2769, %v2957
        %v3076 = vadd.f32 %v2770, %v2962
        %v3077 = vadd.f32 %v2771, %v2967
        %v3078 = vadd.f32 %v2772, %v2972
        %v3079 = vadd.f32 %v2773, %v2977
        %v3080 = vadd.f32 %v2774, %v2982
        %v3081 = vadd.f32 %v2775, %v2987
        %v3082 = vadd.f32 %v2776, %v2992
        %v3083 = vadd.f32 %v2777, %v2997
        %v3084 = vadd.f32 %v2778, %v3002
        %v3085 = vadd.f32 %v2779, %v3007
        %v3086 = vadd.f32 %v2780, %v3012
        %v3087 = vadd.f32 %v2781, %v3017
        %v3088 = vadd.f32 %v2782, %v3022
        %v3089 = vadd.f32 %v2783, %v3027
        %v3090 = vadd.f32 %v2784, %v3032
        %v3091 = vadd.f32 %v2785, %v3037
        %v3092 = vadd.f32 %v2786, %v3042
        %v3093 = vadd.f32 %v2787, %v3047
        %v3094 = vadd.f32 %v2788, %v3052
        %v3095 = vadd.f32 %v2789, %v3057
        %v3096 = vadd.f32 %v2790, %v3062
        %v3097 = vld [vmem:[%s2484 + $0x2] sm:$0xff]
        %v3098 = vld [vmem:[%s2484 + $0xa] sm:$0xff]
        %v3099 = vld [vmem:[%s2484 + $0x1a] sm:$0xff]
        %v3100 = vld [vmem:[%s2484 + $0x22] sm:$0xff]
        %v3101 = vld [vmem:[%s2484 + $0x32] sm:$0xff]
        %v3102 = vld [vmem:[%s2484 + $0x3a] sm:$0xff]
        %v3103 = vld [vmem:[%s2484 + $0x4a] sm:$0xff]
        %v3104 = vld [vmem:[%s2484 + $0x52] sm:$0xff]
        %v3105 = vld [vmem:[%s2484 + $0x62] sm:$0xff]
        %v3106 = vld [vmem:[%s2484 + $0x6a] sm:$0xff]
        %v3107 = vld [vmem:[%s2484 + $0x7a] sm:$0xff]
        %v3108 = vld [vmem:[%s2484 + $0x82] sm:$0xff]
        %v3109 = vld [vmem:[%s2484 + $0x92] sm:$0xff]
        %v3110 = vld [vmem:[%s2484 + $0x9a] sm:$0xff]
        %v3111 = vld [vmem:[%s2484 + $0xaa] sm:$0xff]
        %v3112 = vld [vmem:[%s2484 + $0xb2] sm:$0xff]
        %v3113 = vld [vmem:[%s2484 + $0xc2] sm:$0xff]
        %v3114 = vld [vmem:[%s2484 + $0xca] sm:$0xff]
        %v3115 = vld [vmem:[%s2484 + $0xda] sm:$0xff]
        %v3116 = vld [vmem:[%s2484 + $0xe2] sm:$0xff]
        %v3117 = vld [vmem:[%s2484 + $0xf2] sm:$0xff]
        %v3118 = vld [vmem:[%s2484 + $0xfa] sm:$0xff]
        %v3119 = vld [vmem:[%s2484 + $0x10a] sm:$0xff]
        %v3120 = vld [vmem:[%s2484 + $0x112] sm:$0xff]
        %v3121 = vld [vmem:[%s2484 + $0x122] sm:$0xff]
        %v3122 = vld [vmem:[%s2484 + $0x12a] sm:$0xff]
        %v3123 = vld [vmem:[%s2484 + $0x13a] sm:$0xff]
        %v3124 = vld [vmem:[%s2484 + $0x142] sm:$0xff]
        %v3125 = vld [vmem:[%s2484 + $0x152] sm:$0xff]
        %v3126 = vld [vmem:[%s2484 + $0x15a] sm:$0xff]
        %v3127 = vld [vmem:[%s2484 + $0x16a] sm:$0xff]
        %v3128 = vld [vmem:[%s2484 + $0x172] sm:$0xff]
        %s3129 = scalar_lea.vmem [#allocation3], 1024
        %v3130 = vld [vmem:[%s3129] sm:$0xff]
        %v3131 = vld [vmem:[%s3129 + $0x8] sm:$0xff]
        %v3132 = vld [vmem:[%s3129 + $0x10] sm:$0xff]
        %v3133 = vld [vmem:[%s3129 + $0x18] sm:$0xff]
        %v3134 = vld [vmem:[%s3129 + $0x20] sm:$0xff]
        %v3135 = vld [vmem:[%s3129 + $0x28] sm:$0xff]
        %v3136 = vld [vmem:[%s3129 + $0x30] sm:$0xff]
        %v3137 = vld [vmem:[%s3129 + $0x38] sm:$0xff]
        %v3138 = vld [vmem:[%s3129 + $0x40] sm:$0xff]
        %v3139 = vld [vmem:[%s3129 + $0x48] sm:$0xff]
        %v3140 = vld [vmem:[%s3129 + $0x50] sm:$0xff]
        %v3141 = vld [vmem:[%s3129 + $0x58] sm:$0xff]
        %v3142 = vld [vmem:[%s3129 + $0x60] sm:$0xff]
        %v3143 = vld [vmem:[%s3129 + $0x68] sm:$0xff]
        %v3144 = vld [vmem:[%s3129 + $0x70] sm:$0xff]
        %v3145 = vld [vmem:[%s3129 + $0x78] sm:$0xff]
        %3146 = vmatprep.subr.mxu0 0.0
        %3147 = vmatpush1.msra.mxu0 %v3145
        %3148 = vmatprep.subr.mxu0 0.0
        %3149 = vmatpush1.msra.mxu0 %v3144
        %3150 = vmatprep.subr.mxu0 0.0
        %3151 = vmatpush1.msra.mxu0 %v3143
        %3152 = vmatprep.subr.mxu0 0.0
        %3153 = vmatpush1.msra.mxu0 %v3142
        %3154 = vmatprep.subr.mxu0 0.0
        %3155 = vmatpush1.msra.mxu0 %v3141
        %3156 = vmatprep.subr.mxu0 0.0
        %3157 = vmatpush1.msra.mxu0 %v3140
        %3158 = vmatprep.subr.mxu0 0.0
        %3159 = vmatpush1.msra.mxu0 %v3139
        %3160 = vmatprep.subr.mxu0 0.0
        %3161 = vmatpush1.msra.mxu0 %v3138
        %3162 = vmatprep.subr.mxu0 0.0
        %3163 = vmatpush1.msra.mxu0 %v3137
        %3164 = vmatprep.subr.mxu0 0.0
        %3165 = vmatpush1.msra.mxu0 %v3136
        %3166 = vmatprep.subr.mxu0 0.0
        %3167 = vmatpush1.msra.mxu0 %v3135
        %3168 = vmatprep.subr.mxu0 0.0
        %3169 = vmatpush1.msra.mxu0 %v3134
        %3170 = vmatprep.subr.mxu0 0.0
        %3171 = vmatpush1.msra.mxu0 %v3133
        %3172 = vmatprep.subr.mxu0 0.0
        %3173 = vmatpush1.msra.mxu0 %v3132
        %3174 = vmatprep.subr.mxu0 0.0
        %3175 = vmatpush1.msra.mxu0 %v3131
        %3176 = vmatprep.subr.mxu0 0.0
        %3177 = vmatpush1.msra.mxu0 %v3130
        %3178 = vmatprep.subr.mxu0 0.0
        %3179 = vmatpush2.msra.mxu0 0.0
        %3180 = vmatprep.subr.mxu0 0.0
        %3181 = vmatpush2.msra.mxu0 0.0
        %3182 = vmatprep.subr.mxu0 0.0
        %3183 = vmatpush2.msra.mxu0 0.0
        %3184 = vmatprep.subr.mxu0 0.0
        %3185 = vmatpush2.msra.mxu0 0.0
        %3186 = vmatprep.subr.mxu0 0.0
        %3187 = vmatpush2.msra.mxu0 0.0
        %3188 = vmatprep.subr.mxu0 0.0
        %3189 = vmatpush2.msra.mxu0 0.0
        %3190 = vmatprep.subr.mxu0 0.0
        %3191 = vmatpush2.msra.mxu0 0.0
        %3192 = vmatprep.subr.mxu0 0.0
        %3193 = vmatpush2.msra.mxu0 0.0
        %3194 = vmatprep.subr.mxu0 0.0
        %3195 = vmatpush2.msra.mxu0 0.0
        %3196 = vmatprep.subr.mxu0 0.0
        %3197 = vmatpush2.msra.mxu0 0.0
        %3198 = vmatprep.subr.mxu0 0.0
        %3199 = vmatpush2.msra.mxu0 0.0
        %3200 = vmatprep.subr.mxu0 0.0
        %3201 = vmatpush2.msra.mxu0 0.0
        %3202 = vmatprep.subr.mxu0 0.0
        %3203 = vmatpush2.msra.mxu0 0.0
        %3204 = vmatprep.subr.mxu0 0.0
        %3205 = vmatpush2.msra.mxu0 0.0
        %3206 = vmatprep.subr.mxu0 0.0
        %3207 = vmatpush2.msra.mxu0 0.0
        %3208 = vmatprep.subr.mxu0 0.0
        %3209 = vmatpush2.msra.mxu0 0.0
        %3210 = vmatprep.mubr.f32.mxu0 0.0
        %3211 = vmatmul.mubr.f32.gmra.mxu0 %v3097
        %v3212 = vpop.f32.mrf.mxu0
        %v3213 = vadd.f32 0.0, %v3212
        %v3214 = vpop.f32.mrf.mxu0
        %3215 = vmatprep.mubr.f32.mxu0 0.0
        %3216 = vmatmul.mubr.f32.gmra.mxu0 %v3098
        %v3217 = vpop.f32.mrf.mxu0
        %v3218 = vadd.f32 0.0, %v3217
        %v3219 = vpop.f32.mrf.mxu0
        %3220 = vmatprep.mubr.f32.mxu0 0.0
        %3221 = vmatmul.mubr.f32.gmra.mxu0 %v3099
        %v3222 = vpop.f32.mrf.mxu0
        %v3223 = vadd.f32 0.0, %v3222
        %v3224 = vpop.f32.mrf.mxu0
        %3225 = vmatprep.mubr.f32.mxu0 0.0
        %3226 = vmatmul.mubr.f32.gmra.mxu0 %v3100
        %v3227 = vpop.f32.mrf.mxu0
        %v3228 = vadd.f32 0.0, %v3227
        %v3229 = vpop.f32.mrf.mxu0
        %3230 = vmatprep.mubr.f32.mxu0 0.0
        %3231 = vmatmul.mubr.f32.gmra.mxu0 %v3101
        %v3232 = vpop.f32.mrf.mxu0
        %v3233 = vadd.f32 0.0, %v3232
        %v3234 = vpop.f32.mrf.mxu0
        %3235 = vmatprep.mubr.f32.mxu0 0.0
        %3236 = vmatmul.mubr.f32.gmra.mxu0 %v3102
        %v3237 = vpop.f32.mrf.mxu0
        %v3238 = vadd.f32 0.0, %v3237
        %v3239 = vpop.f32.mrf.mxu0
        %3240 = vmatprep.mubr.f32.mxu0 0.0
        %3241 = vmatmul.mubr.f32.gmra.mxu0 %v3103
        %v3242 = vpop.f32.mrf.mxu0
        %v3243 = vadd.f32 0.0, %v3242
        %v3244 = vpop.f32.mrf.mxu0
        %3245 = vmatprep.mubr.f32.mxu0 0.0
        %3246 = vmatmul.mubr.f32.gmra.mxu0 %v3104
        %v3247 = vpop.f32.mrf.mxu0
        %v3248 = vadd.f32 0.0, %v3247
        %v3249 = vpop.f32.mrf.mxu0
        %3250 = vmatprep.mubr.f32.mxu0 0.0
        %3251 = vmatmul.mubr.f32.gmra.mxu0 %v3105
        %v3252 = vpop.f32.mrf.mxu0
        %v3253 = vadd.f32 0.0, %v3252
        %v3254 = vpop.f32.mrf.mxu0
        %3255 = vmatprep.mubr.f32.mxu0 0.0
        %3256 = vmatmul.mubr.f32.gmra.mxu0 %v3106
        %v3257 = vpop.f32.mrf.mxu0
        %v3258 = vadd.f32 0.0, %v3257
        %v3259 = vpop.f32.mrf.mxu0
        %3260 = vmatprep.mubr.f32.mxu0 0.0
        %3261 = vmatmul.mubr.f32.gmra.mxu0 %v3107
        %v3262 = vpop.f32.mrf.mxu0
        %v3263 = vadd.f32 0.0, %v3262
        %v3264 = vpop.f32.mrf.mxu0
        %3265 = vmatprep.mubr.f32.mxu0 0.0
        %3266 = vmatmul.mubr.f32.gmra.mxu0 %v3108
        %v3267 = vpop.f32.mrf.mxu0
        %v3268 = vadd.f32 0.0, %v3267
        %v3269 = vpop.f32.mrf.mxu0
        %3270 = vmatprep.mubr.f32.mxu0 0.0
        %3271 = vmatmul.mubr.f32.gmra.mxu0 %v3109
        %v3272 = vpop.f32.mrf.mxu0
        %v3273 = vadd.f32 0.0, %v3272
        %v3274 = vpop.f32.mrf.mxu0
        %3275 = vmatprep.mubr.f32.mxu0 0.0
        %3276 = vmatmul.mubr.f32.gmra.mxu0 %v3110
        %v3277 = vpop.f32.mrf.mxu0
        %v3278 = vadd.f32 0.0, %v3277
        %v3279 = vpop.f32.mrf.mxu0
        %3280 = vmatprep.mubr.f32.mxu0 0.0
        %3281 = vmatmul.mubr.f32.gmra.mxu0 %v3111
        %v3282 = vpop.f32.mrf.mxu0
        %v3283 = vadd.f32 0.0, %v3282
        %v3284 = vpop.f32.mrf.mxu0
        %3285 = vmatprep.mubr.f32.mxu0 0.0
        %3286 = vmatmul.mubr.f32.gmra.mxu0 %v3112
        %v3287 = vpop.f32.mrf.mxu0
        %v3288 = vadd.f32 0.0, %v3287
        %v3289 = vpop.f32.mrf.mxu0
        %3290 = vmatprep.mubr.f32.mxu0 0.0
        %3291 = vmatmul.mubr.f32.gmra.mxu0 %v3113
        %v3292 = vpop.f32.mrf.mxu0
        %v3293 = vadd.f32 0.0, %v3292
        %v3294 = vpop.f32.mrf.mxu0
        %3295 = vmatprep.mubr.f32.mxu0 0.0
        %3296 = vmatmul.mubr.f32.gmra.mxu0 %v3114
        %v3297 = vpop.f32.mrf.mxu0
        %v3298 = vadd.f32 0.0, %v3297
        %v3299 = vpop.f32.mrf.mxu0
        %3300 = vmatprep.mubr.f32.mxu0 0.0
        %3301 = vmatmul.mubr.f32.gmra.mxu0 %v3115
        %v3302 = vpop.f32.mrf.mxu0
        %v3303 = vadd.f32 0.0, %v3302
        %v3304 = vpop.f32.mrf.mxu0
        %3305 = vmatprep.mubr.f32.mxu0 0.0
        %3306 = vmatmul.mubr.f32.gmra.mxu0 %v3116
        %v3307 = vpop.f32.mrf.mxu0
        %v3308 = vadd.f32 0.0, %v3307
        %v3309 = vpop.f32.mrf.mxu0
        %3310 = vmatprep.mubr.f32.mxu0 0.0
        %3311 = vmatmul.mubr.f32.gmra.mxu0 %v3117
        %v3312 = vpop.f32.mrf.mxu0
        %v3313 = vadd.f32 0.0, %v3312
        %v3314 = vpop.f32.mrf.mxu0
        %3315 = vmatprep.mubr.f32.mxu0 0.0
        %3316 = vmatmul.mubr.f32.gmra.mxu0 %v3118
        %v3317 = vpop.f32.mrf.mxu0
        %v3318 = vadd.f32 0.0, %v3317
        %v3319 = vpop.f32.mrf.mxu0
        %3320 = vmatprep.mubr.f32.mxu0 0.0
        %3321 = vmatmul.mubr.f32.gmra.mxu0 %v3119
        %v3322 = vpop.f32.mrf.mxu0
        %v3323 = vadd.f32 0.0, %v3322
        %v3324 = vpop.f32.mrf.mxu0
        %3325 = vmatprep.mubr.f32.mxu0 0.0
        %3326 = vmatmul.mubr.f32.gmra.mxu0 %v3120
        %v3327 = vpop.f32.mrf.mxu0
        %v3328 = vadd.f32 0.0, %v3327
        %v3329 = vpop.f32.mrf.mxu0
        %3330 = vmatprep.mubr.f32.mxu0 0.0
        %3331 = vmatmul.mubr.f32.gmra.mxu0 %v3121
        %v3332 = vpop.f32.mrf.mxu0
        %v3333 = vadd.f32 0.0, %v3332
        %v3334 = vpop.f32.mrf.mxu0
        %3335 = vmatprep.mubr.f32.mxu0 0.0
        %3336 = vmatmul.mubr.f32.gmra.mxu0 %v3122
        %v3337 = vpop.f32.mrf.mxu0
        %v3338 = vadd.f32 0.0, %v3337
        %v3339 = vpop.f32.mrf.mxu0
        %3340 = vmatprep.mubr.f32.mxu0 0.0
        %3341 = vmatmul.mubr.f32.gmra.mxu0 %v3123
        %v3342 = vpop.f32.mrf.mxu0
        %v3343 = vadd.f32 0.0, %v3342
        %v3344 = vpop.f32.mrf.mxu0
        %3345 = vmatprep.mubr.f32.mxu0 0.0
        %3346 = vmatmul.mubr.f32.gmra.mxu0 %v3124
        %v3347 = vpop.f32.mrf.mxu0
        %v3348 = vadd.f32 0.0, %v3347
        %v3349 = vpop.f32.mrf.mxu0
        %3350 = vmatprep.mubr.f32.mxu0 0.0
        %3351 = vmatmul.mubr.f32.gmra.mxu0 %v3125
        %v3352 = vpop.f32.mrf.mxu0
        %v3353 = vadd.f32 0.0, %v3352
        %v3354 = vpop.f32.mrf.mxu0
        %3355 = vmatprep.mubr.f32.mxu0 0.0
        %3356 = vmatmul.mubr.f32.gmra.mxu0 %v3126
        %v3357 = vpop.f32.mrf.mxu0
        %v3358 = vadd.f32 0.0, %v3357
        %v3359 = vpop.f32.mrf.mxu0
        %3360 = vmatprep.mubr.f32.mxu0 0.0
        %3361 = vmatmul.mubr.f32.gmra.mxu0 %v3127
        %v3362 = vpop.f32.mrf.mxu0
        %v3363 = vadd.f32 0.0, %v3362
        %v3364 = vpop.f32.mrf.mxu0
        %3365 = vmatprep.mubr.f32.mxu0 0.0
        %3366 = vmatmul.mubr.f32.gmra.mxu0 %v3128
        %v3367 = vpop.f32.mrf.mxu0
        %v3368 = vadd.f32 0.0, %v3367
        %v3369 = vpop.f32.mrf.mxu0
        %3370 = vdwg.mxu0
        %v3371 = vadd.f32 %v3065, %v3213
        %v3372 = vadd.f32 %v3066, %v3218
        %v3373 = vadd.f32 %v3067, %v3223
        %v3374 = vadd.f32 %v3068, %v3228
        %v3375 = vadd.f32 %v3069, %v3233
        %v3376 = vadd.f32 %v3070, %v3238
        %v3377 = vadd.f32 %v3071, %v3243
        %v3378 = vadd.f32 %v3072, %v3248
        %v3379 = vadd.f32 %v3073, %v3253
        %v3380 = vadd.f32 %v3074, %v3258
        %v3381 = vadd.f32 %v3075, %v3263
        %v3382 = vadd.f32 %v3076, %v3268
        %v3383 = vadd.f32 %v3077, %v3273
        %v3384 = vadd.f32 %v3078, %v3278
        %v3385 = vadd.f32 %v3079, %v3283
        %v3386 = vadd.f32 %v3080, %v3288
        %v3387 = vadd.f32 %v3081, %v3293
        %v3388 = vadd.f32 %v3082, %v3298
        %v3389 = vadd.f32 %v3083, %v3303
        %v3390 = vadd.f32 %v3084, %v3308
        %v3391 = vadd.f32 %v3085, %v3313
        %v3392 = vadd.f32 %v3086, %v3318
        %v3393 = vadd.f32 %v3087, %v3323
        %v3394 = vadd.f32 %v3088, %v3328
        %v3395 = vadd.f32 %v3089, %v3333
        %v3396 = vadd.f32 %v3090, %v3338
        %v3397 = vadd.f32 %v3091, %v3343
        %v3398 = vadd.f32 %v3092, %v3348
        %v3399 = vadd.f32 %v3093, %v3353
        %v3400 = vadd.f32 %v3094, %v3358
        %v3401 = vadd.f32 %v3095, %v3363
        %v3402 = vadd.f32 %v3096, %v3368
        %v3403 = vld [vmem:[%s4] sm:$0x1]
        %v3405 = vlaneseq
        %v3406 = vshrl.u32 %v3405, 7
        %v3407 = vsub.s32 0, %v3406
        %v3408 = vrot.slane %v3403, %v3407
        %v3410 = vadd.f32 %v3371, %v3408
        %v3411 = vadd.f32 %v3372, %v3408
        %v3412 = vadd.f32 %v3373, %v3408
        %v3413 = vadd.f32 %v3374, %v3408
        %v3414 = vadd.f32 %v3375, %v3408
        %v3415 = vadd.f32 %v3376, %v3408
        %v3416 = vadd.f32 %v3377, %v3408
        %v3417 = vadd.f32 %v3378, %v3408
        %v3418 = vadd.f32 %v3379, %v3408
        %v3419 = vadd.f32 %v3380, %v3408
        %v3420 = vadd.f32 %v3381, %v3408
        %v3421 = vadd.f32 %v3382, %v3408
        %v3422 = vadd.f32 %v3383, %v3408
        %v3423 = vadd.f32 %v3384, %v3408
        %v3424 = vadd.f32 %v3385, %v3408
        %v3425 = vadd.f32 %v3386, %v3408
        %v3426 = vadd.f32 %v3387, %v3408
        %v3427 = vadd.f32 %v3388, %v3408
        %v3428 = vadd.f32 %v3389, %v3408
        %v3429 = vadd.f32 %v3390, %v3408
        %v3430 = vadd.f32 %v3391, %v3408
        %v3431 = vadd.f32 %v3392, %v3408
        %v3432 = vadd.f32 %v3393, %v3408
        %v3433 = vadd.f32 %v3394, %v3408
        %v3434 = vadd.f32 %v3395, %v3408
        %v3435 = vadd.f32 %v3396, %v3408
        %v3436 = vadd.f32 %v3397, %v3408
        %v3437 = vadd.f32 %v3398, %v3408
        %v3438 = vadd.f32 %v3399, %v3408
        %v3439 = vadd.f32 %v3400, %v3408
        %v3440 = vadd.f32 %v3401, %v3408
        %v3441 = vadd.f32 %v3402, %v3408
        %v3442 = vmax.f32 %v3410, 0.0
        %v3443 = vmax.f32 %v3411, 0.0
        %v3444 = vmax.f32 %v3412, 0.0
        %v3445 = vmax.f32 %v3413, 0.0
        %v3446 = vmax.f32 %v3414, 0.0
        %v3447 = vmax.f32 %v3415, 0.0
        %v3448 = vmax.f32 %v3416, 0.0
        %v3449 = vmax.f32 %v3417, 0.0
        %v3450 = vmax.f32 %v3418, 0.0
        %v3451 = vmax.f32 %v3419, 0.0
        %v3452 = vmax.f32 %v3420, 0.0
        %v3453 = vmax.f32 %v3421, 0.0
        %v3454 = vmax.f32 %v3422, 0.0
        %v3455 = vmax.f32 %v3423, 0.0
        %v3456 = vmax.f32 %v3424, 0.0
        %v3457 = vmax.f32 %v3425, 0.0
        %v3458 = vmax.f32 %v3426, 0.0
        %v3459 = vmax.f32 %v3427, 0.0
        %v3460 = vmax.f32 %v3428, 0.0
        %v3461 = vmax.f32 %v3429, 0.0
        %v3462 = vmax.f32 %v3430, 0.0
        %v3463 = vmax.f32 %v3431, 0.0
        %v3464 = vmax.f32 %v3432, 0.0
        %v3465 = vmax.f32 %v3433, 0.0
        %v3466 = vmax.f32 %v3434, 0.0
        %v3467 = vmax.f32 %v3435, 0.0
        %v3468 = vmax.f32 %v3436, 0.0
        %v3469 = vmax.f32 %v3437, 0.0
        %v3470 = vmax.f32 %v3438, 0.0
        %v3471 = vmax.f32 %v3439, 0.0
        %v3472 = vmax.f32 %v3440, 0.0
        %v3473 = vmax.f32 %v3441, 0.0
        %3474 = vxpose.xlu0.b32.start [1/16] %v3442, 128
        %3475 = vxpose.xlu0.b32.cont [2/16] %v3443, 128
        %3476 = vxpose.xlu0.b32.cont [3/16] %v3444, 128
        %3477 = vxpose.xlu0.b32.cont [4/16] %v3445, 128
        %3478 = vxpose.xlu0.b32.cont [5/16] %v3446, 128
        %3479 = vxpose.xlu0.b32.cont [6/16] %v3447, 128
        %3480 = vxpose.xlu0.b32.cont [7/16] %v3448, 128
        %3481 = vxpose.xlu0.b32.cont [8/16] %v3449, 128
        %3482 = vxpose.xlu0.b32.cont [9/16] %v3450, 128
        %3483 = vxpose.xlu0.b32.cont [10/16] %v3451, 128
        %3484 = vxpose.xlu0.b32.cont [11/16] %v3452, 128
        %3485 = vxpose.xlu0.b32.cont [12/16] %v3453, 128
        %3486 = vxpose.xlu0.b32.cont [13/16] %v3454, 128
        %3487 = vxpose.xlu0.b32.cont [14/16] %v3455, 128
        %3488 = vxpose.xlu0.b32.cont [15/16] %v3456, 128
        %3489 = vxpose.xlu0.b32.end [16/16] %v3457, 128
        %v3490 = vpop.trf.xlu0
        %v3491 = vpop.trf.xlu0
        %v3492 = vpop.trf.xlu0
        %v3493 = vpop.trf.xlu0
        %v3494 = vpop.trf.xlu0
        %v3495 = vpop.trf.xlu0
        %v3496 = vpop.trf.xlu0
        %v3497 = vpop.trf.xlu0
        %v3498 = vpop.trf.xlu0
        %v3499 = vpop.trf.xlu0
        %v3500 = vpop.trf.xlu0
        %v3501 = vpop.trf.xlu0
        %v3502 = vpop.trf.xlu0
        %v3503 = vpop.trf.xlu0
        %v3504 = vpop.trf.xlu0
        %v3505 = vpop.trf.xlu0
        %3506 = vxpose.xlu0.b32.start [1/16] %v3458, 128
        %3507 = vxpose.xlu0.b32.cont [2/16] %v3459, 128
        %3508 = vxpose.xlu0.b32.cont [3/16] %v3460, 128
        %3509 = vxpose.xlu0.b32.cont [4/16] %v3461, 128
        %3510 = vxpose.xlu0.b32.cont [5/16] %v3462, 128
        %3511 = vxpose.xlu0.b32.cont [6/16] %v3463, 128
        %3512 = vxpose.xlu0.b32.cont [7/16] %v3464, 128
        %3513 = vxpose.xlu0.b32.cont [8/16] %v3465, 128
        %3514 = vxpose.xlu0.b32.cont [9/16] %v3466, 128
        %3515 = vxpose.xlu0.b32.cont [10/16] %v3467, 128
        %3516 = vxpose.xlu0.b32.cont [11/16] %v3468, 128
        %3517 = vxpose.xlu0.b32.cont [12/16] %v3469, 128
        %3518 = vxpose.xlu0.b32.cont [13/16] %v3470, 128
        %3519 = vxpose.xlu0.b32.cont [14/16] %v3471, 128
        %3520 = vxpose.xlu0.b32.cont [15/16] %v3472, 128
        %3521 = vxpose.xlu0.b32.end [16/16] %v3473, 128
        %v3522 = vpop.trf.xlu0
        %v3523 = vpop.trf.xlu0
        %v3524 = vpop.trf.xlu0
        %v3525 = vpop.trf.xlu0
        %v3526 = vpop.trf.xlu0
        %v3527 = vpop.trf.xlu0
        %v3528 = vpop.trf.xlu0
        %v3529 = vpop.trf.xlu0
        %v3530 = vpop.trf.xlu0
        %v3531 = vpop.trf.xlu0
        %v3532 = vpop.trf.xlu0
        %v3533 = vpop.trf.xlu0
        %v3534 = vpop.trf.xlu0
        %v3535 = vpop.trf.xlu0
        %v3536 = vpop.trf.xlu0
        %v3537 = vpop.trf.xlu0
        %3538 = vst [vmem:[%s232] sm:$0xff] %v3490
        %3539 = vst [vmem:[%s232 + $0x8] sm:$0xff] %v3522
        %s3540 = sand.u32 %s138, 1
        %s3541 = scalar_lea.sflag [#allocation5], %s3540
        %s3542 = sand.u32 %s138, 1
        %s3543 = smul.addr %s3542, 16
        %s3544 = scalar_lea.vmem [#allocation6], %s3543
        // Predicated region
        $region45: #{tpu_custom_call.1} parent=39 // pred_check
          %p3545 = pneg %p148
        $region46: #{tpu_custom_call.1} parent=39 // pred_check_branch
          %3547 = sbr.rel (%p3545) target = $region48
        $region47: #{tpu_custom_call.1} parent=39 // pred_region
          %s3549 = ssub.s32 256, 256
          %3550 = vsyncadd %s3541, %s3549
          %s3551 = smul.addr %s20, 2
          %s3552 = smul.addr %s3551, 128
          %s3553 = scalar_lea.hbm %s5, %s3552
          %s3555 = sshll.u32 %s3544, 4
          %s3556 = int_to_ptr.vmem [resolvable:$true] %s3555
          %3558 = dma.vmem_to_hbm [thread:$0]  %s3556, 256, %s3553, %s3541
        $region48: #{tpu_custom_call.1} parent=39 // pred_fallthru
          _
      $region40: #{tpu_custom_call.1} parent=5 // pred_fallthru
        _
      %p3559 = scmp.le.s32.totalorder 2, %s15
      // Predicated region
      $region49: #{tpu_custom_call.1} parent=5 // pred_check
        %p3560 = pneg %p3559
      $region50: #{tpu_custom_call.1} parent=5 // pred_check_branch
        %3562 = sbr.rel (%p3560) target = $region52
      $region51: #{tpu_custom_call.1} parent=5 // pred_region
        %s3563 = ssub.s32 %s15, 2
        // Predicated region
        $region53: #{tpu_custom_call.1} parent=51 // pred_check
          %p3564 = pneg %p154
        $region54: #{tpu_custom_call.1} parent=51 // pred_check_branch
          %3566 = sbr.rel (%p3564) target = $region56
        $region55: #{tpu_custom_call.1} parent=51 // pred_region
          %s3567 = sand.u32 %s139, 1
          %s3568 = scalar_lea.sflag [#allocation5], %s3567
          %s3569 = sand.u32 %s139, 1
          %s3570 = smul.addr %s3569, 16
          %s3571 = scalar_lea.vmem [#allocation6], %s3570
          %3572 = dma.done %s3568, 256
        $region56: #{tpu_custom_call.1} parent=51 // pred_fallthru
          _
      $region52: #{tpu_custom_call.1} parent=5 // pred_fallthru
        _
    $region6: #{tpu_custom_call.1} parent=1 // loop_footer
      %s19 = sadd.s32 1, %s15
    $region7: #{tpu_custom_call.1} parent=1 // loop_footer_branch
      %14 = sbr.rel target = $region3
    $region8: #{tpu_custom_call.1} parent=1 // loop_exit
      _
    %3573 = vsyncpa [#allocation4], 1
    %s3574 = scalar_lea.sflag [#allocation4], 1
    %3575 = vsyncpa %s3574, 1
    %3576 = vsyncpa [#allocation5], 1
    %s3577 = scalar_lea.sflag [#allocation5], 1
    %3578 = vsyncpa %s3577, 1

</llo_original>
